<compile_context>
chip_gen: v7x
topology: tpu7x:2x2x1
jax: 0.10.0
libtpu: 0.0.40
codegen_flags: <defaults>
</compile_context>

<pallas_src>
import functools

import jax
import jax.numpy as jnp
import numpy as np
from jax.experimental import pallas as pl
from jax.experimental.pallas import tpu as pltpu

INPUT = 768
HIDDEN = 128
NCLASS = 2


def lstm_kernel(x_ref, wx_ref, wh_ref, b_ref, wl_ref, bl_ref, out_ref, xw_sc):
    """Single-invocation LSTM + linear head + log_softmax.

    x_ref : (S, B, D)  time-major input (B padded to a multiple of 8).
    wx_ref: (D, 4H)    W_ih^T, gate columns ordered [i, f, o, g].
    wh_ref: (H, 4H)    W_hh^T, same gate order.
    b_ref : (1, 4H)    b_ih + b_hh, same gate order.
    wl_ref: (H, C), bl_ref: (1, C)  linear head.
    out_ref: (B, C)    log-probabilities.
    xw_sc : (S, B, 4H) VMEM scratch holding the hoisted input projection,
                       stored TIME-MAJOR so xw_sc[t] is a contiguous tile slab.
    """
    S, B, D = x_ref.shape
    H = wh_ref.shape[0]

    # ---- Phase 1: hoisted, time-independent input projection (one MXU call) ----
    # x is already time-major, so the matmul output rows are time-major too and
    # the store below is layout-free (B % 8 == 0 -> the (S*B, 4H)->(S, B, 4H)
    # split lands exactly on tile-row boundaries).  No in-kernel relayout.
    x_flat = x_ref[...].reshape(S * B, D)                               # (S*B, D)
    xw = jnp.dot(x_flat, wx_ref[...],
                 preferred_element_type=jnp.float32) + b_ref[...]       # (S*B, 4H)
    xw_sc[...] = xw.reshape(S, B, 4 * H)

    # ---- Phase 2: recurrence over time (serial h -> h chain) ----
    def step(t, carry):
        h, c = carry
        # Contiguous full-tile load of this step's precomputed input projection,
        # plus the only per-step matmul: (B, H) x (H, 4H).
        gates = xw_sc[t] + jnp.dot(h, wh_ref[...],
                                   preferred_element_type=jnp.float32)  # (B, 4H)
        # sigmoid(x) = 0.5 * (tanh(x/2) + 1): one EUP op (tanh) + cheap VPU
        # mul/add instead of exp + reciprocal, on one contiguous [i, f, o] slice.
        sig = 0.5 * (jnp.tanh(0.5 * gates[:, :3 * H]) + 1.0)            # (B, 3H)
        i_g = sig[:, 0 * H:1 * H]
        f_g = sig[:, 1 * H:2 * H]
        o_g = sig[:, 2 * H:3 * H]
        g_g = jnp.tanh(gates[:, 3 * H:4 * H])
        c_n = f_g * c + i_g * g_g
        h_n = o_g * jnp.tanh(c_n)
        return (h_n, c_n)

    h0 = jnp.zeros((B, H), jnp.float32)
    c0 = jnp.zeros((B, H), jnp.float32)
    # unroll=True keeps LLO scheduling visibility while bounding live ranges.
    h, _ = jax.lax.fori_loop(0, S, step, (h0, c0), unroll=True)

    # ---- Phase 3: linear head on h_n, then log_softmax over classes ----
    logits = jnp.dot(h, wl_ref[...],
                     preferred_element_type=jnp.float32) + bl_ref[...]  # (B, C)
    z = logits - jnp.max(logits, axis=-1, keepdims=True)
    out_ref[...] = z - jnp.log(jnp.sum(jnp.exp(z), axis=-1, keepdims=True))


@jax.jit
def lstm_forward(x_bsd, wx, wh, b, wl, bl):
    """x_bsd: (batch, seq, 768) float32, batch_first like the PyTorch module."""
    B, S, D = x_bsd.shape
    H = wh.shape[0]

    # Pad batch up to a sublane multiple (>= 8); padded rows are independent and
    # get sliced off below.
    Bp = max(8, -(-B // 8) * 8)
    if Bp != B:
        x_bsd = jnp.pad(x_bsd, ((0, Bp - B), (0, 0), (0, 0)))
    # Time-major layout for the kernel.  This fuses with the pad above into one
    # trivial XLA op and means the kernel itself needs no cross-tile relayout.
    x_sbd = jnp.transpose(x_bsd, (1, 0, 2))                              # (S, Bp, D)

    out = pl.pallas_call(
        lstm_kernel,
        out_shape=jax.ShapeDtypeStruct((Bp, NCLASS), jnp.float32),
        in_specs=[pl.BlockSpec(memory_space=pltpu.MemorySpace.VMEM)
                  for _ in range(6)],
        out_specs=pl.BlockSpec(memory_space=pltpu.MemorySpace.VMEM),
        scratch_shapes=[pltpu.VMEM((S, Bp, 4 * H), jnp.float32)],
    )(x_sbd, wx, wh, b, wl, bl)
    return out[:B]


def init_params(key):
    """PyTorch-layout params, U(-1/sqrt(H), 1/sqrt(H)) like nn.LSTM / nn.Linear."""
    k = 1.0 / np.sqrt(HIDDEN)
    ks = jax.random.split(key, 6)
    w_ih = jax.random.uniform(ks[0], (4 * HIDDEN, INPUT), jnp.float32, -k, k)
    w_hh = jax.random.uniform(ks[1], (4 * HIDDEN, HIDDEN), jnp.float32, -k, k)
    b_ih = jax.random.uniform(ks[2], (4 * HIDDEN,), jnp.float32, -k, k)
    b_hh = jax.random.uniform(ks[3], (4 * HIDDEN,), jnp.float32, -k, k)
    w_lin = jax.random.uniform(ks[4], (NCLASS, HIDDEN), jnp.float32, -k, k)
    b_lin = jax.random.uniform(ks[5], (NCLASS,), jnp.float32, -k, k)
    return w_ih, w_hh, b_ih, b_hh, w_lin, b_lin


def prepare_params(w_ih, w_hh, b_ih, b_hh, w_lin, b_lin):
    """PyTorch layout -> kernel layout.

    Transpose weights to (in_features, out_features), combine the two biases,
    and permute gate blocks from PyTorch's [i, f, g, o] to [i, f, o, g].
    """
    H = HIDDEN
    perm = jnp.concatenate([jnp.arange(0, 2 * H),        # i, f
                            jnp.arange(3 * H, 4 * H),    # o
                            jnp.arange(2 * H, 3 * H)])   # g
    wx = w_ih[perm].T                                    # (768, 512)
    wh = w_hh[perm].T                                    # (128, 512)
    b = (b_ih + b_hh)[perm][None, :]                     # (1, 512)
    wl = w_lin.T                                         # (128, 2)
    bl = b_lin[None, :]                                  # (1, 2)
    return wx, wh, b, wl, bl


def reference_forward(x_bsd, w_ih, w_hh, b_ih, b_hh, w_lin, b_lin):
    """Pure-JAX reference matching PyTorch nn.LSTM + Linear + log_softmax."""
    H = HIDDEN
    B = x_bsd.shape[0]
    x = jnp.transpose(x_bsd, (1, 0, 2))                  # (S, B, D)

    def step(carry, x_t):
        h, c = carry
        gates = x_t @ w_ih.T + h @ w_hh.T + b_ih + b_hh
        i = jax.nn.sigmoid(gates[:, 0 * H:1 * H])
        f = jax.nn.sigmoid(gates[:, 1 * H:2 * H])
        g = jnp.tanh(gates[:, 2 * H:3 * H])
        o = jax.nn.sigmoid(gates[:, 3 * H:4 * H])
        c = f * c + i * g
        h = o * jnp.tanh(c)
        return (h, c), None

    h0 = jnp.zeros((B, H), jnp.float32)
    (h_n, _), _ = jax.lax.scan(step, (h0, h0), x)
    logits = h_n @ w_lin.T + b_lin
    return jax.nn.log_softmax(logits, axis=-1)


if __name__ == "__main__":
    key = jax.random.PRNGKey(0)
    k_x, k_p = jax.random.split(key)

    batch, seq = 2, 8
    x = jax.random.normal(k_x, (batch, seq, INPUT), jnp.float32)
    raw_params = init_params(k_p)
    kparams = prepare_params(*raw_params)

    out = lstm_forward(x, *kparams)
    out = jax.block_until_ready(out)

    ref = jax.block_until_ready(reference_forward(x, *raw_params))
    np.testing.assert_allclose(np.asarray(out), np.asarray(ref),
                               rtol=1e-4, atol=1e-4)
    assert out.shape == (batch, NCLASS)

    print("KERNEL_OK")
</pallas_src>

<mosaic_0001>
module attributes {stable_mosaic.version = 11 : i64} {
  func.func @lstm_kernel(%arg0: memref<8x8x768xf32, #tpu.memory_space<vmem>>, %arg1: memref<768x512xf32, #tpu.memory_space<vmem>>, %arg2: memref<128x512xf32, #tpu.memory_space<vmem>>, %arg3: memref<1x512xf32, #tpu.memory_space<vmem>>, %arg4: memref<128x2xf32, #tpu.memory_space<vmem>>, %arg5: memref<1x2xf32, #tpu.memory_space<vmem>>, %arg6: memref<8x2xf32, #tpu.memory_space<vmem>>, %arg7: memref<8x8x512xf32, #tpu.memory_space<vmem>>) attributes {dimension_semantics = [], scalar_prefetch = 0 : i64, scratch_operands = 1 : i64, tpu.core_type = #tpu.core_type<tc>} {
    %c0 = arith.constant 0 : index
    %c0_0 = arith.constant 0 : index
    %c0_1 = arith.constant 0 : index
    %0 = vector.load %arg0[%c0, %c0_0, %c0_1] : memref<8x8x768xf32, #tpu.memory_space<vmem>>, vector<8x8x768xf32>
    %1 = vector.shape_cast %0 : vector<8x8x768xf32> to vector<64x768xf32>
    %c0_2 = arith.constant 0 : index
    %c0_3 = arith.constant 0 : index
    %2 = vector.load %arg1[%c0_2, %c0_3] : memref<768x512xf32, #tpu.memory_space<vmem>>, vector<768x512xf32>
    %cst = arith.constant dense<0.000000e+00> : vector<64x512xf32>
    %3 = tpu.matmul %1, %2, %cst {dimension_numbers = #tpu.dot_dimension_numbers<[1], [0], [0], [1], [0, 0, 1, 1], [], []>} : vector<64x768xf32>, vector<768x512xf32>, vector<64x512xf32> -> vector<64x512xf32>
    %c0_4 = arith.constant 0 : index
    %c0_5 = arith.constant 0 : index
    %4 = vector.load %arg3[%c0_4, %c0_5] : memref<1x512xf32, #tpu.memory_space<vmem>>, vector<1x512xf32>
    %5 = vector.broadcast %4 : vector<1x512xf32> to vector<64x512xf32>
    %6 = arith.addf %3, %5 : vector<64x512xf32>
    %7 = vector.shape_cast %6 : vector<64x512xf32> to vector<8x8x512xf32>
    %c0_6 = arith.constant 0 : index
    %c0_7 = arith.constant 0 : index
    %c0_8 = arith.constant 0 : index
    %8 = vector.load %arg7[%c0_6, %c0_7, %c0_8] : memref<8x8x512xf32, #tpu.memory_space<vmem>>, vector<8x8x512xf32>
    tpu.vector_store %arg7[%c0_6, %c0_7, %c0_8], %7 {strides = array<i32>} : memref<8x8x512xf32, #tpu.memory_space<vmem>>, vector<8x8x512xf32>,
    %cst_9 = arith.constant 0.000000e+00 : f32
    %9 = vector.broadcast %cst_9 : f32 to vector<8x128xf32>
    %cst_10 = arith.constant 0.000000e+00 : f32
    %10 = vector.broadcast %cst_10 : f32 to vector<8x128xf32>
    %c0_i32 = arith.constant 0 : i32
    %11 = arith.index_cast %c0_i32 : i32 to index
    %c0_11 = arith.constant 0 : index
    %c0_12 = arith.constant 0 : index
    %12 = vector.load %arg7[%11, %c0_11, %c0_12] : memref<8x8x512xf32, #tpu.memory_space<vmem>>, vector<1x8x512xf32>
    %13 = vector.shape_cast %12 : vector<1x8x512xf32> to vector<8x512xf32>
    %c0_13 = arith.constant 0 : index
    %c0_14 = arith.constant 0 : index
    %14 = vector.load %arg2[%c0_13, %c0_14] : memref<128x512xf32, #tpu.memory_space<vmem>>, vector<128x512xf32>
    %cst_15 = arith.constant dense<0.000000e+00> : vector<8x512xf32>
    %15 = tpu.matmul %9, %14, %cst_15 {dimension_numbers = #tpu.dot_dimension_numbers<[1], [0], [0], [1], [0, 0, 1, 1], [], []>} : vector<8x128xf32>, vector<128x512xf32>, vector<8x512xf32> -> vector<8x512xf32>
    %16 = arith.addf %13, %15 : vector<8x512xf32>
    %17 = vector.extract_strided_slice %16 {offsets = [0, 0], sizes = [8, 384], strides = [1, 1]} : vector<8x512xf32> to vector<8x384xf32>
    %cst_16 = arith.constant 5.000000e-01 : f32
    %18 = vector.broadcast %cst_16 : f32 to vector<8x384xf32>
    %19 = arith.mulf %18, %17 : vector<8x384xf32>
    %20 = math.tanh %19 : vector<8x384xf32>
    %cst_17 = arith.constant 1.000000e+00 : f32
    %21 = vector.broadcast %cst_17 : f32 to vector<8x384xf32>
    %22 = arith.addf %20, %21 : vector<8x384xf32>
    %cst_18 = arith.constant 5.000000e-01 : f32
    %23 = vector.broadcast %cst_18 : f32 to vector<8x384xf32>
    %24 = arith.mulf %23, %22 : vector<8x384xf32>
    %25 = vector.extract_strided_slice %24 {offsets = [0, 0], sizes = [8, 128], strides = [1, 1]} : vector<8x384xf32> to vector<8x128xf32>
    %26 = vector.extract_strided_slice %24 {offsets = [0, 128], sizes = [8, 128], strides = [1, 1]} : vector<8x384xf32> to vector<8x128xf32>
    %27 = vector.extract_strided_slice %24 {offsets = [0, 256], sizes = [8, 128], strides = [1, 1]} : vector<8x384xf32> to vector<8x128xf32>
    %28 = vector.extract_strided_slice %16 {offsets = [0, 384], sizes = [8, 128], strides = [1, 1]} : vector<8x512xf32> to vector<8x128xf32>
    %29 = math.tanh %28 : vector<8x128xf32>
    %30 = arith.mulf %26, %10 : vector<8x128xf32>
    %31 = arith.mulf %25, %29 : vector<8x128xf32>
    %32 = arith.addf %30, %31 : vector<8x128xf32>
    %33 = math.tanh %32 : vector<8x128xf32>
    %34 = arith.mulf %27, %33 : vector<8x128xf32>
    %c1_i32 = arith.constant 1 : i32
    %35 = arith.index_cast %c1_i32 : i32 to index
    %c0_19 = arith.constant 0 : index
    %c0_20 = arith.constant 0 : index
    %36 = vector.load %arg7[%35, %c0_19, %c0_20] : memref<8x8x512xf32, #tpu.memory_space<vmem>>, vector<1x8x512xf32>
    %37 = vector.shape_cast %36 : vector<1x8x512xf32> to vector<8x512xf32>
    %c0_21 = arith.constant 0 : index
    %c0_22 = arith.constant 0 : index
    %38 = vector.load %arg2[%c0_21, %c0_22] : memref<128x512xf32, #tpu.memory_space<vmem>>, vector<128x512xf32>
    %cst_23 = arith.constant dense<0.000000e+00> : vector<8x512xf32>
    %39 = tpu.matmul %34, %38, %cst_23 {dimension_numbers = #tpu.dot_dimension_numbers<[1], [0], [0], [1], [0, 0, 1, 1], [], []>} : vector<8x128xf32>, vector<128x512xf32>, vector<8x512xf32> -> vector<8x512xf32>
    %40 = arith.addf %37, %39 : vector<8x512xf32>
    %41 = vector.extract_strided_slice %40 {offsets = [0, 0], sizes = [8, 384], strides = [1, 1]} : vector<8x512xf32> to vector<8x384xf32>
    %cst_24 = arith.constant 5.000000e-01 : f32
    %42 = vector.broadcast %cst_24 : f32 to vector<8x384xf32>
    %43 = arith.mulf %42, %41 : vector<8x384xf32>
    %44 = math.tanh %43 : vector<8x384xf32>
    %cst_25 = arith.constant 1.000000e+00 : f32
    %45 = vector.broadcast %cst_25 : f32 to vector<8x384xf32>
    %46 = arith.addf %44, %45 : vector<8x384xf32>
    %cst_26 = arith.constant 5.000000e-01 : f32
    %47 = vector.broadcast %cst_26 : f32 to vector<8x384xf32>
    %48 = arith.mulf %47, %46 : vector<8x384xf32>
    %49 = vector.extract_strided_slice %48 {offsets = [0, 0], sizes = [8, 128], strides = [1, 1]} : vector<8x384xf32> to vector<8x128xf32>
    %50 = vector.extract_strided_slice %48 {offsets = [0, 128], sizes = [8, 128], strides = [1, 1]} : vector<8x384xf32> to vector<8x128xf32>
    %51 = vector.extract_strided_slice %48 {offsets = [0, 256], sizes = [8, 128], strides = [1, 1]} : vector<8x384xf32> to vector<8x128xf32>
    %52 = vector.extract_strided_slice %40 {offsets = [0, 384], sizes = [8, 128], strides = [1, 1]} : vector<8x512xf32> to vector<8x128xf32>
    %53 = math.tanh %52 : vector<8x128xf32>
    %54 = arith.mulf %50, %32 : vector<8x128xf32>
    %55 = arith.mulf %49, %53 : vector<8x128xf32>
    %56 = arith.addf %54, %55 : vector<8x128xf32>
    %57 = math.tanh %56 : vector<8x128xf32>
    %58 = arith.mulf %51, %57 : vector<8x128xf32>
    %c2_i32 = arith.constant 2 : i32
    %59 = arith.index_cast %c2_i32 : i32 to index
    %c0_27 = arith.constant 0 : index
    %c0_28 = arith.constant 0 : index
    %60 = vector.load %arg7[%59, %c0_27, %c0_28] : memref<8x8x512xf32, #tpu.memory_space<vmem>>, vector<1x8x512xf32>
    %61 = vector.shape_cast %60 : vector<1x8x512xf32> to vector<8x512xf32>
    %c0_29 = arith.constant 0 : index
    %c0_30 = arith.constant 0 : index
    %62 = vector.load %arg2[%c0_29, %c0_30] : memref<128x512xf32, #tpu.memory_space<vmem>>, vector<128x512xf32>
    %cst_31 = arith.constant dense<0.000000e+00> : vector<8x512xf32>
    %63 = tpu.matmul %58, %62, %cst_31 {dimension_numbers = #tpu.dot_dimension_numbers<[1], [0], [0], [1], [0, 0, 1, 1], [], []>} : vector<8x128xf32>, vector<128x512xf32>, vector<8x512xf32> -> vector<8x512xf32>
    %64 = arith.addf %61, %63 : vector<8x512xf32>
    %65 = vector.extract_strided_slice %64 {offsets = [0, 0], sizes = [8, 384], strides = [1, 1]} : vector<8x512xf32> to vector<8x384xf32>
    %cst_32 = arith.constant 5.000000e-01 : f32
    %66 = vector.broadcast %cst_32 : f32 to vector<8x384xf32>
    %67 = arith.mulf %66, %65 : vector<8x384xf32>
    %68 = math.tanh %67 : vector<8x384xf32>
    %cst_33 = arith.constant 1.000000e+00 : f32
    %69 = vector.broadcast %cst_33 : f32 to vector<8x384xf32>
    %70 = arith.addf %68, %69 : vector<8x384xf32>
    %cst_34 = arith.constant 5.000000e-01 : f32
    %71 = vector.broadcast %cst_34 : f32 to vector<8x384xf32>
    %72 = arith.mulf %71, %70 : vector<8x384xf32>
    %73 = vector.extract_strided_slice %72 {offsets = [0, 0], sizes = [8, 128], strides = [1, 1]} : vector<8x384xf32> to vector<8x128xf32>
    %74 = vector.extract_strided_slice %72 {offsets = [0, 128], sizes = [8, 128], strides = [1, 1]} : vector<8x384xf32> to vector<8x128xf32>
    %75 = vector.extract_strided_slice %72 {offsets = [0, 256], sizes = [8, 128], strides = [1, 1]} : vector<8x384xf32> to vector<8x128xf32>
    %76 = vector.extract_strided_slice %64 {offsets = [0, 384], sizes = [8, 128], strides = [1, 1]} : vector<8x512xf32> to vector<8x128xf32>
    %77 = math.tanh %76 : vector<8x128xf32>
    %78 = arith.mulf %74, %56 : vector<8x128xf32>
    %79 = arith.mulf %73, %77 : vector<8x128xf32>
    %80 = arith.addf %78, %79 : vector<8x128xf32>
    %81 = math.tanh %80 : vector<8x128xf32>
    %82 = arith.mulf %75, %81 : vector<8x128xf32>
    %c3_i32 = arith.constant 3 : i32
    %83 = arith.index_cast %c3_i32 : i32 to index
    %c0_35 = arith.constant 0 : index
    %c0_36 = arith.constant 0 : index
    %84 = vector.load %arg7[%83, %c0_35, %c0_36] : memref<8x8x512xf32, #tpu.memory_space<vmem>>, vector<1x8x512xf32>
    %85 = vector.shape_cast %84 : vector<1x8x512xf32> to vector<8x512xf32>
    %c0_37 = arith.constant 0 : index
    %c0_38 = arith.constant 0 : index
    %86 = vector.load %arg2[%c0_37, %c0_38] : memref<128x512xf32, #tpu.memory_space<vmem>>, vector<128x512xf32>
    %cst_39 = arith.constant dense<0.000000e+00> : vector<8x512xf32>
    %87 = tpu.matmul %82, %86, %cst_39 {dimension_numbers = #tpu.dot_dimension_numbers<[1], [0], [0], [1], [0, 0, 1, 1], [], []>} : vector<8x128xf32>, vector<128x512xf32>, vector<8x512xf32> -> vector<8x512xf32>
    %88 = arith.addf %85, %87 : vector<8x512xf32>
    %89 = vector.extract_strided_slice %88 {offsets = [0, 0], sizes = [8, 384], strides = [1, 1]} : vector<8x512xf32> to vector<8x384xf32>
    %cst_40 = arith.constant 5.000000e-01 : f32
    %90 = vector.broadcast %cst_40 : f32 to vector<8x384xf32>
    %91 = arith.mulf %90, %89 : vector<8x384xf32>
    %92 = math.tanh %91 : vector<8x384xf32>
    %cst_41 = arith.constant 1.000000e+00 : f32
    %93 = vector.broadcast %cst_41 : f32 to vector<8x384xf32>
    %94 = arith.addf %92, %93 : vector<8x384xf32>
    %cst_42 = arith.constant 5.000000e-01 : f32
    %95 = vector.broadcast %cst_42 : f32 to vector<8x384xf32>
    %96 = arith.mulf %95, %94 : vector<8x384xf32>
    %97 = vector.extract_strided_slice %96 {offsets = [0, 0], sizes = [8, 128], strides = [1, 1]} : vector<8x384xf32> to vector<8x128xf32>
    %98 = vector.extract_strided_slice %96 {offsets = [0, 128], sizes = [8, 128], strides = [1, 1]} : vector<8x384xf32> to vector<8x128xf32>
    %99 = vector.extract_strided_slice %96 {offsets = [0, 256], sizes = [8, 128], strides = [1, 1]} : vector<8x384xf32> to vector<8x128xf32>
    %100 = vector.extract_strided_slice %88 {offsets = [0, 384], sizes = [8, 128], strides = [1, 1]} : vector<8x512xf32> to vector<8x128xf32>
    %101 = math.tanh %100 : vector<8x128xf32>
    %102 = arith.mulf %98, %80 : vector<8x128xf32>
    %103 = arith.mulf %97, %101 : vector<8x128xf32>
    %104 = arith.addf %102, %103 : vector<8x128xf32>
    %105 = math.tanh %104 : vector<8x128xf32>
    %106 = arith.mulf %99, %105 : vector<8x128xf32>
    %c4_i32 = arith.constant 4 : i32
    %107 = arith.index_cast %c4_i32 : i32 to index
    %c0_43 = arith.constant 0 : index
    %c0_44 = arith.constant 0 : index
    %108 = vector.load %arg7[%107, %c0_43, %c0_44] : memref<8x8x512xf32, #tpu.memory_space<vmem>>, vector<1x8x512xf32>
    %109 = vector.shape_cast %108 : vector<1x8x512xf32> to vector<8x512xf32>
    %c0_45 = arith.constant 0 : index
    %c0_46 = arith.constant 0 : index
    %110 = vector.load %arg2[%c0_45, %c0_46] : memref<128x512xf32, #tpu.memory_space<vmem>>, vector<128x512xf32>
    %cst_47 = arith.constant dense<0.000000e+00> : vector<8x512xf32>
    %111 = tpu.matmul %106, %110, %cst_47 {dimension_numbers = #tpu.dot_dimension_numbers<[1], [0], [0], [1], [0, 0, 1, 1], [], []>} : vector<8x128xf32>, vector<128x512xf32>, vector<8x512xf32> -> vector<8x512xf32>
    %112 = arith.addf %109, %111 : vector<8x512xf32>
    %113 = vector.extract_strided_slice %112 {offsets = [0, 0], sizes = [8, 384], strides = [1, 1]} : vector<8x512xf32> to vector<8x384xf32>
    %cst_48 = arith.constant 5.000000e-01 : f32
    %114 = vector.broadcast %cst_48 : f32 to vector<8x384xf32>
    %115 = arith.mulf %114, %113 : vector<8x384xf32>
    %116 = math.tanh %115 : vector<8x384xf32>
    %cst_49 = arith.constant 1.000000e+00 : f32
    %117 = vector.broadcast %cst_49 : f32 to vector<8x384xf32>
    %118 = arith.addf %116, %117 : vector<8x384xf32>
    %cst_50 = arith.constant 5.000000e-01 : f32
    %119 = vector.broadcast %cst_50 : f32 to vector<8x384xf32>
    %120 = arith.mulf %119, %118 : vector<8x384xf32>
    %121 = vector.extract_strided_slice %120 {offsets = [0, 0], sizes = [8, 128], strides = [1, 1]} : vector<8x384xf32> to vector<8x128xf32>
    %122 = vector.extract_strided_slice %120 {offsets = [0, 128], sizes = [8, 128], strides = [1, 1]} : vector<8x384xf32> to vector<8x128xf32>
    %123 = vector.extract_strided_slice %120 {offsets = [0, 256], sizes = [8, 128], strides = [1, 1]} : vector<8x384xf32> to vector<8x128xf32>
    %124 = vector.extract_strided_slice %112 {offsets = [0, 384], sizes = [8, 128], strides = [1, 1]} : vector<8x512xf32> to vector<8x128xf32>
    %125 = math.tanh %124 : vector<8x128xf32>
    %126 = arith.mulf %122, %104 : vector<8x128xf32>
    %127 = arith.mulf %121, %125 : vector<8x128xf32>
    %128 = arith.addf %126, %127 : vector<8x128xf32>
    %129 = math.tanh %128 : vector<8x128xf32>
    %130 = arith.mulf %123, %129 : vector<8x128xf32>
    %c5_i32 = arith.constant 5 : i32
    %131 = arith.index_cast %c5_i32 : i32 to index
    %c0_51 = arith.constant 0 : index
    %c0_52 = arith.constant 0 : index
    %132 = vector.load %arg7[%131, %c0_51, %c0_52] : memref<8x8x512xf32, #tpu.memory_space<vmem>>, vector<1x8x512xf32>
    %133 = vector.shape_cast %132 : vector<1x8x512xf32> to vector<8x512xf32>
    %c0_53 = arith.constant 0 : index
    %c0_54 = arith.constant 0 : index
    %134 = vector.load %arg2[%c0_53, %c0_54] : memref<128x512xf32, #tpu.memory_space<vmem>>, vector<128x512xf32>
    %cst_55 = arith.constant dense<0.000000e+00> : vector<8x512xf32>
    %135 = tpu.matmul %130, %134, %cst_55 {dimension_numbers = #tpu.dot_dimension_numbers<[1], [0], [0], [1], [0, 0, 1, 1], [], []>} : vector<8x128xf32>, vector<128x512xf32>, vector<8x512xf32> -> vector<8x512xf32>
    %136 = arith.addf %133, %135 : vector<8x512xf32>
    %137 = vector.extract_strided_slice %136 {offsets = [0, 0], sizes = [8, 384], strides = [1, 1]} : vector<8x512xf32> to vector<8x384xf32>
    %cst_56 = arith.constant 5.000000e-01 : f32
    %138 = vector.broadcast %cst_56 : f32 to vector<8x384xf32>
    %139 = arith.mulf %138, %137 : vector<8x384xf32>
    %140 = math.tanh %139 : vector<8x384xf32>
    %cst_57 = arith.constant 1.000000e+00 : f32
    %141 = vector.broadcast %cst_57 : f32 to vector<8x384xf32>
    %142 = arith.addf %140, %141 : vector<8x384xf32>
    %cst_58 = arith.constant 5.000000e-01 : f32
    %143 = vector.broadcast %cst_58 : f32 to vector<8x384xf32>
    %144 = arith.mulf %143, %142 : vector<8x384xf32>
    %145 = vector.extract_strided_slice %144 {offsets = [0, 0], sizes = [8, 128], strides = [1, 1]} : vector<8x384xf32> to vector<8x128xf32>
    %146 = vector.extract_strided_slice %144 {offsets = [0, 128], sizes = [8, 128], strides = [1, 1]} : vector<8x384xf32> to vector<8x128xf32>
    %147 = vector.extract_strided_slice %144 {offsets = [0, 256], sizes = [8, 128], strides = [1, 1]} : vector<8x384xf32> to vector<8x128xf32>
    %148 = vector.extract_strided_slice %136 {offsets = [0, 384], sizes = [8, 128], strides = [1, 1]} : vector<8x512xf32> to vector<8x128xf32>
    %149 = math.tanh %148 : vector<8x128xf32>
    %150 = arith.mulf %146, %128 : vector<8x128xf32>
    %151 = arith.mulf %145, %149 : vector<8x128xf32>
    %152 = arith.addf %150, %151 : vector<8x128xf32>
    %153 = math.tanh %152 : vector<8x128xf32>
    %154 = arith.mulf %147, %153 : vector<8x128xf32>
    %c6_i32 = arith.constant 6 : i32
    %155 = arith.index_cast %c6_i32 : i32 to index
    %c0_59 = arith.constant 0 : index
    %c0_60 = arith.constant 0 : index
    %156 = vector.load %arg7[%155, %c0_59, %c0_60] : memref<8x8x512xf32, #tpu.memory_space<vmem>>, vector<1x8x512xf32>
    %157 = vector.shape_cast %156 : vector<1x8x512xf32> to vector<8x512xf32>
    %c0_61 = arith.constant 0 : index
    %c0_62 = arith.constant 0 : index
    %158 = vector.load %arg2[%c0_61, %c0_62] : memref<128x512xf32, #tpu.memory_space<vmem>>, vector<128x512xf32>
    %cst_63 = arith.constant dense<0.000000e+00> : vector<8x512xf32>
    %159 = tpu.matmul %154, %158, %cst_63 {dimension_numbers = #tpu.dot_dimension_numbers<[1], [0], [0], [1], [0, 0, 1, 1], [], []>} : vector<8x128xf32>, vector<128x512xf32>, vector<8x512xf32> -> vector<8x512xf32>
    %160 = arith.addf %157, %159 : vector<8x512xf32>
    %161 = vector.extract_strided_slice %160 {offsets = [0, 0], sizes = [8, 384], strides = [1, 1]} : vector<8x512xf32> to vector<8x384xf32>
    %cst_64 = arith.constant 5.000000e-01 : f32
    %162 = vector.broadcast %cst_64 : f32 to vector<8x384xf32>
    %163 = arith.mulf %162, %161 : vector<8x384xf32>
    %164 = math.tanh %163 : vector<8x384xf32>
    %cst_65 = arith.constant 1.000000e+00 : f32
    %165 = vector.broadcast %cst_65 : f32 to vector<8x384xf32>
    %166 = arith.addf %164, %165 : vector<8x384xf32>
    %cst_66 = arith.constant 5.000000e-01 : f32
    %167 = vector.broadcast %cst_66 : f32 to vector<8x384xf32>
    %168 = arith.mulf %167, %166 : vector<8x384xf32>
    %169 = vector.extract_strided_slice %168 {offsets = [0, 0], sizes = [8, 128], strides = [1, 1]} : vector<8x384xf32> to vector<8x128xf32>
    %170 = vector.extract_strided_slice %168 {offsets = [0, 128], sizes = [8, 128], strides = [1, 1]} : vector<8x384xf32> to vector<8x128xf32>
    %171 = vector.extract_strided_slice %168 {offsets = [0, 256], sizes = [8, 128], strides = [1, 1]} : vector<8x384xf32> to vector<8x128xf32>
    %172 = vector.extract_strided_slice %160 {offsets = [0, 384], sizes = [8, 128], strides = [1, 1]} : vector<8x512xf32> to vector<8x128xf32>
    %173 = math.tanh %172 : vector<8x128xf32>
    %174 = arith.mulf %170, %152 : vector<8x128xf32>
    %175 = arith.mulf %169, %173 : vector<8x128xf32>
    %176 = arith.addf %174, %175 : vector<8x128xf32>
    %177 = math.tanh %176 : vector<8x128xf32>
    %178 = arith.mulf %171, %177 : vector<8x128xf32>
    %c7_i32 = arith.constant 7 : i32
    %179 = arith.index_cast %c7_i32 : i32 to index
    %c0_67 = arith.constant 0 : index
    %c0_68 = arith.constant 0 : index
    %180 = vector.load %arg7[%179, %c0_67, %c0_68] : memref<8x8x512xf32, #tpu.memory_space<vmem>>, vector<1x8x512xf32>
    %181 = vector.shape_cast %180 : vector<1x8x512xf32> to vector<8x512xf32>
    %c0_69 = arith.constant 0 : index
    %c0_70 = arith.constant 0 : index
    %182 = vector.load %arg2[%c0_69, %c0_70] : memref<128x512xf32, #tpu.memory_space<vmem>>, vector<128x512xf32>
    %cst_71 = arith.constant dense<0.000000e+00> : vector<8x512xf32>
    %183 = tpu.matmul %178, %182, %cst_71 {dimension_numbers = #tpu.dot_dimension_numbers<[1], [0], [0], [1], [0, 0, 1, 1], [], []>} : vector<8x128xf32>, vector<128x512xf32>, vector<8x512xf32> -> vector<8x512xf32>
    %184 = arith.addf %181, %183 : vector<8x512xf32>
    %185 = vector.extract_strided_slice %184 {offsets = [0, 0], sizes = [8, 384], strides = [1, 1]} : vector<8x512xf32> to vector<8x384xf32>
    %cst_72 = arith.constant 5.000000e-01 : f32
    %186 = vector.broadcast %cst_72 : f32 to vector<8x384xf32>
    %187 = arith.mulf %186, %185 : vector<8x384xf32>
    %188 = math.tanh %187 : vector<8x384xf32>
    %cst_73 = arith.constant 1.000000e+00 : f32
    %189 = vector.broadcast %cst_73 : f32 to vector<8x384xf32>
    %190 = arith.addf %188, %189 : vector<8x384xf32>
    %cst_74 = arith.constant 5.000000e-01 : f32
    %191 = vector.broadcast %cst_74 : f32 to vector<8x384xf32>
    %192 = arith.mulf %191, %190 : vector<8x384xf32>
    %193 = vector.extract_strided_slice %192 {offsets = [0, 0], sizes = [8, 128], strides = [1, 1]} : vector<8x384xf32> to vector<8x128xf32>
    %194 = vector.extract_strided_slice %192 {offsets = [0, 128], sizes = [8, 128], strides = [1, 1]} : vector<8x384xf32> to vector<8x128xf32>
    %195 = vector.extract_strided_slice %192 {offsets = [0, 256], sizes = [8, 128], strides = [1, 1]} : vector<8x384xf32> to vector<8x128xf32>
    %196 = vector.extract_strided_slice %184 {offsets = [0, 384], sizes = [8, 128], strides = [1, 1]} : vector<8x512xf32> to vector<8x128xf32>
    %197 = math.tanh %196 : vector<8x128xf32>
    %198 = arith.mulf %194, %176 : vector<8x128xf32>
    %199 = arith.mulf %193, %197 : vector<8x128xf32>
    %200 = arith.addf %198, %199 : vector<8x128xf32>
    %201 = math.tanh %200 : vector<8x128xf32>
    %202 = arith.mulf %195, %201 : vector<8x128xf32>
    %c8_i32 = arith.constant 8 : i32
    %c0_75 = arith.constant 0 : index
    %c0_76 = arith.constant 0 : index
    %203 = vector.load %arg4[%c0_75, %c0_76] : memref<128x2xf32, #tpu.memory_space<vmem>>, vector<128x2xf32>
    %cst_77 = arith.constant dense<0.000000e+00> : vector<8x2xf32>
    %204 = tpu.matmul %202, %203, %cst_77 {dimension_numbers = #tpu.dot_dimension_numbers<[1], [0], [0], [1], [0, 0, 1, 1], [], []>} : vector<8x128xf32>, vector<128x2xf32>, vector<8x2xf32> -> vector<8x2xf32>
    %c0_78 = arith.constant 0 : index
    %c0_79 = arith.constant 0 : index
    %205 = vector.load %arg5[%c0_78, %c0_79] : memref<1x2xf32, #tpu.memory_space<vmem>>, vector<1x2xf32>
    %206 = vector.broadcast %205 : vector<1x2xf32> to vector<8x2xf32>
    %207 = arith.addf %204, %206 : vector<8x2xf32>
    %cst_80 = arith.constant dense<0xFF800000> : vector<8xf32>
    %208 = vector.multi_reduction <maximumf>, %207, %cst_80 [1] : vector<8x2xf32> to vector<8xf32>
    %209 = vector.shape_cast %208 : vector<8xf32> to vector<8x1xf32>
    %210 = vector.broadcast %209 : vector<8x1xf32> to vector<8x2xf32>
    %211 = arith.subf %207, %210 : vector<8x2xf32>
    %212 = math.exp %211 : vector<8x2xf32>
    %cst_81 = arith.constant dense<0.000000e+00> : vector<8xf32>
    %213 = vector.multi_reduction <add>, %212, %cst_81 [1] : vector<8x2xf32> to vector<8xf32>
    %214 = vector.shape_cast %213 : vector<8xf32> to vector<8x1xf32>
    %215 = math.log %214 : vector<8x1xf32>
    %216 = vector.broadcast %215 : vector<8x1xf32> to vector<8x2xf32>
    %217 = arith.subf %211, %216 : vector<8x2xf32>
    %c0_82 = arith.constant 0 : index
    %c0_83 = arith.constant 0 : index
    %218 = vector.load %arg6[%c0_82, %c0_83] : memref<8x2xf32, #tpu.memory_space<vmem>>, vector<8x2xf32>
    tpu.vector_store %arg6[%c0_82, %c0_83], %217 {strides = array<i32>} : memref<8x2xf32, #tpu.memory_space<vmem>>, vector<8x2xf32>,
    return
  }
}

</mosaic_0001>

<llo_original>
// kernel: lstm_forward.1
$region0: #{lstm_forward.1}
  #allocation0 [shape = 'u32[]', space=smem, size = 0x4, offset = 0x4, fixed_abs, tag = 'smem constant byte address 0x4 - core index']
  #allocation1 [shape = 'u32[144,128]{1,0:T(1,128)}', space=vmem, size = 0x12000, scoped, tag = 'internal scratch']
  #allocation2 [shape = 'f32[8,8,512]{2,1,0:T(8,128)}', space=vmem, size = 0x20000, scoped, tag = 'scratch operand']
  %s0 = inlined_call_operand.vmem [shape: f32[8,8,768], index: 0, kind: input, shape index: {}]
  %s1 = inlined_call_operand.hbm [shape: f32[768,512], index: 1, kind: input, shape index: {}]
  %s2 = inlined_call_operand.hbm [shape: f32[128,512], index: 2, kind: input, shape index: {}]
  %s3 = inlined_call_operand.hbm [shape: f32[1,512], index: 3, kind: input, shape index: {}]
  %s4 = inlined_call_operand.vmem [shape: f32[128,2], index: 4, kind: input, shape index: {}]
  %s5 = inlined_call_operand.hbm [shape: f32[1,2], index: 5, kind: input, shape index: {}]
  %s6 = inlined_call_operand.vmem [shape: f32[8,2], index: 6, kind: output, shape index: {}]
  %s7 = sld [smem:[#allocation0]]
  $region50: #{lstm_forward.1} parent=0
    _
  %s9 = ssub.s32 1, %s7
  %s10 = scalar_select 0, %s9, %s7
  $region1: #{lstm_forward.1} parent=0
    #allocation3 [shape = 'u8[1572864]{0}', space=vmem, size = 0x180000, scoped, tag = 'input window, operand 1, single buffered']
    #allocation4 [shape = 's32[1]{0}', space=sflag, size = 0x4, scoped, tag = 'scoped memory for lstm_forward.1']
    #allocation5 [shape = 'u8[262144]{0}', space=vmem, size = 0x40000, scoped, tag = 'input window, operand 2, single buffered']
    #allocation6 [shape = 's32[1]{0}', space=sflag, size = 0x4, scoped, tag = 'scoped memory for lstm_forward.1']
    #allocation7 [shape = 'u8[2048]{0}', space=vmem, size = 0x800, scoped, tag = 'input window, operand 3, single buffered']
    #allocation8 [shape = 'u8[512]{0}', space=vmem, size = 0x400, scoped, tag = 'input window, operand 5, single buffered']
    #allocation9 [shape = 's32[1]{0}', space=sflag, size = 0x4, scoped, tag = 'scoped memory for lstm_forward.1']
    %11 = vsyncpa [#allocation4], 0
    %12 = vsyncpa [#allocation6], 0
    %13 = vsyncpa [#allocation9], 0
    // Predicated region
    $region2: #{lstm_forward.1} parent=1 // pred_check
      _
    $region3: #{lstm_forward.1} parent=1 // pred_check_branch
      %15 = sbr.rel (0) target = $region5
    $region4: #{lstm_forward.1} parent=1 // pred_region
      _
    $region5: #{lstm_forward.1} parent=1 // pred_fallthru
      _
    // Predicated region
    $region6: #{lstm_forward.1} parent=1 // pred_check
      _
    $region7: #{lstm_forward.1} parent=1 // pred_check_branch
      %17 = sbr.rel (0) target = $region9
    $region8: #{lstm_forward.1} parent=1 // pred_region
      %s19 = ssub.s32 49152, 49152
      %20 = vsyncadd [#allocation4], %s19
      %s21 = sshll.u32 [#allocation3], 4
      %s22 = int_to_ptr.vmem [resolvable:$true] %s21
      %27 = dma.hbm_to_vmem [thread:$0]  %s1, 49152, %s22, [#allocation4], 512, 512, 32
    $region9: #{lstm_forward.1} parent=1 // pred_fallthru
      _
    // Predicated region
    $region10: #{lstm_forward.1} parent=1 // pred_check
      _
    $region11: #{lstm_forward.1} parent=1 // pred_check_branch
      %29 = sbr.rel (0) target = $region13
    $region12: #{lstm_forward.1} parent=1 // pred_region
      %s31 = ssub.s32 8192, 8192
      %32 = vsyncadd [#allocation6], %s31
      %s33 = sshll.u32 [#allocation5], 4
      %s34 = int_to_ptr.vmem [resolvable:$true] %s33
      %39 = dma.hbm_to_vmem [thread:$0]  %s2, 8192, %s34, [#allocation6], 512, 512, 32
    $region13: #{lstm_forward.1} parent=1 // pred_fallthru
      _
    // Predicated region
    $region14: #{lstm_forward.1} parent=1 // pred_check
      _
    $region15: #{lstm_forward.1} parent=1 // pred_check_branch
      %41 = sbr.rel (0) target = $region17
    $region16: #{lstm_forward.1} parent=1 // pred_region
      %s43 = ssub.s32 64, 64
      %44 = vsyncadd [#allocation6], %s43
      %s46 = sshll.u32 [#allocation7], 4
      %s47 = int_to_ptr.vmem [resolvable:$true] %s46
      %49 = dma.hbm_to_vmem [thread:$0]  %s3, 64, %s47, [#allocation6]
    $region17: #{lstm_forward.1} parent=1 // pred_fallthru
      _
    // Predicated region
    $region18: #{lstm_forward.1} parent=1 // pred_check
      _
    $region19: #{lstm_forward.1} parent=1 // pred_check_branch
      %51 = sbr.rel (0) target = $region21
    $region20: #{lstm_forward.1} parent=1 // pred_region
      _
    $region21: #{lstm_forward.1} parent=1 // pred_fallthru
      _
    // Predicated region
    $region22: #{lstm_forward.1} parent=1 // pred_check
      _
    $region23: #{lstm_forward.1} parent=1 // pred_check_branch
      %53 = sbr.rel (0) target = $region25
    $region24: #{lstm_forward.1} parent=1 // pred_region
      %s55 = ssub.s32 16, 16
      %56 = vsyncadd [#allocation9], %s55
      %s58 = sshll.u32 [#allocation8], 4
      %s59 = int_to_ptr.vmem [resolvable:$true] %s58
      %61 = dma.hbm_to_vmem [thread:$0]  %s5, 16, %s59, [#allocation9]
    $region25: #{lstm_forward.1} parent=1 // pred_fallthru
      _
    // Predicated region
    $region26: #{lstm_forward.1} parent=1 // pred_check
      _
    $region27: #{lstm_forward.1} parent=1 // pred_check_branch
      %63 = sbr.rel (0) target = $region29
    $region28: #{lstm_forward.1} parent=1 // pred_region
      %64 = dma.done [#allocation4], 49152
    $region29: #{lstm_forward.1} parent=1 // pred_fallthru
      _
    // Predicated region
    $region30: #{lstm_forward.1} parent=1 // pred_check
      _
    $region31: #{lstm_forward.1} parent=1 // pred_check_branch
      %66 = sbr.rel (0) target = $region33
    $region32: #{lstm_forward.1} parent=1 // pred_region
      %67 = dma.done [#allocation6], 8192
    $region33: #{lstm_forward.1} parent=1 // pred_fallthru
      _
    // Predicated region
    $region34: #{lstm_forward.1} parent=1 // pred_check
      _
    $region35: #{lstm_forward.1} parent=1 // pred_check_branch
      %69 = sbr.rel (0) target = $region37
    $region36: #{lstm_forward.1} parent=1 // pred_region
      %70 = dma.done [#allocation6], 64
    $region37: #{lstm_forward.1} parent=1 // pred_fallthru
      _
    // Predicated region
    $region38: #{lstm_forward.1} parent=1 // pred_check
      _
    $region39: #{lstm_forward.1} parent=1 // pred_check_branch
      %72 = sbr.rel (0) target = $region41
    $region40: #{lstm_forward.1} parent=1 // pred_region
      %73 = dma.done [#allocation9], 16
    $region41: #{lstm_forward.1} parent=1 // pred_fallthru
      _
    %v74 = vld [vmem:[%s0] sm:$0xff]
    %v75 = vld [vmem:[%s0 + $0x8] sm:$0xff]
    %v76 = vld [vmem:[%s0 + $0x10] sm:$0xff]
    %v77 = vld [vmem:[%s0 + $0x18] sm:$0xff]
    %v78 = vld [vmem:[%s0 + $0x20] sm:$0xff]
    %v79 = vld [vmem:[%s0 + $0x28] sm:$0xff]
    %v80 = vld [vmem:[%s0 + $0x30] sm:$0xff]
    %v81 = vld [vmem:[%s0 + $0x38] sm:$0xff]
    %v82 = vld [vmem:[%s0 + $0x40] sm:$0xff]
    %v83 = vld [vmem:[%s0 + $0x48] sm:$0xff]
    %v84 = vld [vmem:[%s0 + $0x50] sm:$0xff]
    %v85 = vld [vmem:[%s0 + $0x58] sm:$0xff]
    %v86 = vld [vmem:[%s0 + $0x60] sm:$0xff]
    %v87 = vld [vmem:[%s0 + $0x68] sm:$0xff]
    %v88 = vld [vmem:[%s0 + $0x70] sm:$0xff]
    %v89 = vld [vmem:[%s0 + $0x78] sm:$0xff]
    %v90 = vld [vmem:[%s0 + $0x80] sm:$0xff]
    %v91 = vld [vmem:[%s0 + $0x88] sm:$0xff]
    %v92 = vld [vmem:[%s0 + $0x90] sm:$0xff]
    %v93 = vld [vmem:[%s0 + $0x98] sm:$0xff]
    %v94 = vld [vmem:[%s0 + $0xa0] sm:$0xff]
    %v95 = vld [vmem:[%s0 + $0xa8] sm:$0xff]
    %v96 = vld [vmem:[%s0 + $0xb0] sm:$0xff]
    %v97 = vld [vmem:[%s0 + $0xb8] sm:$0xff]
    %v98 = vld [vmem:[%s0 + $0xc0] sm:$0xff]
    %v99 = vld [vmem:[%s0 + $0xc8] sm:$0xff]
    %v100 = vld [vmem:[%s0 + $0xd0] sm:$0xff]
    %v101 = vld [vmem:[%s0 + $0xd8] sm:$0xff]
    %v102 = vld [vmem:[%s0 + $0xe0] sm:$0xff]
    %v103 = vld [vmem:[%s0 + $0xe8] sm:$0xff]
    %v104 = vld [vmem:[%s0 + $0xf0] sm:$0xff]
    %v105 = vld [vmem:[%s0 + $0xf8] sm:$0xff]
    %v106 = vld [vmem:[%s0 + $0x100] sm:$0xff]
    %v107 = vld [vmem:[%s0 + $0x108] sm:$0xff]
    %v108 = vld [vmem:[%s0 + $0x110] sm:$0xff]
    %v109 = vld [vmem:[%s0 + $0x118] sm:$0xff]
    %v110 = vld [vmem:[%s0 + $0x120] sm:$0xff]
    %v111 = vld [vmem:[%s0 + $0x128] sm:$0xff]
    %v112 = vld [vmem:[%s0 + $0x130] sm:$0xff]
    %v113 = vld [vmem:[%s0 + $0x138] sm:$0xff]
    %v114 = vld [vmem:[%s0 + $0x140] sm:$0xff]
    %v115 = vld [vmem:[%s0 + $0x148] sm:$0xff]
    %v116 = vld [vmem:[%s0 + $0x150] sm:$0xff]
    %v117 = vld [vmem:[%s0 + $0x158] sm:$0xff]
    %v118 = vld [vmem:[%s0 + $0x160] sm:$0xff]
    %v119 = vld [vmem:[%s0 + $0x168] sm:$0xff]
    %v120 = vld [vmem:[%s0 + $0x170] sm:$0xff]
    %v121 = vld [vmem:[%s0 + $0x178] sm:$0xff]
    %v122 = vld [vmem:[#allocation3] sm:$0xff]
    %v123 = vld [vmem:[#allocation3 + $0x8] sm:$0xff]
    %v124 = vld [vmem:[#allocation3 + $0x10] sm:$0xff]
    %v125 = vld [vmem:[#allocation3 + $0x18] sm:$0xff]
    %v126 = vld [vmem:[#allocation3 + $0x20] sm:$0xff]
    %v127 = vld [vmem:[#allocation3 + $0x28] sm:$0xff]
    %v128 = vld [vmem:[#allocation3 + $0x30] sm:$0xff]
    %v129 = vld [vmem:[#allocation3 + $0x38] sm:$0xff]
    %v130 = vld [vmem:[#allocation3 + $0x40] sm:$0xff]
    %v131 = vld [vmem:[#allocation3 + $0x48] sm:$0xff]
    %v132 = vld [vmem:[#allocation3 + $0x50] sm:$0xff]
    %v133 = vld [vmem:[#allocation3 + $0x58] sm:$0xff]
    %v134 = vld [vmem:[#allocation3 + $0x60] sm:$0xff]
    %v135 = vld [vmem:[#allocation3 + $0x68] sm:$0xff]
    %v136 = vld [vmem:[#allocation3 + $0x70] sm:$0xff]
    %v137 = vld [vmem:[#allocation3 + $0x78] sm:$0xff]
    %v138 = vld [vmem:[#allocation3 + $0x80] sm:$0xff]
    %v139 = vld [vmem:[#allocation3 + $0x88] sm:$0xff]
    %v140 = vld [vmem:[#allocation3 + $0x90] sm:$0xff]
    %v141 = vld [vmem:[#allocation3 + $0x98] sm:$0xff]
    %v142 = vld [vmem:[#allocation3 + $0xa0] sm:$0xff]
    %v143 = vld [vmem:[#allocation3 + $0xa8] sm:$0xff]
    %v144 = vld [vmem:[#allocation3 + $0xb0] sm:$0xff]
    %v145 = vld [vmem:[#allocation3 + $0xb8] sm:$0xff]
    %v146 = vld [vmem:[#allocation3 + $0xc0] sm:$0xff]
    %v147 = vld [vmem:[#allocation3 + $0xc8] sm:$0xff]
    %v148 = vld [vmem:[#allocation3 + $0xd0] sm:$0xff]
    %v149 = vld [vmem:[#allocation3 + $0xd8] sm:$0xff]
    %v150 = vld [vmem:[#allocation3 + $0xe0] sm:$0xff]
    %v151 = vld [vmem:[#allocation3 + $0xe8] sm:$0xff]
    %v152 = vld [vmem:[#allocation3 + $0xf0] sm:$0xff]
    %v153 = vld [vmem:[#allocation3 + $0xf8] sm:$0xff]
    %v154 = vld [vmem:[#allocation3 + $0x100] sm:$0xff]
    %v155 = vld [vmem:[#allocation3 + $0x108] sm:$0xff]
    %v156 = vld [vmem:[#allocation3 + $0x110] sm:$0xff]
    %v157 = vld [vmem:[#allocation3 + $0x118] sm:$0xff]
    %v158 = vld [vmem:[#allocation3 + $0x120] sm:$0xff]
    %v159 = vld [vmem:[#allocation3 + $0x128] sm:$0xff]
    %v160 = vld [vmem:[#allocation3 + $0x130] sm:$0xff]
    %v161 = vld [vmem:[#allocation3 + $0x138] sm:$0xff]
    %v162 = vld [vmem:[#allocation3 + $0x140] sm:$0xff]
    %v163 = vld [vmem:[#allocation3 + $0x148] sm:$0xff]
    %v164 = vld [vmem:[#allocation3 + $0x150] sm:$0xff]
    %v165 = vld [vmem:[#allocation3 + $0x158] sm:$0xff]
    %v166 = vld [vmem:[#allocation3 + $0x160] sm:$0xff]
    %v167 = vld [vmem:[#allocation3 + $0x168] sm:$0xff]
    %v168 = vld [vmem:[#allocation3 + $0x170] sm:$0xff]
    %v169 = vld [vmem:[#allocation3 + $0x178] sm:$0xff]
    %v170 = vld [vmem:[#allocation3 + $0x180] sm:$0xff]
    %v171 = vld [vmem:[#allocation3 + $0x188] sm:$0xff]
    %v172 = vld [vmem:[#allocation3 + $0x190] sm:$0xff]
    %v173 = vld [vmem:[#allocation3 + $0x198] sm:$0xff]
    %v174 = vld [vmem:[#allocation3 + $0x1a0] sm:$0xff]
    %v175 = vld [vmem:[#allocation3 + $0x1a8] sm:$0xff]
    %v176 = vld [vmem:[#allocation3 + $0x1b0] sm:$0xff]
    %v177 = vld [vmem:[#allocation3 + $0x1b8] sm:$0xff]
    %v178 = vld [vmem:[#allocation3 + $0x1c0] sm:$0xff]
    %v179 = vld [vmem:[#allocation3 + $0x1c8] sm:$0xff]
    %v180 = vld [vmem:[#allocation3 + $0x1d0] sm:$0xff]
    %v181 = vld [vmem:[#allocation3 + $0x1d8] sm:$0xff]
    %v182 = vld [vmem:[#allocation3 + $0x1e0] sm:$0xff]
    %v183 = vld [vmem:[#allocation3 + $0x1e8] sm:$0xff]
    %v184 = vld [vmem:[#allocation3 + $0x1f0] sm:$0xff]
    %v185 = vld [vmem:[#allocation3 + $0x1f8] sm:$0xff]
    %v186 = vld [vmem:[#allocation3 + $0x200] sm:$0xff]
    %v187 = vld [vmem:[#allocation3 + $0x208] sm:$0xff]
    %v188 = vld [vmem:[#allocation3 + $0x210] sm:$0xff]
    %v189 = vld [vmem:[#allocation3 + $0x218] sm:$0xff]
    %v190 = vld [vmem:[#allocation3 + $0x220] sm:$0xff]
    %v191 = vld [vmem:[#allocation3 + $0x228] sm:$0xff]
    %v192 = vld [vmem:[#allocation3 + $0x230] sm:$0xff]
    %v193 = vld [vmem:[#allocation3 + $0x238] sm:$0xff]
    %v194 = vld [vmem:[#allocation3 + $0x240] sm:$0xff]
    %v195 = vld [vmem:[#allocation3 + $0x248] sm:$0xff]
    %v196 = vld [vmem:[#allocation3 + $0x250] sm:$0xff]
    %v197 = vld [vmem:[#allocation3 + $0x258] sm:$0xff]
    %v198 = vld [vmem:[#allocation3 + $0x260] sm:$0xff]
    %v199 = vld [vmem:[#allocation3 + $0x268] sm:$0xff]
    %v200 = vld [vmem:[#allocation3 + $0x270] sm:$0xff]
    %v201 = vld [vmem:[#allocation3 + $0x278] sm:$0xff]
    %v202 = vld [vmem:[#allocation3 + $0x280] sm:$0xff]
    %v203 = vld [vmem:[#allocation3 + $0x288] sm:$0xff]
    %v204 = vld [vmem:[#allocation3 + $0x290] sm:$0xff]
    %v205 = vld [vmem:[#allocation3 + $0x298] sm:$0xff]
    %v206 = vld [vmem:[#allocation3 + $0x2a0] sm:$0xff]
    %v207 = vld [vmem:[#allocation3 + $0x2a8] sm:$0xff]
    %v208 = vld [vmem:[#allocation3 + $0x2b0] sm:$0xff]
    %v209 = vld [vmem:[#allocation3 + $0x2b8] sm:$0xff]
    %v210 = vld [vmem:[#allocation3 + $0x2c0] sm:$0xff]
    %v211 = vld [vmem:[#allocation3 + $0x2c8] sm:$0xff]
    %v212 = vld [vmem:[#allocation3 + $0x2d0] sm:$0xff]
    %v213 = vld [vmem:[#allocation3 + $0x2d8] sm:$0xff]
    %v214 = vld [vmem:[#allocation3 + $0x2e0] sm:$0xff]
    %v215 = vld [vmem:[#allocation3 + $0x2e8] sm:$0xff]
    %v216 = vld [vmem:[#allocation3 + $0x2f0] sm:$0xff]
    %v217 = vld [vmem:[#allocation3 + $0x2f8] sm:$0xff]
    %v218 = vld [vmem:[#allocation3 + $0x300] sm:$0xff]
    %v219 = vld [vmem:[#allocation3 + $0x308] sm:$0xff]
    %v220 = vld [vmem:[#allocation3 + $0x310] sm:$0xff]
    %v221 = vld [vmem:[#allocation3 + $0x318] sm:$0xff]
    %v222 = vld [vmem:[#allocation3 + $0x320] sm:$0xff]
    %v223 = vld [vmem:[#allocation3 + $0x328] sm:$0xff]
    %v224 = vld [vmem:[#allocation3 + $0x330] sm:$0xff]
    %v225 = vld [vmem:[#allocation3 + $0x338] sm:$0xff]
    %v226 = vld [vmem:[#allocation3 + $0x340] sm:$0xff]
    %v227 = vld [vmem:[#allocation3 + $0x348] sm:$0xff]
    %v228 = vld [vmem:[#allocation3 + $0x350] sm:$0xff]
    %v229 = vld [vmem:[#allocation3 + $0x358] sm:$0xff]
    %v230 = vld [vmem:[#allocation3 + $0x360] sm:$0xff]
    %v231 = vld [vmem:[#allocation3 + $0x368] sm:$0xff]
    %v232 = vld [vmem:[#allocation3 + $0x370] sm:$0xff]
    %v233 = vld [vmem:[#allocation3 + $0x378] sm:$0xff]
    %v234 = vld [vmem:[#allocation3 + $0x380] sm:$0xff]
    %v235 = vld [vmem:[#allocation3 + $0x388] sm:$0xff]
    %v236 = vld [vmem:[#allocation3 + $0x390] sm:$0xff]
    %v237 = vld [vmem:[#allocation3 + $0x398] sm:$0xff]
    %v238 = vld [vmem:[#allocation3 + $0x3a0] sm:$0xff]
    %v239 = vld [vmem:[#allocation3 + $0x3a8] sm:$0xff]
    %v240 = vld [vmem:[#allocation3 + $0x3b0] sm:$0xff]
    %v241 = vld [vmem:[#allocation3 + $0x3b8] sm:$0xff]
    %v242 = vld [vmem:[#allocation3 + $0x3c0] sm:$0xff]
    %v243 = vld [vmem:[#allocation3 + $0x3c8] sm:$0xff]
    %v244 = vld [vmem:[#allocation3 + $0x3d0] sm:$0xff]
    %v245 = vld [vmem:[#allocation3 + $0x3d8] sm:$0xff]
    %v246 = vld [vmem:[#allocation3 + $0x3e0] sm:$0xff]
    %v247 = vld [vmem:[#allocation3 + $0x3e8] sm:$0xff]
    %v248 = vld [vmem:[#allocation3 + $0x3f0] sm:$0xff]
    %v249 = vld [vmem:[#allocation3 + $0x3f8] sm:$0xff]
    %v250 = vld [vmem:[#allocation3 + $0x400] sm:$0xff]
    %v251 = vld [vmem:[#allocation3 + $0x408] sm:$0xff]
    %v252 = vld [vmem:[#allocation3 + $0x410] sm:$0xff]
    %v253 = vld [vmem:[#allocation3 + $0x418] sm:$0xff]
    %v254 = vld [vmem:[#allocation3 + $0x420] sm:$0xff]
    %v255 = vld [vmem:[#allocation3 + $0x428] sm:$0xff]
    %v256 = vld [vmem:[#allocation3 + $0x430] sm:$0xff]
    %v257 = vld [vmem:[#allocation3 + $0x438] sm:$0xff]
    %v258 = vld [vmem:[#allocation3 + $0x440] sm:$0xff]
    %v259 = vld [vmem:[#allocation3 + $0x448] sm:$0xff]
    %v260 = vld [vmem:[#allocation3 + $0x450] sm:$0xff]
    %v261 = vld [vmem:[#allocation3 + $0x458] sm:$0xff]
    %v262 = vld [vmem:[#allocation3 + $0x460] sm:$0xff]
    %v263 = vld [vmem:[#allocation3 + $0x468] sm:$0xff]
    %v264 = vld [vmem:[#allocation3 + $0x470] sm:$0xff]
    %v265 = vld [vmem:[#allocation3 + $0x478] sm:$0xff]
    %v266 = vld [vmem:[#allocation3 + $0x480] sm:$0xff]
    %v267 = vld [vmem:[#allocation3 + $0x488] sm:$0xff]
    %v268 = vld [vmem:[#allocation3 + $0x490] sm:$0xff]
    %v269 = vld [vmem:[#allocation3 + $0x498] sm:$0xff]
    %v270 = vld [vmem:[#allocation3 + $0x4a0] sm:$0xff]
    %v271 = vld [vmem:[#allocation3 + $0x4a8] sm:$0xff]
    %v272 = vld [vmem:[#allocation3 + $0x4b0] sm:$0xff]
    %v273 = vld [vmem:[#allocation3 + $0x4b8] sm:$0xff]
    %v274 = vld [vmem:[#allocation3 + $0x4c0] sm:$0xff]
    %v275 = vld [vmem:[#allocation3 + $0x4c8] sm:$0xff]
    %v276 = vld [vmem:[#allocation3 + $0x4d0] sm:$0xff]
    %v277 = vld [vmem:[#allocation3 + $0x4d8] sm:$0xff]
    %v278 = vld [vmem:[#allocation3 + $0x4e0] sm:$0xff]
    %v279 = vld [vmem:[#allocation3 + $0x4e8] sm:$0xff]
    %v280 = vld [vmem:[#allocation3 + $0x4f0] sm:$0xff]
    %v281 = vld [vmem:[#allocation3 + $0x4f8] sm:$0xff]
    %v282 = vld [vmem:[#allocation3 + $0x500] sm:$0xff]
    %v283 = vld [vmem:[#allocation3 + $0x508] sm:$0xff]
    %v284 = vld [vmem:[#allocation3 + $0x510] sm:$0xff]
    %v285 = vld [vmem:[#allocation3 + $0x518] sm:$0xff]
    %v286 = vld [vmem:[#allocation3 + $0x520] sm:$0xff]
    %v287 = vld [vmem:[#allocation3 + $0x528] sm:$0xff]
    %v288 = vld [vmem:[#allocation3 + $0x530] sm:$0xff]
    %v289 = vld [vmem:[#allocation3 + $0x538] sm:$0xff]
    %v290 = vld [vmem:[#allocation3 + $0x540] sm:$0xff]
    %v291 = vld [vmem:[#allocation3 + $0x548] sm:$0xff]
    %v292 = vld [vmem:[#allocation3 + $0x550] sm:$0xff]
    %v293 = vld [vmem:[#allocation3 + $0x558] sm:$0xff]
    %v294 = vld [vmem:[#allocation3 + $0x560] sm:$0xff]
    %v295 = vld [vmem:[#allocation3 + $0x568] sm:$0xff]
    %v296 = vld [vmem:[#allocation3 + $0x570] sm:$0xff]
    %v297 = vld [vmem:[#allocation3 + $0x578] sm:$0xff]
    %v298 = vld [vmem:[#allocation3 + $0x580] sm:$0xff]
    %v299 = vld [vmem:[#allocation3 + $0x588] sm:$0xff]
    %v300 = vld [vmem:[#allocation3 + $0x590] sm:$0xff]
    %v301 = vld [vmem:[#allocation3 + $0x598] sm:$0xff]
    %v302 = vld [vmem:[#allocation3 + $0x5a0] sm:$0xff]
    %v303 = vld [vmem:[#allocation3 + $0x5a8] sm:$0xff]
    %v304 = vld [vmem:[#allocation3 + $0x5b0] sm:$0xff]
    %v305 = vld [vmem:[#allocation3 + $0x5b8] sm:$0xff]
    %v306 = vld [vmem:[#allocation3 + $0x5c0] sm:$0xff]
    %v307 = vld [vmem:[#allocation3 + $0x5c8] sm:$0xff]
    %v308 = vld [vmem:[#allocation3 + $0x5d0] sm:$0xff]
    %v309 = vld [vmem:[#allocation3 + $0x5d8] sm:$0xff]
    %v310 = vld [vmem:[#allocation3 + $0x5e0] sm:$0xff]
    %v311 = vld [vmem:[#allocation3 + $0x5e8] sm:$0xff]
    %v312 = vld [vmem:[#allocation3 + $0x5f0] sm:$0xff]
    %v313 = vld [vmem:[#allocation3 + $0x5f8] sm:$0xff]
    %v314 = vld [vmem:[#allocation3 + $0x600] sm:$0xff]
    %v315 = vld [vmem:[#allocation3 + $0x608] sm:$0xff]
    %v316 = vld [vmem:[#allocation3 + $0x610] sm:$0xff]
    %v317 = vld [vmem:[#allocation3 + $0x618] sm:$0xff]
    %v318 = vld [vmem:[#allocation3 + $0x620] sm:$0xff]
    %v319 = vld [vmem:[#allocation3 + $0x628] sm:$0xff]
    %v320 = vld [vmem:[#allocation3 + $0x630] sm:$0xff]
    %v321 = vld [vmem:[#allocation3 + $0x638] sm:$0xff]
    %v322 = vld [vmem:[#allocation3 + $0x640] sm:$0xff]
    %v323 = vld [vmem:[#allocation3 + $0x648] sm:$0xff]
    %v324 = vld [vmem:[#allocation3 + $0x650] sm:$0xff]
    %v325 = vld [vmem:[#allocation3 + $0x658] sm:$0xff]
    %v326 = vld [vmem:[#allocation3 + $0x660] sm:$0xff]
    %v327 = vld [vmem:[#allocation3 + $0x668] sm:$0xff]
    %v328 = vld [vmem:[#allocation3 + $0x670] sm:$0xff]
    %v329 = vld [vmem:[#allocation3 + $0x678] sm:$0xff]
    %v330 = vld [vmem:[#allocation3 + $0x680] sm:$0xff]
    %v331 = vld [vmem:[#allocation3 + $0x688] sm:$0xff]
    %v332 = vld [vmem:[#allocation3 + $0x690] sm:$0xff]
    %v333 = vld [vmem:[#allocation3 + $0x698] sm:$0xff]
    %v334 = vld [vmem:[#allocation3 + $0x6a0] sm:$0xff]
    %v335 = vld [vmem:[#allocation3 + $0x6a8] sm:$0xff]
    %v336 = vld [vmem:[#allocation3 + $0x6b0] sm:$0xff]
    %v337 = vld [vmem:[#allocation3 + $0x6b8] sm:$0xff]
    %v338 = vld [vmem:[#allocation3 + $0x6c0] sm:$0xff]
    %v339 = vld [vmem:[#allocation3 + $0x6c8] sm:$0xff]
    %v340 = vld [vmem:[#allocation3 + $0x6d0] sm:$0xff]
    %v341 = vld [vmem:[#allocation3 + $0x6d8] sm:$0xff]
    %v342 = vld [vmem:[#allocation3 + $0x6e0] sm:$0xff]
    %v343 = vld [vmem:[#allocation3 + $0x6e8] sm:$0xff]
    %v344 = vld [vmem:[#allocation3 + $0x6f0] sm:$0xff]
    %v345 = vld [vmem:[#allocation3 + $0x6f8] sm:$0xff]
    %v346 = vld [vmem:[#allocation3 + $0x700] sm:$0xff]
    %v347 = vld [vmem:[#allocation3 + $0x708] sm:$0xff]
    %v348 = vld [vmem:[#allocation3 + $0x710] sm:$0xff]
    %v349 = vld [vmem:[#allocation3 + $0x718] sm:$0xff]
    %v350 = vld [vmem:[#allocation3 + $0x720] sm:$0xff]
    %v351 = vld [vmem:[#allocation3 + $0x728] sm:$0xff]
    %v352 = vld [vmem:[#allocation3 + $0x730] sm:$0xff]
    %v353 = vld [vmem:[#allocation3 + $0x738] sm:$0xff]
    %v354 = vld [vmem:[#allocation3 + $0x740] sm:$0xff]
    %v355 = vld [vmem:[#allocation3 + $0x748] sm:$0xff]
    %v356 = vld [vmem:[#allocation3 + $0x750] sm:$0xff]
    %v357 = vld [vmem:[#allocation3 + $0x758] sm:$0xff]
    %v358 = vld [vmem:[#allocation3 + $0x760] sm:$0xff]
    %v359 = vld [vmem:[#allocation3 + $0x768] sm:$0xff]
    %v360 = vld [vmem:[#allocation3 + $0x770] sm:$0xff]
    %v361 = vld [vmem:[#allocation3 + $0x778] sm:$0xff]
    %v362 = vld [vmem:[#allocation3 + $0x780] sm:$0xff]
    %v363 = vld [vmem:[#allocation3 + $0x788] sm:$0xff]
    %v364 = vld [vmem:[#allocation3 + $0x790] sm:$0xff]
    %v365 = vld [vmem:[#allocation3 + $0x798] sm:$0xff]
    %v366 = vld [vmem:[#allocation3 + $0x7a0] sm:$0xff]
    %v367 = vld [vmem:[#allocation3 + $0x7a8] sm:$0xff]
    %v368 = vld [vmem:[#allocation3 + $0x7b0] sm:$0xff]
    %v369 = vld [vmem:[#allocation3 + $0x7b8] sm:$0xff]
    %v370 = vld [vmem:[#allocation3 + $0x7c0] sm:$0xff]
    %v371 = vld [vmem:[#allocation3 + $0x7c8] sm:$0xff]
    %v372 = vld [vmem:[#allocation3 + $0x7d0] sm:$0xff]
    %v373 = vld [vmem:[#allocation3 + $0x7d8] sm:$0xff]
    %v374 = vld [vmem:[#allocation3 + $0x7e0] sm:$0xff]
    %v375 = vld [vmem:[#allocation3 + $0x7e8] sm:$0xff]
    %v376 = vld [vmem:[#allocation3 + $0x7f0] sm:$0xff]
    %v377 = vld [vmem:[#allocation3 + $0x7f8] sm:$0xff]
    %v378 = vld [vmem:[#allocation3 + $0x800] sm:$0xff]
    %v379 = vld [vmem:[#allocation3 + $0x808] sm:$0xff]
    %v380 = vld [vmem:[#allocation3 + $0x810] sm:$0xff]
    %v381 = vld [vmem:[#allocation3 + $0x818] sm:$0xff]
    %v382 = vld [vmem:[#allocation3 + $0x820] sm:$0xff]
    %v383 = vld [vmem:[#allocation3 + $0x828] sm:$0xff]
    %v384 = vld [vmem:[#allocation3 + $0x830] sm:$0xff]
    %v385 = vld [vmem:[#allocation3 + $0x838] sm:$0xff]
    %v386 = vld [vmem:[#allocation3 + $0x840] sm:$0xff]
    %v387 = vld [vmem:[#allocation3 + $0x848] sm:$0xff]
    %v388 = vld [vmem:[#allocation3 + $0x850] sm:$0xff]
    %v389 = vld [vmem:[#allocation3 + $0x858] sm:$0xff]
    %v390 = vld [vmem:[#allocation3 + $0x860] sm:$0xff]
    %v391 = vld [vmem:[#allocation3 + $0x868] sm:$0xff]
    %v392 = vld [vmem:[#allocation3 + $0x870] sm:$0xff]
    %v393 = vld [vmem:[#allocation3 + $0x878] sm:$0xff]
    %v394 = vld [vmem:[#allocation3 + $0x880] sm:$0xff]
    %v395 = vld [vmem:[#allocation3 + $0x888] sm:$0xff]
    %v396 = vld [vmem:[#allocation3 + $0x890] sm:$0xff]
    %v397 = vld [vmem:[#allocation3 + $0x898] sm:$0xff]
    %v398 = vld [vmem:[#allocation3 + $0x8a0] sm:$0xff]
    %v399 = vld [vmem:[#allocation3 + $0x8a8] sm:$0xff]
    %v400 = vld [vmem:[#allocation3 + $0x8b0] sm:$0xff]
    %v401 = vld [vmem:[#allocation3 + $0x8b8] sm:$0xff]
    %v402 = vld [vmem:[#allocation3 + $0x8c0] sm:$0xff]
    %v403 = vld [vmem:[#allocation3 + $0x8c8] sm:$0xff]
    %v404 = vld [vmem:[#allocation3 + $0x8d0] sm:$0xff]
    %v405 = vld [vmem:[#allocation3 + $0x8d8] sm:$0xff]
    %v406 = vld [vmem:[#allocation3 + $0x8e0] sm:$0xff]
    %v407 = vld [vmem:[#allocation3 + $0x8e8] sm:$0xff]
    %v408 = vld [vmem:[#allocation3 + $0x8f0] sm:$0xff]
    %v409 = vld [vmem:[#allocation3 + $0x8f8] sm:$0xff]
    %v410 = vld [vmem:[#allocation3 + $0x900] sm:$0xff]
    %v411 = vld [vmem:[#allocation3 + $0x908] sm:$0xff]
    %v412 = vld [vmem:[#allocation3 + $0x910] sm:$0xff]
    %v413 = vld [vmem:[#allocation3 + $0x918] sm:$0xff]
    %v414 = vld [vmem:[#allocation3 + $0x920] sm:$0xff]
    %v415 = vld [vmem:[#allocation3 + $0x928] sm:$0xff]
    %v416 = vld [vmem:[#allocation3 + $0x930] sm:$0xff]
    %v417 = vld [vmem:[#allocation3 + $0x938] sm:$0xff]
    %v418 = vld [vmem:[#allocation3 + $0x940] sm:$0xff]
    %v419 = vld [vmem:[#allocation3 + $0x948] sm:$0xff]
    %v420 = vld [vmem:[#allocation3 + $0x950] sm:$0xff]
    %v421 = vld [vmem:[#allocation3 + $0x958] sm:$0xff]
    %v422 = vld [vmem:[#allocation3 + $0x960] sm:$0xff]
    %v423 = vld [vmem:[#allocation3 + $0x968] sm:$0xff]
    %v424 = vld [vmem:[#allocation3 + $0x970] sm:$0xff]
    %v425 = vld [vmem:[#allocation3 + $0x978] sm:$0xff]
    %v426 = vld [vmem:[#allocation3 + $0x980] sm:$0xff]
    %v427 = vld [vmem:[#allocation3 + $0x988] sm:$0xff]
    %v428 = vld [vmem:[#allocation3 + $0x990] sm:$0xff]
    %v429 = vld [vmem:[#allocation3 + $0x998] sm:$0xff]
    %v430 = vld [vmem:[#allocation3 + $0x9a0] sm:$0xff]
    %v431 = vld [vmem:[#allocation3 + $0x9a8] sm:$0xff]
    %v432 = vld [vmem:[#allocation3 + $0x9b0] sm:$0xff]
    %v433 = vld [vmem:[#allocation3 + $0x9b8] sm:$0xff]
    %v434 = vld [vmem:[#allocation3 + $0x9c0] sm:$0xff]
    %v435 = vld [vmem:[#allocation3 + $0x9c8] sm:$0xff]
    %v436 = vld [vmem:[#allocation3 + $0x9d0] sm:$0xff]
    %v437 = vld [vmem:[#allocation3 + $0x9d8] sm:$0xff]
    %v438 = vld [vmem:[#allocation3 + $0x9e0] sm:$0xff]
    %v439 = vld [vmem:[#allocation3 + $0x9e8] sm:$0xff]
    %v440 = vld [vmem:[#allocation3 + $0x9f0] sm:$0xff]
    %v441 = vld [vmem:[#allocation3 + $0x9f8] sm:$0xff]
    %v442 = vld [vmem:[#allocation3 + $0xa00] sm:$0xff]
    %v443 = vld [vmem:[#allocation3 + $0xa08] sm:$0xff]
    %v444 = vld [vmem:[#allocation3 + $0xa10] sm:$0xff]
    %v445 = vld [vmem:[#allocation3 + $0xa18] sm:$0xff]
    %v446 = vld [vmem:[#allocation3 + $0xa20] sm:$0xff]
    %v447 = vld [vmem:[#allocation3 + $0xa28] sm:$0xff]
    %v448 = vld [vmem:[#allocation3 + $0xa30] sm:$0xff]
    %v449 = vld [vmem:[#allocation3 + $0xa38] sm:$0xff]
    %v450 = vld [vmem:[#allocation3 + $0xa40] sm:$0xff]
    %v451 = vld [vmem:[#allocation3 + $0xa48] sm:$0xff]
    %v452 = vld [vmem:[#allocation3 + $0xa50] sm:$0xff]
    %v453 = vld [vmem:[#allocation3 + $0xa58] sm:$0xff]
    %v454 = vld [vmem:[#allocation3 + $0xa60] sm:$0xff]
    %v455 = vld [vmem:[#allocation3 + $0xa68] sm:$0xff]
    %v456 = vld [vmem:[#allocation3 + $0xa70] sm:$0xff]
    %v457 = vld [vmem:[#allocation3 + $0xa78] sm:$0xff]
    %v458 = vld [vmem:[#allocation3 + $0xa80] sm:$0xff]
    %v459 = vld [vmem:[#allocation3 + $0xa88] sm:$0xff]
    %v460 = vld [vmem:[#allocation3 + $0xa90] sm:$0xff]
    %v461 = vld [vmem:[#allocation3 + $0xa98] sm:$0xff]
    %v462 = vld [vmem:[#allocation3 + $0xaa0] sm:$0xff]
    %v463 = vld [vmem:[#allocation3 + $0xaa8] sm:$0xff]
    %v464 = vld [vmem:[#allocation3 + $0xab0] sm:$0xff]
    %v465 = vld [vmem:[#allocation3 + $0xab8] sm:$0xff]
    %v466 = vld [vmem:[#allocation3 + $0xac0] sm:$0xff]
    %v467 = vld [vmem:[#allocation3 + $0xac8] sm:$0xff]
    %v468 = vld [vmem:[#allocation3 + $0xad0] sm:$0xff]
    %v469 = vld [vmem:[#allocation3 + $0xad8] sm:$0xff]
    %v470 = vld [vmem:[#allocation3 + $0xae0] sm:$0xff]
    %v471 = vld [vmem:[#allocation3 + $0xae8] sm:$0xff]
    %v472 = vld [vmem:[#allocation3 + $0xaf0] sm:$0xff]
    %v473 = vld [vmem:[#allocation3 + $0xaf8] sm:$0xff]
    %v474 = vld [vmem:[#allocation3 + $0xb00] sm:$0xff]
    %v475 = vld [vmem:[#allocation3 + $0xb08] sm:$0xff]
    %v476 = vld [vmem:[#allocation3 + $0xb10] sm:$0xff]
    %v477 = vld [vmem:[#allocation3 + $0xb18] sm:$0xff]
    %v478 = vld [vmem:[#allocation3 + $0xb20] sm:$0xff]
    %v479 = vld [vmem:[#allocation3 + $0xb28] sm:$0xff]
    %v480 = vld [vmem:[#allocation3 + $0xb30] sm:$0xff]
    %v481 = vld [vmem:[#allocation3 + $0xb38] sm:$0xff]
    %v482 = vld [vmem:[#allocation3 + $0xb40] sm:$0xff]
    %v483 = vld [vmem:[#allocation3 + $0xb48] sm:$0xff]
    %v484 = vld [vmem:[#allocation3 + $0xb50] sm:$0xff]
    %v485 = vld [vmem:[#allocation3 + $0xb58] sm:$0xff]
    %v486 = vld [vmem:[#allocation3 + $0xb60] sm:$0xff]
    %v487 = vld [vmem:[#allocation3 + $0xb68] sm:$0xff]
    %v488 = vld [vmem:[#allocation3 + $0xb70] sm:$0xff]
    %v489 = vld [vmem:[#allocation3 + $0xb78] sm:$0xff]
    %v490 = vld [vmem:[#allocation3 + $0xb80] sm:$0xff]
    %v491 = vld [vmem:[#allocation3 + $0xb88] sm:$0xff]
    %v492 = vld [vmem:[#allocation3 + $0xb90] sm:$0xff]
    %v493 = vld [vmem:[#allocation3 + $0xb98] sm:$0xff]
    %v494 = vld [vmem:[#allocation3 + $0xba0] sm:$0xff]
    %v495 = vld [vmem:[#allocation3 + $0xba8] sm:$0xff]
    %v496 = vld [vmem:[#allocation3 + $0xbb0] sm:$0xff]
    %v497 = vld [vmem:[#allocation3 + $0xbb8] sm:$0xff]
    %v498 = vld [vmem:[#allocation3 + $0xbc0] sm:$0xff]
    %v499 = vld [vmem:[#allocation3 + $0xbc8] sm:$0xff]
    %v500 = vld [vmem:[#allocation3 + $0xbd0] sm:$0xff]
    %v501 = vld [vmem:[#allocation3 + $0xbd8] sm:$0xff]
    %v502 = vld [vmem:[#allocation3 + $0xbe0] sm:$0xff]
    %v503 = vld [vmem:[#allocation3 + $0xbe8] sm:$0xff]
    %v504 = vld [vmem:[#allocation3 + $0xbf0] sm:$0xff]
    %v505 = vld [vmem:[#allocation3 + $0xbf8] sm:$0xff]
    %v506 = vld [vmem:[#allocation7] sm:$0xf]
    %v508 = vlaneseq
    %v509 = vshrl.u32 %v508, 7
    %v510 = vsub.s32 0, %v509
    %v511 = vrot.slane %v506, %v510
    %v512 = vlaneseq
    %v513 = vshrl.u32 %v512, 7
    %v514 = vsub.s32 1, %v513
    %v515 = vrot.slane %v506, %v514
    %v516 = vlaneseq
    %v517 = vshrl.u32 %v516, 7
    %v518 = vsub.s32 2, %v517
    %v519 = vrot.slane %v506, %v518
    %v520 = vlaneseq
    %v521 = vshrl.u32 %v520, 7
    %v522 = vsub.s32 3, %v521
    %v523 = vrot.slane %v506, %v522
    %528 = vmatprep.subr.mxu0 %v123
    %529 = vmatpush1.msra.mxu0 %v122
    %530 = vmatprep.subr.mxu0 %v127
    %531 = vmatpush1.msra.mxu0 %v126
    %532 = vmatprep.subr.mxu0 %v131
    %533 = vmatpush1.msra.mxu0 %v130
    %534 = vmatprep.subr.mxu0 %v135
    %535 = vmatpush1.msra.mxu0 %v134
    %536 = vmatprep.subr.mxu0 %v139
    %537 = vmatpush1.msra.mxu0 %v138
    %538 = vmatprep.subr.mxu0 %v143
    %539 = vmatpush1.msra.mxu0 %v142
    %540 = vmatprep.subr.mxu0 %v147
    %541 = vmatpush1.msra.mxu0 %v146
    %542 = vmatprep.subr.mxu0 %v151
    %543 = vmatpush1.msra.mxu0 %v150
    %544 = vmatprep.subr.mxu0 %v155
    %545 = vmatpush1.msra.mxu0 %v154
    %546 = vmatprep.subr.mxu0 %v159
    %547 = vmatpush1.msra.mxu0 %v158
    %548 = vmatprep.subr.mxu0 %v163
    %549 = vmatpush1.msra.mxu0 %v162
    %550 = vmatprep.subr.mxu0 %v167
    %551 = vmatpush1.msra.mxu0 %v166
    %552 = vmatprep.subr.mxu0 %v171
    %553 = vmatpush1.msra.mxu0 %v170
    %554 = vmatprep.subr.mxu0 %v175
    %555 = vmatpush1.msra.mxu0 %v174
    %556 = vmatprep.subr.mxu0 %v179
    %557 = vmatpush1.msra.mxu0 %v178
    %558 = vmatprep.subr.mxu0 %v183
    %559 = vmatpush1.msra.mxu0 %v182
    %560 = vmatprep.subr.mxu0 %v187
    %561 = vmatpush1.msra.mxu0 %v186
    %562 = vmatprep.subr.mxu0 %v191
    %563 = vmatpush1.msra.mxu0 %v190
    %564 = vmatprep.subr.mxu0 %v195
    %565 = vmatpush1.msra.mxu0 %v194
    %566 = vmatprep.subr.mxu0 %v199
    %567 = vmatpush1.msra.mxu0 %v198
    %568 = vmatprep.subr.mxu0 %v203
    %569 = vmatpush1.msra.mxu0 %v202
    %570 = vmatprep.subr.mxu0 %v207
    %571 = vmatpush1.msra.mxu0 %v206
    %572 = vmatprep.subr.mxu0 %v211
    %573 = vmatpush1.msra.mxu0 %v210
    %574 = vmatprep.subr.mxu0 %v215
    %575 = vmatpush1.msra.mxu0 %v214
    %576 = vmatprep.subr.mxu0 %v219
    %577 = vmatpush1.msra.mxu0 %v218
    %578 = vmatprep.subr.mxu0 %v223
    %579 = vmatpush1.msra.mxu0 %v222
    %580 = vmatprep.subr.mxu0 %v227
    %581 = vmatpush1.msra.mxu0 %v226
    %582 = vmatprep.subr.mxu0 %v231
    %583 = vmatpush1.msra.mxu0 %v230
    %584 = vmatprep.subr.mxu0 %v235
    %585 = vmatpush1.msra.mxu0 %v234
    %586 = vmatprep.subr.mxu0 %v239
    %587 = vmatpush1.msra.mxu0 %v238
    %588 = vmatprep.subr.mxu0 %v243
    %589 = vmatpush1.msra.mxu0 %v242
    %590 = vmatprep.subr.mxu0 %v247
    %591 = vmatpush1.msra.mxu0 %v246
    %592 = vmatprep.mubr.f32.mxu0 %v75
    %593 = vmatmul.mubr.f32.gmra.mrb[0].mxu0 %v74
    %v594 = vpop.f32.mrb[0].mxu0
    %v595 = vadd.f32 %v511, %v594
    %v596 = vpop.f32.mrb[0].mxu0
    %v597 = vadd.f32 %v515, %v596
    %598 = vmatprep.mubr.f32.mxu0 %v81
    %599 = vmatmul.mubr.f32.gmra.mrb[0].mxu0 %v80
    %v600 = vpop.f32.mrb[0].mxu0
    %v601 = vadd.f32 %v511, %v600
    %v602 = vpop.f32.mrb[0].mxu0
    %v603 = vadd.f32 %v515, %v602
    %604 = vmatprep.mubr.f32.mxu0 %v87
    %605 = vmatmul.mubr.f32.gmra.mrb[0].mxu0 %v86
    %v606 = vpop.f32.mrb[0].mxu0
    %v607 = vadd.f32 %v511, %v606
    %v608 = vpop.f32.mrb[0].mxu0
    %v609 = vadd.f32 %v515, %v608
    %610 = vmatprep.mubr.f32.mxu0 %v93
    %611 = vmatmul.mubr.f32.gmra.mrb[0].mxu0 %v92
    %v612 = vpop.f32.mrb[0].mxu0
    %v613 = vadd.f32 %v511, %v612
    %v614 = vpop.f32.mrb[0].mxu0
    %v615 = vadd.f32 %v515, %v614
    %616 = vmatprep.mubr.f32.mxu0 %v99
    %617 = vmatmul.mubr.f32.gmra.mrb[0].mxu0 %v98
    %v618 = vpop.f32.mrb[0].mxu0
    %v619 = vadd.f32 %v511, %v618
    %v620 = vpop.f32.mrb[0].mxu0
    %v621 = vadd.f32 %v515, %v620
    %622 = vmatprep.mubr.f32.mxu0 %v105
    %623 = vmatmul.mubr.f32.gmra.mrb[0].mxu0 %v104
    %v624 = vpop.f32.mrb[0].mxu0
    %v625 = vadd.f32 %v511, %v624
    %v626 = vpop.f32.mrb[0].mxu0
    %v627 = vadd.f32 %v515, %v626
    %628 = vmatprep.mubr.f32.mxu0 %v111
    %629 = vmatmul.mubr.f32.gmra.mrb[0].mxu0 %v110
    %v630 = vpop.f32.mrb[0].mxu0
    %v631 = vadd.f32 %v511, %v630
    %v632 = vpop.f32.mrb[0].mxu0
    %v633 = vadd.f32 %v515, %v632
    %634 = vmatprep.mubr.f32.mxu0 %v117
    %635 = vmatmul.mubr.f32.gmra.mrb[0].mxu0 %v116
    %v636 = vpop.f32.mrb[0].mxu0
    %v637 = vadd.f32 %v511, %v636
    %v638 = vpop.f32.mrb[0].mxu0
    %v639 = vadd.f32 %v515, %v638
    %640 = vdwg.mxu0
    %641 = vmatprep.subr.mxu0 %v251
    %642 = vmatpush1.msra.mxu0 %v250
    %643 = vmatprep.subr.mxu0 %v255
    %644 = vmatpush1.msra.mxu0 %v254
    %645 = vmatprep.subr.mxu0 %v259
    %646 = vmatpush1.msra.mxu0 %v258
    %647 = vmatprep.subr.mxu0 %v263
    %648 = vmatpush1.msra.mxu0 %v262
    %649 = vmatprep.subr.mxu0 %v267
    %650 = vmatpush1.msra.mxu0 %v266
    %651 = vmatprep.subr.mxu0 %v271
    %652 = vmatpush1.msra.mxu0 %v270
    %653 = vmatprep.subr.mxu0 %v275
    %654 = vmatpush1.msra.mxu0 %v274
    %655 = vmatprep.subr.mxu0 %v279
    %656 = vmatpush1.msra.mxu0 %v278
    %657 = vmatprep.subr.mxu0 %v283
    %658 = vmatpush1.msra.mxu0 %v282
    %659 = vmatprep.subr.mxu0 %v287
    %660 = vmatpush1.msra.mxu0 %v286
    %661 = vmatprep.subr.mxu0 %v291
    %662 = vmatpush1.msra.mxu0 %v290
    %663 = vmatprep.subr.mxu0 %v295
    %664 = vmatpush1.msra.mxu0 %v294
    %665 = vmatprep.subr.mxu0 %v299
    %666 = vmatpush1.msra.mxu0 %v298
    %667 = vmatprep.subr.mxu0 %v303
    %668 = vmatpush1.msra.mxu0 %v302
    %669 = vmatprep.subr.mxu0 %v307
    %670 = vmatpush1.msra.mxu0 %v306
    %671 = vmatprep.subr.mxu0 %v311
    %672 = vmatpush1.msra.mxu0 %v310
    %673 = vmatprep.subr.mxu0 %v315
    %674 = vmatpush1.msra.mxu0 %v314
    %675 = vmatprep.subr.mxu0 %v319
    %676 = vmatpush1.msra.mxu0 %v318
    %677 = vmatprep.subr.mxu0 %v323
    %678 = vmatpush1.msra.mxu0 %v322
    %679 = vmatprep.subr.mxu0 %v327
    %680 = vmatpush1.msra.mxu0 %v326
    %681 = vmatprep.subr.mxu0 %v331
    %682 = vmatpush1.msra.mxu0 %v330
    %683 = vmatprep.subr.mxu0 %v335
    %684 = vmatpush1.msra.mxu0 %v334
    %685 = vmatprep.subr.mxu0 %v339
    %686 = vmatpush1.msra.mxu0 %v338
    %687 = vmatprep.subr.mxu0 %v343
    %688 = vmatpush1.msra.mxu0 %v342
    %689 = vmatprep.subr.mxu0 %v347
    %690 = vmatpush1.msra.mxu0 %v346
    %691 = vmatprep.subr.mxu0 %v351
    %692 = vmatpush1.msra.mxu0 %v350
    %693 = vmatprep.subr.mxu0 %v355
    %694 = vmatpush1.msra.mxu0 %v354
    %695 = vmatprep.subr.mxu0 %v359
    %696 = vmatpush1.msra.mxu0 %v358
    %697 = vmatprep.subr.mxu0 %v363
    %698 = vmatpush1.msra.mxu0 %v362
    %699 = vmatprep.subr.mxu0 %v367
    %700 = vmatpush1.msra.mxu0 %v366
    %701 = vmatprep.subr.mxu0 %v371
    %702 = vmatpush1.msra.mxu0 %v370
    %703 = vmatprep.subr.mxu0 %v375
    %704 = vmatpush1.msra.mxu0 %v374
    %705 = vmatprep.mubr.f32.mxu0 %v77
    %706 = vmatmul.mubr.f32.gmra.mrb[0].mxu0 %v76
    %v707 = vpop.f32.mrb[0].mxu0
    %v708 = vadd.f32 %v595, %v707
    %v709 = vpop.f32.mrb[0].mxu0
    %v710 = vadd.f32 %v597, %v709
    %711 = vmatprep.mubr.f32.mxu0 %v83
    %712 = vmatmul.mubr.f32.gmra.mrb[0].mxu0 %v82
    %v713 = vpop.f32.mrb[0].mxu0
    %v714 = vadd.f32 %v601, %v713
    %v715 = vpop.f32.mrb[0].mxu0
    %v716 = vadd.f32 %v603, %v715
    %717 = vmatprep.mubr.f32.mxu0 %v89
    %718 = vmatmul.mubr.f32.gmra.mrb[0].mxu0 %v88
    %v719 = vpop.f32.mrb[0].mxu0
    %v720 = vadd.f32 %v607, %v719
    %v721 = vpop.f32.mrb[0].mxu0
    %v722 = vadd.f32 %v609, %v721
    %723 = vmatprep.mubr.f32.mxu0 %v95
    %724 = vmatmul.mubr.f32.gmra.mrb[0].mxu0 %v94
    %v725 = vpop.f32.mrb[0].mxu0
    %v726 = vadd.f32 %v613, %v725
    %v727 = vpop.f32.mrb[0].mxu0
    %v728 = vadd.f32 %v615, %v727
    %729 = vmatprep.mubr.f32.mxu0 %v101
    %730 = vmatmul.mubr.f32.gmra.mrb[0].mxu0 %v100
    %v731 = vpop.f32.mrb[0].mxu0
    %v732 = vadd.f32 %v619, %v731
    %v733 = vpop.f32.mrb[0].mxu0
    %v734 = vadd.f32 %v621, %v733
    %735 = vmatprep.mubr.f32.mxu0 %v107
    %736 = vmatmul.mubr.f32.gmra.mrb[0].mxu0 %v106
    %v737 = vpop.f32.mrb[0].mxu0
    %v738 = vadd.f32 %v625, %v737
    %v739 = vpop.f32.mrb[0].mxu0
    %v740 = vadd.f32 %v627, %v739
    %741 = vmatprep.mubr.f32.mxu0 %v113
    %742 = vmatmul.mubr.f32.gmra.mrb[0].mxu0 %v112
    %v743 = vpop.f32.mrb[0].mxu0
    %v744 = vadd.f32 %v631, %v743
    %v745 = vpop.f32.mrb[0].mxu0
    %v746 = vadd.f32 %v633, %v745
    %747 = vmatprep.mubr.f32.mxu0 %v119
    %748 = vmatmul.mubr.f32.gmra.mrb[0].mxu0 %v118
    %v749 = vpop.f32.mrb[0].mxu0
    %v750 = vadd.f32 %v637, %v749
    %v751 = vpop.f32.mrb[0].mxu0
    %v752 = vadd.f32 %v639, %v751
    %753 = vdwg.mxu0
    %754 = vmatprep.subr.mxu0 %v379
    %755 = vmatpush1.msra.mxu0 %v378
    %756 = vmatprep.subr.mxu0 %v383
    %757 = vmatpush1.msra.mxu0 %v382
    %758 = vmatprep.subr.mxu0 %v387
    %759 = vmatpush1.msra.mxu0 %v386
    %760 = vmatprep.subr.mxu0 %v391
    %761 = vmatpush1.msra.mxu0 %v390
    %762 = vmatprep.subr.mxu0 %v395
    %763 = vmatpush1.msra.mxu0 %v394
    %764 = vmatprep.subr.mxu0 %v399
    %765 = vmatpush1.msra.mxu0 %v398
    %766 = vmatprep.subr.mxu0 %v403
    %767 = vmatpush1.msra.mxu0 %v402
    %768 = vmatprep.subr.mxu0 %v407
    %769 = vmatpush1.msra.mxu0 %v406
    %770 = vmatprep.subr.mxu0 %v411
    %771 = vmatpush1.msra.mxu0 %v410
    %772 = vmatprep.subr.mxu0 %v415
    %773 = vmatpush1.msra.mxu0 %v414
    %774 = vmatprep.subr.mxu0 %v419
    %775 = vmatpush1.msra.mxu0 %v418
    %776 = vmatprep.subr.mxu0 %v423
    %777 = vmatpush1.msra.mxu0 %v422
    %778 = vmatprep.subr.mxu0 %v427
    %779 = vmatpush1.msra.mxu0 %v426
    %780 = vmatprep.subr.mxu0 %v431
    %781 = vmatpush1.msra.mxu0 %v430
    %782 = vmatprep.subr.mxu0 %v435
    %783 = vmatpush1.msra.mxu0 %v434
    %784 = vmatprep.subr.mxu0 %v439
    %785 = vmatpush1.msra.mxu0 %v438
    %786 = vmatprep.subr.mxu0 %v443
    %787 = vmatpush1.msra.mxu0 %v442
    %788 = vmatprep.subr.mxu0 %v447
    %789 = vmatpush1.msra.mxu0 %v446
    %790 = vmatprep.subr.mxu0 %v451
    %791 = vmatpush1.msra.mxu0 %v450
    %792 = vmatprep.subr.mxu0 %v455
    %793 = vmatpush1.msra.mxu0 %v454
    %794 = vmatprep.subr.mxu0 %v459
    %795 = vmatpush1.msra.mxu0 %v458
    %796 = vmatprep.subr.mxu0 %v463
    %797 = vmatpush1.msra.mxu0 %v462
    %798 = vmatprep.subr.mxu0 %v467
    %799 = vmatpush1.msra.mxu0 %v466
    %800 = vmatprep.subr.mxu0 %v471
    %801 = vmatpush1.msra.mxu0 %v470
    %802 = vmatprep.subr.mxu0 %v475
    %803 = vmatpush1.msra.mxu0 %v474
    %804 = vmatprep.subr.mxu0 %v479
    %805 = vmatpush1.msra.mxu0 %v478
    %806 = vmatprep.subr.mxu0 %v483
    %807 = vmatpush1.msra.mxu0 %v482
    %808 = vmatprep.subr.mxu0 %v487
    %809 = vmatpush1.msra.mxu0 %v486
    %810 = vmatprep.subr.mxu0 %v491
    %811 = vmatpush1.msra.mxu0 %v490
    %812 = vmatprep.subr.mxu0 %v495
    %813 = vmatpush1.msra.mxu0 %v494
    %814 = vmatprep.subr.mxu0 %v499
    %815 = vmatpush1.msra.mxu0 %v498
    %816 = vmatprep.subr.mxu0 %v503
    %817 = vmatpush1.msra.mxu0 %v502
    %818 = vmatprep.mubr.f32.mxu0 %v79
    %819 = vmatmul.mubr.f32.gmra.mrb[0].mxu0 %v78
    %v820 = vpop.f32.mrb[0].mxu0
    %v821 = vadd.f32 %v708, %v820
    %v822 = vpop.f32.mrb[0].mxu0
    %v823 = vadd.f32 %v710, %v822
    %824 = vmatprep.mubr.f32.mxu0 %v85
    %825 = vmatmul.mubr.f32.gmra.mrb[0].mxu0 %v84
    %v826 = vpop.f32.mrb[0].mxu0
    %v827 = vadd.f32 %v714, %v826
    %v828 = vpop.f32.mrb[0].mxu0
    %v829 = vadd.f32 %v716, %v828
    %830 = vmatprep.mubr.f32.mxu0 %v91
    %831 = vmatmul.mubr.f32.gmra.mrb[0].mxu0 %v90
    %v832 = vpop.f32.mrb[0].mxu0
    %v833 = vadd.f32 %v720, %v832
    %v834 = vpop.f32.mrb[0].mxu0
    %v835 = vadd.f32 %v722, %v834
    %836 = vmatprep.mubr.f32.mxu0 %v97
    %837 = vmatmul.mubr.f32.gmra.mrb[0].mxu0 %v96
    %v838 = vpop.f32.mrb[0].mxu0
    %v839 = vadd.f32 %v726, %v838
    %v840 = vpop.f32.mrb[0].mxu0
    %v841 = vadd.f32 %v728, %v840
    %842 = vmatprep.mubr.f32.mxu0 %v103
    %843 = vmatmul.mubr.f32.gmra.mrb[0].mxu0 %v102
    %v844 = vpop.f32.mrb[0].mxu0
    %v845 = vadd.f32 %v732, %v844
    %v846 = vpop.f32.mrb[0].mxu0
    %v847 = vadd.f32 %v734, %v846
    %848 = vmatprep.mubr.f32.mxu0 %v109
    %849 = vmatmul.mubr.f32.gmra.mrb[0].mxu0 %v108
    %v850 = vpop.f32.mrb[0].mxu0
    %v851 = vadd.f32 %v738, %v850
    %v852 = vpop.f32.mrb[0].mxu0
    %v853 = vadd.f32 %v740, %v852
    %854 = vmatprep.mubr.f32.mxu0 %v115
    %855 = vmatmul.mubr.f32.gmra.mrb[0].mxu0 %v114
    %v856 = vpop.f32.mrb[0].mxu0
    %v857 = vadd.f32 %v744, %v856
    %v858 = vpop.f32.mrb[0].mxu0
    %v859 = vadd.f32 %v746, %v858
    %860 = vmatprep.mubr.f32.mxu0 %v121
    %861 = vmatmul.mubr.f32.gmra.mrb[0].mxu0 %v120
    %v862 = vpop.f32.mrb[0].mxu0
    %v863 = vadd.f32 %v750, %v862
    %v864 = vpop.f32.mrb[0].mxu0
    %v865 = vadd.f32 %v752, %v864
    %866 = vdwg.mxu0
    %867 = vmatprep.subr.mxu0 %v125
    %868 = vmatpush1.msra.mxu0 %v124
    %869 = vmatprep.subr.mxu0 %v129
    %870 = vmatpush1.msra.mxu0 %v128
    %871 = vmatprep.subr.mxu0 %v133
    %872 = vmatpush1.msra.mxu0 %v132
    %873 = vmatprep.subr.mxu0 %v137
    %874 = vmatpush1.msra.mxu0 %v136
    %875 = vmatprep.subr.mxu0 %v141
    %876 = vmatpush1.msra.mxu0 %v140
    %877 = vmatprep.subr.mxu0 %v145
    %878 = vmatpush1.msra.mxu0 %v144
    %879 = vmatprep.subr.mxu0 %v149
    %880 = vmatpush1.msra.mxu0 %v148
    %881 = vmatprep.subr.mxu0 %v153
    %882 = vmatpush1.msra.mxu0 %v152
    %883 = vmatprep.subr.mxu0 %v157
    %884 = vmatpush1.msra.mxu0 %v156
    %885 = vmatprep.subr.mxu0 %v161
    %886 = vmatpush1.msra.mxu0 %v160
    %887 = vmatprep.subr.mxu0 %v165
    %888 = vmatpush1.msra.mxu0 %v164
    %889 = vmatprep.subr.mxu0 %v169
    %890 = vmatpush1.msra.mxu0 %v168
    %891 = vmatprep.subr.mxu0 %v173
    %892 = vmatpush1.msra.mxu0 %v172
    %893 = vmatprep.subr.mxu0 %v177
    %894 = vmatpush1.msra.mxu0 %v176
    %895 = vmatprep.subr.mxu0 %v181
    %896 = vmatpush1.msra.mxu0 %v180
    %897 = vmatprep.subr.mxu0 %v185
    %898 = vmatpush1.msra.mxu0 %v184
    %899 = vmatprep.subr.mxu0 %v189
    %900 = vmatpush1.msra.mxu0 %v188
    %901 = vmatprep.subr.mxu0 %v193
    %902 = vmatpush1.msra.mxu0 %v192
    %903 = vmatprep.subr.mxu0 %v197
    %904 = vmatpush1.msra.mxu0 %v196
    %905 = vmatprep.subr.mxu0 %v201
    %906 = vmatpush1.msra.mxu0 %v200
    %907 = vmatprep.subr.mxu0 %v205
    %908 = vmatpush1.msra.mxu0 %v204
    %909 = vmatprep.subr.mxu0 %v209
    %910 = vmatpush1.msra.mxu0 %v208
    %911 = vmatprep.subr.mxu0 %v213
    %912 = vmatpush1.msra.mxu0 %v212
    %913 = vmatprep.subr.mxu0 %v217
    %914 = vmatpush1.msra.mxu0 %v216
    %915 = vmatprep.subr.mxu0 %v221
    %916 = vmatpush1.msra.mxu0 %v220
    %917 = vmatprep.subr.mxu0 %v225
    %918 = vmatpush1.msra.mxu0 %v224
    %919 = vmatprep.subr.mxu0 %v229
    %920 = vmatpush1.msra.mxu0 %v228
    %921 = vmatprep.subr.mxu0 %v233
    %922 = vmatpush1.msra.mxu0 %v232
    %923 = vmatprep.subr.mxu0 %v237
    %924 = vmatpush1.msra.mxu0 %v236
    %925 = vmatprep.subr.mxu0 %v241
    %926 = vmatpush1.msra.mxu0 %v240
    %927 = vmatprep.subr.mxu0 %v245
    %928 = vmatpush1.msra.mxu0 %v244
    %929 = vmatprep.subr.mxu0 %v249
    %930 = vmatpush1.msra.mxu0 %v248
    %931 = vmatprep.mubr.f32.mxu0 %v75
    %932 = vmatmul.mubr.f32.gmra.mrb[0].mxu0 %v74
    %v933 = vpop.f32.mrb[0].mxu0
    %v934 = vadd.f32 %v519, %v933
    %v935 = vpop.f32.mrb[0].mxu0
    %v936 = vadd.f32 %v523, %v935
    %937 = vmatprep.mubr.f32.mxu0 %v81
    %938 = vmatmul.mubr.f32.gmra.mrb[0].mxu0 %v80
    %v939 = vpop.f32.mrb[0].mxu0
    %v940 = vadd.f32 %v519, %v939
    %v941 = vpop.f32.mrb[0].mxu0
    %v942 = vadd.f32 %v523, %v941
    %943 = vmatprep.mubr.f32.mxu0 %v87
    %944 = vmatmul.mubr.f32.gmra.mrb[0].mxu0 %v86
    %v945 = vpop.f32.mrb[0].mxu0
    %v946 = vadd.f32 %v519, %v945
    %v947 = vpop.f32.mrb[0].mxu0
    %v948 = vadd.f32 %v523, %v947
    %949 = vmatprep.mubr.f32.mxu0 %v93
    %950 = vmatmul.mubr.f32.gmra.mrb[0].mxu0 %v92
    %v951 = vpop.f32.mrb[0].mxu0
    %v952 = vadd.f32 %v519, %v951
    %v953 = vpop.f32.mrb[0].mxu0
    %v954 = vadd.f32 %v523, %v953
    %955 = vmatprep.mubr.f32.mxu0 %v99
    %956 = vmatmul.mubr.f32.gmra.mrb[0].mxu0 %v98
    %v957 = vpop.f32.mrb[0].mxu0
    %v958 = vadd.f32 %v519, %v957
    %v959 = vpop.f32.mrb[0].mxu0
    %v960 = vadd.f32 %v523, %v959
    %961 = vmatprep.mubr.f32.mxu0 %v105
    %962 = vmatmul.mubr.f32.gmra.mrb[0].mxu0 %v104
    %v963 = vpop.f32.mrb[0].mxu0
    %v964 = vadd.f32 %v519, %v963
    %v965 = vpop.f32.mrb[0].mxu0
    %v966 = vadd.f32 %v523, %v965
    %967 = vmatprep.mubr.f32.mxu0 %v111
    %968 = vmatmul.mubr.f32.gmra.mrb[0].mxu0 %v110
    %v969 = vpop.f32.mrb[0].mxu0
    %v970 = vadd.f32 %v519, %v969
    %v971 = vpop.f32.mrb[0].mxu0
    %v972 = vadd.f32 %v523, %v971
    %973 = vmatprep.mubr.f32.mxu0 %v117
    %974 = vmatmul.mubr.f32.gmra.mrb[0].mxu0 %v116
    %v975 = vpop.f32.mrb[0].mxu0
    %v976 = vadd.f32 %v519, %v975
    %v977 = vpop.f32.mrb[0].mxu0
    %v978 = vadd.f32 %v523, %v977
    %979 = vdwg.mxu0
    %980 = vmatprep.subr.mxu0 %v253
    %981 = vmatpush1.msra.mxu0 %v252
    %982 = vmatprep.subr.mxu0 %v257
    %983 = vmatpush1.msra.mxu0 %v256
    %984 = vmatprep.subr.mxu0 %v261
    %985 = vmatpush1.msra.mxu0 %v260
    %986 = vmatprep.subr.mxu0 %v265
    %987 = vmatpush1.msra.mxu0 %v264
    %988 = vmatprep.subr.mxu0 %v269
    %989 = vmatpush1.msra.mxu0 %v268
    %990 = vmatprep.subr.mxu0 %v273
    %991 = vmatpush1.msra.mxu0 %v272
    %992 = vmatprep.subr.mxu0 %v277
    %993 = vmatpush1.msra.mxu0 %v276
    %994 = vmatprep.subr.mxu0 %v281
    %995 = vmatpush1.msra.mxu0 %v280
    %996 = vmatprep.subr.mxu0 %v285
    %997 = vmatpush1.msra.mxu0 %v284
    %998 = vmatprep.subr.mxu0 %v289
    %999 = vmatpush1.msra.mxu0 %v288
    %1000 = vmatprep.subr.mxu0 %v293
    %1001 = vmatpush1.msra.mxu0 %v292
    %1002 = vmatprep.subr.mxu0 %v297
    %1003 = vmatpush1.msra.mxu0 %v296
    %1004 = vmatprep.subr.mxu0 %v301
    %1005 = vmatpush1.msra.mxu0 %v300
    %1006 = vmatprep.subr.mxu0 %v305
    %1007 = vmatpush1.msra.mxu0 %v304
    %1008 = vmatprep.subr.mxu0 %v309
    %1009 = vmatpush1.msra.mxu0 %v308
    %1010 = vmatprep.subr.mxu0 %v313
    %1011 = vmatpush1.msra.mxu0 %v312
    %1012 = vmatprep.subr.mxu0 %v317
    %1013 = vmatpush1.msra.mxu0 %v316
    %1014 = vmatprep.subr.mxu0 %v321
    %1015 = vmatpush1.msra.mxu0 %v320
    %1016 = vmatprep.subr.mxu0 %v325
    %1017 = vmatpush1.msra.mxu0 %v324
    %1018 = vmatprep.subr.mxu0 %v329
    %1019 = vmatpush1.msra.mxu0 %v328
    %1020 = vmatprep.subr.mxu0 %v333
    %1021 = vmatpush1.msra.mxu0 %v332
    %1022 = vmatprep.subr.mxu0 %v337
    %1023 = vmatpush1.msra.mxu0 %v336
    %1024 = vmatprep.subr.mxu0 %v341
    %1025 = vmatpush1.msra.mxu0 %v340
    %1026 = vmatprep.subr.mxu0 %v345
    %1027 = vmatpush1.msra.mxu0 %v344
    %1028 = vmatprep.subr.mxu0 %v349
    %1029 = vmatpush1.msra.mxu0 %v348
    %1030 = vmatprep.subr.mxu0 %v353
    %1031 = vmatpush1.msra.mxu0 %v352
    %1032 = vmatprep.subr.mxu0 %v357
    %1033 = vmatpush1.msra.mxu0 %v356
    %1034 = vmatprep.subr.mxu0 %v361
    %1035 = vmatpush1.msra.mxu0 %v360
    %1036 = vmatprep.subr.mxu0 %v365
    %1037 = vmatpush1.msra.mxu0 %v364
    %1038 = vmatprep.subr.mxu0 %v369
    %1039 = vmatpush1.msra.mxu0 %v368
    %1040 = vmatprep.subr.mxu0 %v373
    %1041 = vmatpush1.msra.mxu0 %v372
    %1042 = vmatprep.subr.mxu0 %v377
    %1043 = vmatpush1.msra.mxu0 %v376
    %1044 = vmatprep.mubr.f32.mxu0 %v77
    %1045 = vmatmul.mubr.f32.gmra.mrb[0].mxu0 %v76
    %v1046 = vpop.f32.mrb[0].mxu0
    %v1047 = vadd.f32 %v934, %v1046
    %v1048 = vpop.f32.mrb[0].mxu0
    %v1049 = vadd.f32 %v936, %v1048
    %1050 = vmatprep.mubr.f32.mxu0 %v83
    %1051 = vmatmul.mubr.f32.gmra.mrb[0].mxu0 %v82
    %v1052 = vpop.f32.mrb[0].mxu0
    %v1053 = vadd.f32 %v940, %v1052
    %v1054 = vpop.f32.mrb[0].mxu0
    %v1055 = vadd.f32 %v942, %v1054
    %1056 = vmatprep.mubr.f32.mxu0 %v89
    %1057 = vmatmul.mubr.f32.gmra.mrb[0].mxu0 %v88
    %v1058 = vpop.f32.mrb[0].mxu0
    %v1059 = vadd.f32 %v946, %v1058
    %v1060 = vpop.f32.mrb[0].mxu0
    %v1061 = vadd.f32 %v948, %v1060
    %1062 = vmatprep.mubr.f32.mxu0 %v95
    %1063 = vmatmul.mubr.f32.gmra.mrb[0].mxu0 %v94
    %v1064 = vpop.f32.mrb[0].mxu0
    %v1065 = vadd.f32 %v952, %v1064
    %v1066 = vpop.f32.mrb[0].mxu0
    %v1067 = vadd.f32 %v954, %v1066
    %1068 = vmatprep.mubr.f32.mxu0 %v101
    %1069 = vmatmul.mubr.f32.gmra.mrb[0].mxu0 %v100
    %v1070 = vpop.f32.mrb[0].mxu0
    %v1071 = vadd.f32 %v958, %v1070
    %v1072 = vpop.f32.mrb[0].mxu0
    %v1073 = vadd.f32 %v960, %v1072
    %1074 = vmatprep.mubr.f32.mxu0 %v107
    %1075 = vmatmul.mubr.f32.gmra.mrb[0].mxu0 %v106
    %v1076 = vpop.f32.mrb[0].mxu0
    %v1077 = vadd.f32 %v964, %v1076
    %v1078 = vpop.f32.mrb[0].mxu0
    %v1079 = vadd.f32 %v966, %v1078
    %1080 = vmatprep.mubr.f32.mxu0 %v113
    %1081 = vmatmul.mubr.f32.gmra.mrb[0].mxu0 %v112
    %v1082 = vpop.f32.mrb[0].mxu0
    %v1083 = vadd.f32 %v970, %v1082
    %v1084 = vpop.f32.mrb[0].mxu0
    %v1085 = vadd.f32 %v972, %v1084
    %1086 = vmatprep.mubr.f32.mxu0 %v119
    %1087 = vmatmul.mubr.f32.gmra.mrb[0].mxu0 %v118
    %v1088 = vpop.f32.mrb[0].mxu0
    %v1089 = vadd.f32 %v976, %v1088
    %v1090 = vpop.f32.mrb[0].mxu0
    %v1091 = vadd.f32 %v978, %v1090
    %1092 = vdwg.mxu0
    %1093 = vmatprep.subr.mxu0 %v381
    %1094 = vmatpush1.msra.mxu0 %v380
    %1095 = vmatprep.subr.mxu0 %v385
    %1096 = vmatpush1.msra.mxu0 %v384
    %1097 = vmatprep.subr.mxu0 %v389
    %1098 = vmatpush1.msra.mxu0 %v388
    %1099 = vmatprep.subr.mxu0 %v393
    %1100 = vmatpush1.msra.mxu0 %v392
    %1101 = vmatprep.subr.mxu0 %v397
    %1102 = vmatpush1.msra.mxu0 %v396
    %1103 = vmatprep.subr.mxu0 %v401
    %1104 = vmatpush1.msra.mxu0 %v400
    %1105 = vmatprep.subr.mxu0 %v405
    %1106 = vmatpush1.msra.mxu0 %v404
    %1107 = vmatprep.subr.mxu0 %v409
    %1108 = vmatpush1.msra.mxu0 %v408
    %1109 = vmatprep.subr.mxu0 %v413
    %1110 = vmatpush1.msra.mxu0 %v412
    %1111 = vmatprep.subr.mxu0 %v417
    %1112 = vmatpush1.msra.mxu0 %v416
    %1113 = vmatprep.subr.mxu0 %v421
    %1114 = vmatpush1.msra.mxu0 %v420
    %1115 = vmatprep.subr.mxu0 %v425
    %1116 = vmatpush1.msra.mxu0 %v424
    %1117 = vmatprep.subr.mxu0 %v429
    %1118 = vmatpush1.msra.mxu0 %v428
    %1119 = vmatprep.subr.mxu0 %v433
    %1120 = vmatpush1.msra.mxu0 %v432
    %1121 = vmatprep.subr.mxu0 %v437
    %1122 = vmatpush1.msra.mxu0 %v436
    %1123 = vmatprep.subr.mxu0 %v441
    %1124 = vmatpush1.msra.mxu0 %v440
    %1125 = vmatprep.subr.mxu0 %v445
    %1126 = vmatpush1.msra.mxu0 %v444
    %1127 = vmatprep.subr.mxu0 %v449
    %1128 = vmatpush1.msra.mxu0 %v448
    %1129 = vmatprep.subr.mxu0 %v453
    %1130 = vmatpush1.msra.mxu0 %v452
    %1131 = vmatprep.subr.mxu0 %v457
    %1132 = vmatpush1.msra.mxu0 %v456
    %1133 = vmatprep.subr.mxu0 %v461
    %1134 = vmatpush1.msra.mxu0 %v460
    %1135 = vmatprep.subr.mxu0 %v465
    %1136 = vmatpush1.msra.mxu0 %v464
    %1137 = vmatprep.subr.mxu0 %v469
    %1138 = vmatpush1.msra.mxu0 %v468
    %1139 = vmatprep.subr.mxu0 %v473
    %1140 = vmatpush1.msra.mxu0 %v472
    %1141 = vmatprep.subr.mxu0 %v477
    %1142 = vmatpush1.msra.mxu0 %v476
    %1143 = vmatprep.subr.mxu0 %v481
    %1144 = vmatpush1.msra.mxu0 %v480
    %1145 = vmatprep.subr.mxu0 %v485
    %1146 = vmatpush1.msra.mxu0 %v484
    %1147 = vmatprep.subr.mxu0 %v489
    %1148 = vmatpush1.msra.mxu0 %v488
    %1149 = vmatprep.subr.mxu0 %v493
    %1150 = vmatpush1.msra.mxu0 %v492
    %1151 = vmatprep.subr.mxu0 %v497
    %1152 = vmatpush1.msra.mxu0 %v496
    %1153 = vmatprep.subr.mxu0 %v501
    %1154 = vmatpush1.msra.mxu0 %v500
    %1155 = vmatprep.subr.mxu0 %v505
    %1156 = vmatpush1.msra.mxu0 %v504
    %1157 = vmatprep.mubr.f32.mxu0 %v79
    %1158 = vmatmul.mubr.f32.gmra.mrb[0].mxu0 %v78
    %v1159 = vpop.f32.mrb[0].mxu0
    %v1160 = vadd.f32 %v1047, %v1159
    %v1161 = vpop.f32.mrb[0].mxu0
    %v1162 = vadd.f32 %v1049, %v1161
    %1163 = vmatprep.mubr.f32.mxu0 %v85
    %1164 = vmatmul.mubr.f32.gmra.mrb[0].mxu0 %v84
    %v1165 = vpop.f32.mrb[0].mxu0
    %v1166 = vadd.f32 %v1053, %v1165
    %v1167 = vpop.f32.mrb[0].mxu0
    %v1168 = vadd.f32 %v1055, %v1167
    %1169 = vmatprep.mubr.f32.mxu0 %v91
    %1170 = vmatmul.mubr.f32.gmra.mrb[0].mxu0 %v90
    %v1171 = vpop.f32.mrb[0].mxu0
    %v1172 = vadd.f32 %v1059, %v1171
    %v1173 = vpop.f32.mrb[0].mxu0
    %v1174 = vadd.f32 %v1061, %v1173
    %1175 = vmatprep.mubr.f32.mxu0 %v97
    %1176 = vmatmul.mubr.f32.gmra.mrb[0].mxu0 %v96
    %v1177 = vpop.f32.mrb[0].mxu0
    %v1178 = vadd.f32 %v1065, %v1177
    %v1179 = vpop.f32.mrb[0].mxu0
    %v1180 = vadd.f32 %v1067, %v1179
    %1181 = vmatprep.mubr.f32.mxu0 %v103
    %1182 = vmatmul.mubr.f32.gmra.mrb[0].mxu0 %v102
    %v1183 = vpop.f32.mrb[0].mxu0
    %v1184 = vadd.f32 %v1071, %v1183
    %v1185 = vpop.f32.mrb[0].mxu0
    %v1186 = vadd.f32 %v1073, %v1185
    %1187 = vmatprep.mubr.f32.mxu0 %v109
    %1188 = vmatmul.mubr.f32.gmra.mrb[0].mxu0 %v108
    %v1189 = vpop.f32.mrb[0].mxu0
    %v1190 = vadd.f32 %v1077, %v1189
    %v1191 = vpop.f32.mrb[0].mxu0
    %v1192 = vadd.f32 %v1079, %v1191
    %1193 = vmatprep.mubr.f32.mxu0 %v115
    %1194 = vmatmul.mubr.f32.gmra.mrb[0].mxu0 %v114
    %v1195 = vpop.f32.mrb[0].mxu0
    %v1196 = vadd.f32 %v1083, %v1195
    %v1197 = vpop.f32.mrb[0].mxu0
    %v1198 = vadd.f32 %v1085, %v1197
    %1199 = vmatprep.mubr.f32.mxu0 %v121
    %1200 = vmatmul.mubr.f32.gmra.mrb[0].mxu0 %v120
    %v1201 = vpop.f32.mrb[0].mxu0
    %v1202 = vadd.f32 %v1089, %v1201
    %v1203 = vpop.f32.mrb[0].mxu0
    %v1204 = vadd.f32 %v1091, %v1203
    %1205 = vdwg.mxu0
    %1206 = vst [vmem:[#allocation2] sm:$0xff] %v821
    %1207 = vst [vmem:[#allocation2 + $0x8] sm:$0xff] %v823
    %1208 = vst [vmem:[#allocation2 + $0x10] sm:$0xff] %v1160
    %1209 = vst [vmem:[#allocation2 + $0x18] sm:$0xff] %v1162
    %1210 = vst [vmem:[#allocation2 + $0x20] sm:$0xff] %v827
    %1211 = vst [vmem:[#allocation2 + $0x28] sm:$0xff] %v829
    %1212 = vst [vmem:[#allocation2 + $0x30] sm:$0xff] %v1166
    %1213 = vst [vmem:[#allocation2 + $0x38] sm:$0xff] %v1168
    %1214 = vst [vmem:[#allocation2 + $0x40] sm:$0xff] %v833
    %1215 = vst [vmem:[#allocation2 + $0x48] sm:$0xff] %v835
    %1216 = vst [vmem:[#allocation2 + $0x50] sm:$0xff] %v1172
    %1217 = vst [vmem:[#allocation2 + $0x58] sm:$0xff] %v1174
    %1218 = vst [vmem:[#allocation2 + $0x60] sm:$0xff] %v839
    %1219 = vst [vmem:[#allocation2 + $0x68] sm:$0xff] %v841
    %1220 = vst [vmem:[#allocation2 + $0x70] sm:$0xff] %v1178
    %1221 = vst [vmem:[#allocation2 + $0x78] sm:$0xff] %v1180
    %1222 = vst [vmem:[#allocation2 + $0x80] sm:$0xff] %v845
    %1223 = vst [vmem:[#allocation2 + $0x88] sm:$0xff] %v847
    %1224 = vst [vmem:[#allocation2 + $0x90] sm:$0xff] %v1184
    %1225 = vst [vmem:[#allocation2 + $0x98] sm:$0xff] %v1186
    %1226 = vst [vmem:[#allocation2 + $0xa0] sm:$0xff] %v851
    %1227 = vst [vmem:[#allocation2 + $0xa8] sm:$0xff] %v853
    %1228 = vst [vmem:[#allocation2 + $0xb0] sm:$0xff] %v1190
    %1229 = vst [vmem:[#allocation2 + $0xb8] sm:$0xff] %v1192
    %1230 = vst [vmem:[#allocation2 + $0xc0] sm:$0xff] %v857
    %1231 = vst [vmem:[#allocation2 + $0xc8] sm:$0xff] %v859
    %1232 = vst [vmem:[#allocation2 + $0xd0] sm:$0xff] %v1196
    %1233 = vst [vmem:[#allocation2 + $0xd8] sm:$0xff] %v1198
    %1234 = vst [vmem:[#allocation2 + $0xe0] sm:$0xff] %v863
    %1235 = vst [vmem:[#allocation2 + $0xe8] sm:$0xff] %v865
    %1236 = vst [vmem:[#allocation2 + $0xf0] sm:$0xff] %v1202
    %1237 = vst [vmem:[#allocation2 + $0xf8] sm:$0xff] %v1204
    %v1238 = vld [vmem:[#allocation2] sm:$0xff]
    %v1239 = vld [vmem:[#allocation2 + $0x8] sm:$0xff]
    %v1240 = vld [vmem:[#allocation2 + $0x10] sm:$0xff]
    %v1241 = vld [vmem:[#allocation2 + $0x18] sm:$0xff]
    %v1242 = vld [vmem:[#allocation5] sm:$0xff]
    %v1243 = vld [vmem:[#allocation5 + $0x8] sm:$0xff]
    %v1244 = vld [vmem:[#allocation5 + $0x10] sm:$0xff]
    %v1245 = vld [vmem:[#allocation5 + $0x18] sm:$0xff]
    %v1246 = vld [vmem:[#allocation5 + $0x20] sm:$0xff]
    %v1247 = vld [vmem:[#allocation5 + $0x28] sm:$0xff]
    %v1248 = vld [vmem:[#allocation5 + $0x30] sm:$0xff]
    %v1249 = vld [vmem:[#allocation5 + $0x38] sm:$0xff]
    %v1250 = vld [vmem:[#allocation5 + $0x40] sm:$0xff]
    %v1251 = vld [vmem:[#allocation5 + $0x48] sm:$0xff]
    %v1252 = vld [vmem:[#allocation5 + $0x50] sm:$0xff]
    %v1253 = vld [vmem:[#allocation5 + $0x58] sm:$0xff]
    %v1254 = vld [vmem:[#allocation5 + $0x60] sm:$0xff]
    %v1255 = vld [vmem:[#allocation5 + $0x68] sm:$0xff]
    %v1256 = vld [vmem:[#allocation5 + $0x70] sm:$0xff]
    %v1257 = vld [vmem:[#allocation5 + $0x78] sm:$0xff]
    %v1258 = vld [vmem:[#allocation5 + $0x80] sm:$0xff]
    %v1259 = vld [vmem:[#allocation5 + $0x88] sm:$0xff]
    %v1260 = vld [vmem:[#allocation5 + $0x90] sm:$0xff]
    %v1261 = vld [vmem:[#allocation5 + $0x98] sm:$0xff]
    %v1262 = vld [vmem:[#allocation5 + $0xa0] sm:$0xff]
    %v1263 = vld [vmem:[#allocation5 + $0xa8] sm:$0xff]
    %v1264 = vld [vmem:[#allocation5 + $0xb0] sm:$0xff]
    %v1265 = vld [vmem:[#allocation5 + $0xb8] sm:$0xff]
    %v1266 = vld [vmem:[#allocation5 + $0xc0] sm:$0xff]
    %v1267 = vld [vmem:[#allocation5 + $0xc8] sm:$0xff]
    %v1268 = vld [vmem:[#allocation5 + $0xd0] sm:$0xff]
    %v1269 = vld [vmem:[#allocation5 + $0xd8] sm:$0xff]
    %v1270 = vld [vmem:[#allocation5 + $0xe0] sm:$0xff]
    %v1271 = vld [vmem:[#allocation5 + $0xe8] sm:$0xff]
    %v1272 = vld [vmem:[#allocation5 + $0xf0] sm:$0xff]
    %v1273 = vld [vmem:[#allocation5 + $0xf8] sm:$0xff]
    %v1274 = vld [vmem:[#allocation5 + $0x100] sm:$0xff]
    %v1275 = vld [vmem:[#allocation5 + $0x108] sm:$0xff]
    %v1276 = vld [vmem:[#allocation5 + $0x110] sm:$0xff]
    %v1277 = vld [vmem:[#allocation5 + $0x118] sm:$0xff]
    %v1278 = vld [vmem:[#allocation5 + $0x120] sm:$0xff]
    %v1279 = vld [vmem:[#allocation5 + $0x128] sm:$0xff]
    %v1280 = vld [vmem:[#allocation5 + $0x130] sm:$0xff]
    %v1281 = vld [vmem:[#allocation5 + $0x138] sm:$0xff]
    %v1282 = vld [vmem:[#allocation5 + $0x140] sm:$0xff]
    %v1283 = vld [vmem:[#allocation5 + $0x148] sm:$0xff]
    %v1284 = vld [vmem:[#allocation5 + $0x150] sm:$0xff]
    %v1285 = vld [vmem:[#allocation5 + $0x158] sm:$0xff]
    %v1286 = vld [vmem:[#allocation5 + $0x160] sm:$0xff]
    %v1287 = vld [vmem:[#allocation5 + $0x168] sm:$0xff]
    %v1288 = vld [vmem:[#allocation5 + $0x170] sm:$0xff]
    %v1289 = vld [vmem:[#allocation5 + $0x178] sm:$0xff]
    %v1290 = vld [vmem:[#allocation5 + $0x180] sm:$0xff]
    %v1291 = vld [vmem:[#allocation5 + $0x188] sm:$0xff]
    %v1292 = vld [vmem:[#allocation5 + $0x190] sm:$0xff]
    %v1293 = vld [vmem:[#allocation5 + $0x198] sm:$0xff]
    %v1294 = vld [vmem:[#allocation5 + $0x1a0] sm:$0xff]
    %v1295 = vld [vmem:[#allocation5 + $0x1a8] sm:$0xff]
    %v1296 = vld [vmem:[#allocation5 + $0x1b0] sm:$0xff]
    %v1297 = vld [vmem:[#allocation5 + $0x1b8] sm:$0xff]
    %v1298 = vld [vmem:[#allocation5 + $0x1c0] sm:$0xff]
    %v1299 = vld [vmem:[#allocation5 + $0x1c8] sm:$0xff]
    %v1300 = vld [vmem:[#allocation5 + $0x1d0] sm:$0xff]
    %v1301 = vld [vmem:[#allocation5 + $0x1d8] sm:$0xff]
    %v1302 = vld [vmem:[#allocation5 + $0x1e0] sm:$0xff]
    %v1303 = vld [vmem:[#allocation5 + $0x1e8] sm:$0xff]
    %v1304 = vld [vmem:[#allocation5 + $0x1f0] sm:$0xff]
    %v1305 = vld [vmem:[#allocation5 + $0x1f8] sm:$0xff]
    %1306 = vmatprep.subr.mxu0 %v1243
    %1307 = vmatpush1.msra.mxu0 %v1242
    %1308 = vmatprep.subr.mxu0 %v1247
    %1309 = vmatpush1.msra.mxu0 %v1246
    %1310 = vmatprep.subr.mxu0 %v1251
    %1311 = vmatpush1.msra.mxu0 %v1250
    %1312 = vmatprep.subr.mxu0 %v1255
    %1313 = vmatpush1.msra.mxu0 %v1254
    %1314 = vmatprep.subr.mxu0 %v1259
    %1315 = vmatpush1.msra.mxu0 %v1258
    %1316 = vmatprep.subr.mxu0 %v1263
    %1317 = vmatpush1.msra.mxu0 %v1262
    %1318 = vmatprep.subr.mxu0 %v1267
    %1319 = vmatpush1.msra.mxu0 %v1266
    %1320 = vmatprep.subr.mxu0 %v1271
    %1321 = vmatpush1.msra.mxu0 %v1270
    %1322 = vmatprep.subr.mxu0 %v1275
    %1323 = vmatpush1.msra.mxu0 %v1274
    %1324 = vmatprep.subr.mxu0 %v1279
    %1325 = vmatpush1.msra.mxu0 %v1278
    %1326 = vmatprep.subr.mxu0 %v1283
    %1327 = vmatpush1.msra.mxu0 %v1282
    %1328 = vmatprep.subr.mxu0 %v1287
    %1329 = vmatpush1.msra.mxu0 %v1286
    %1330 = vmatprep.subr.mxu0 %v1291
    %1331 = vmatpush1.msra.mxu0 %v1290
    %1332 = vmatprep.subr.mxu0 %v1295
    %1333 = vmatpush1.msra.mxu0 %v1294
    %1334 = vmatprep.subr.mxu0 %v1299
    %1335 = vmatpush1.msra.mxu0 %v1298
    %1336 = vmatprep.subr.mxu0 %v1303
    %1337 = vmatpush1.msra.mxu0 %v1302
    %1338 = vmatprep.subr.mxu0 0.0
    %1339 = vmatpush1.msra.mxu0 0.0
    %1340 = vmatprep.subr.mxu0 0.0
    %1341 = vmatpush1.msra.mxu0 0.0
    %1342 = vmatprep.subr.mxu0 0.0
    %1343 = vmatpush1.msra.mxu0 0.0
    %1344 = vmatprep.subr.mxu0 0.0
    %1345 = vmatpush1.msra.mxu0 0.0
    %1346 = vmatprep.subr.mxu0 0.0
    %1347 = vmatpush1.msra.mxu0 0.0
    %1348 = vmatprep.subr.mxu0 0.0
    %1349 = vmatpush1.msra.mxu0 0.0
    %1350 = vmatprep.subr.mxu0 0.0
    %1351 = vmatpush1.msra.mxu0 0.0
    %1352 = vmatprep.subr.mxu0 0.0
    %1353 = vmatpush1.msra.mxu0 0.0
    %1354 = vmatprep.subr.mxu0 0.0
    %1355 = vmatpush1.msra.mxu0 0.0
    %1356 = vmatprep.subr.mxu0 0.0
    %1357 = vmatpush1.msra.mxu0 0.0
    %1358 = vmatprep.subr.mxu0 0.0
    %1359 = vmatpush1.msra.mxu0 0.0
    %1360 = vmatprep.subr.mxu0 0.0
    %1361 = vmatpush1.msra.mxu0 0.0
    %1362 = vmatprep.subr.mxu0 0.0
    %1363 = vmatpush1.msra.mxu0 0.0
    %1364 = vmatprep.subr.mxu0 0.0
    %1365 = vmatpush1.msra.mxu0 0.0
    %1366 = vmatprep.subr.mxu0 0.0
    %1367 = vmatpush1.msra.mxu0 0.0
    %1368 = vmatprep.subr.mxu0 0.0
    %1369 = vmatpush1.msra.mxu0 0.0
    %1370 = vmatprep.mubr.f32.mxu0 0.0
    %1371 = vmatmul.mubr.f32.gmra.mrb[0].mxu0 0.0
    %v1372 = vpop.f32.mrb[0].mxu0
    %v1373 = vadd.f32 0.0, %v1372
    %v1374 = vpop.f32.mrb[0].mxu0
    %v1375 = vadd.f32 0.0, %v1374
    %1376 = vdwg.mxu0
    %1377 = vmatprep.subr.mxu0 %v1245
    %1378 = vmatpush1.msra.mxu0 %v1244
    %1379 = vmatprep.subr.mxu0 %v1249
    %1380 = vmatpush1.msra.mxu0 %v1248
    %1381 = vmatprep.subr.mxu0 %v1253
    %1382 = vmatpush1.msra.mxu0 %v1252
    %1383 = vmatprep.subr.mxu0 %v1257
    %1384 = vmatpush1.msra.mxu0 %v1256
    %1385 = vmatprep.subr.mxu0 %v1261
    %1386 = vmatpush1.msra.mxu0 %v1260
    %1387 = vmatprep.subr.mxu0 %v1265
    %1388 = vmatpush1.msra.mxu0 %v1264
    %1389 = vmatprep.subr.mxu0 %v1269
    %1390 = vmatpush1.msra.mxu0 %v1268
    %1391 = vmatprep.subr.mxu0 %v1273
    %1392 = vmatpush1.msra.mxu0 %v1272
    %1393 = vmatprep.subr.mxu0 %v1277
    %1394 = vmatpush1.msra.mxu0 %v1276
    %1395 = vmatprep.subr.mxu0 %v1281
    %1396 = vmatpush1.msra.mxu0 %v1280
    %1397 = vmatprep.subr.mxu0 %v1285
    %1398 = vmatpush1.msra.mxu0 %v1284
    %1399 = vmatprep.subr.mxu0 %v1289
    %1400 = vmatpush1.msra.mxu0 %v1288
    %1401 = vmatprep.subr.mxu0 %v1293
    %1402 = vmatpush1.msra.mxu0 %v1292
    %1403 = vmatprep.subr.mxu0 %v1297
    %1404 = vmatpush1.msra.mxu0 %v1296
    %1405 = vmatprep.subr.mxu0 %v1301
    %1406 = vmatpush1.msra.mxu0 %v1300
    %1407 = vmatprep.subr.mxu0 %v1305
    %1408 = vmatpush1.msra.mxu0 %v1304
    %1409 = vmatprep.subr.mxu0 0.0
    %1410 = vmatpush1.msra.mxu0 0.0
    %1411 = vmatprep.subr.mxu0 0.0
    %1412 = vmatpush1.msra.mxu0 0.0
    %1413 = vmatprep.subr.mxu0 0.0
    %1414 = vmatpush1.msra.mxu0 0.0
    %1415 = vmatprep.subr.mxu0 0.0
    %1416 = vmatpush1.msra.mxu0 0.0
    %1417 = vmatprep.subr.mxu0 0.0
    %1418 = vmatpush1.msra.mxu0 0.0
    %1419 = vmatprep.subr.mxu0 0.0
    %1420 = vmatpush1.msra.mxu0 0.0
    %1421 = vmatprep.subr.mxu0 0.0
    %1422 = vmatpush1.msra.mxu0 0.0
    %1423 = vmatprep.subr.mxu0 0.0
    %1424 = vmatpush1.msra.mxu0 0.0
    %1425 = vmatprep.subr.mxu0 0.0
    %1426 = vmatpush1.msra.mxu0 0.0
    %1427 = vmatprep.subr.mxu0 0.0
    %1428 = vmatpush1.msra.mxu0 0.0
    %1429 = vmatprep.subr.mxu0 0.0
    %1430 = vmatpush1.msra.mxu0 0.0
    %1431 = vmatprep.subr.mxu0 0.0
    %1432 = vmatpush1.msra.mxu0 0.0
    %1433 = vmatprep.subr.mxu0 0.0
    %1434 = vmatpush1.msra.mxu0 0.0
    %1435 = vmatprep.subr.mxu0 0.0
    %1436 = vmatpush1.msra.mxu0 0.0
    %1437 = vmatprep.subr.mxu0 0.0
    %1438 = vmatpush1.msra.mxu0 0.0
    %1439 = vmatprep.subr.mxu0 0.0
    %1440 = vmatpush1.msra.mxu0 0.0
    %1441 = vmatprep.mubr.f32.mxu0 0.0
    %1442 = vmatmul.mubr.f32.gmra.mrb[0].mxu0 0.0
    %v1443 = vpop.f32.mrb[0].mxu0
    %v1444 = vadd.f32 0.0, %v1443
    %v1445 = vpop.f32.mrb[0].mxu0
    %v1446 = vadd.f32 0.0, %v1445
    %1447 = vdwg.mxu0
    %v1448 = vadd.f32 %v1238, %v1373
    %v1449 = vadd.f32 %v1239, %v1375
    %v1450 = vadd.f32 %v1240, %v1444
    %v1451 = vadd.f32 %v1241, %v1446
    %v1452 = vmul.f32 %v1448, 0.5
    %v1453 = vmul.f32 %v1449, 0.5
    %v1454 = vmul.f32 %v1450, 0.5
    %v1455 = vtanh.pop %v1452
    %v1456 = vtanh.pop %v1453
    %v1457 = vtanh.pop %v1454
    %v1458 = vadd.f32 %v1455, 1.0
    %v1459 = vadd.f32 %v1456, 1.0
    %v1460 = vadd.f32 %v1457, 1.0
    %v1461 = vmul.f32 %v1458, 0.5
    %v1462 = vmul.f32 %v1459, 0.5
    %v1463 = vmul.f32 %v1460, 0.5
    %v1464 = vtanh.pop %v1451
    %v1465 = vmul.f32 %v1462, 0.0
    %v1466 = vmul.f32 %v1461, %v1464
    %v1467 = vadd.f32 %v1465, %v1466
    %v1468 = vtanh.pop %v1467
    %v1469 = vmul.f32 %v1463, %v1468
    %s1470 = scalar_lea.vmem [#allocation2], 32
    %v1471 = vld [vmem:[%s1470] sm:$0xff]
    %v1472 = vld [vmem:[%s1470 + $0x8] sm:$0xff]
    %v1473 = vld [vmem:[%s1470 + $0x10] sm:$0xff]
    %v1474 = vld [vmem:[%s1470 + $0x18] sm:$0xff]
    %1475 = vmatprep.subr.mxu0 %v1243
    %1476 = vmatpush1.msra.mxu0 %v1242
    %1477 = vmatprep.subr.mxu0 %v1247
    %1478 = vmatpush1.msra.mxu0 %v1246
    %1479 = vmatprep.subr.mxu0 %v1251
    %1480 = vmatpush1.msra.mxu0 %v1250
    %1481 = vmatprep.subr.mxu0 %v1255
    %1482 = vmatpush1.msra.mxu0 %v1254
    %1483 = vmatprep.subr.mxu0 %v1259
    %1484 = vmatpush1.msra.mxu0 %v1258
    %1485 = vmatprep.subr.mxu0 %v1263
    %1486 = vmatpush1.msra.mxu0 %v1262
    %1487 = vmatprep.subr.mxu0 %v1267
    %1488 = vmatpush1.msra.mxu0 %v1266
    %1489 = vmatprep.subr.mxu0 %v1271
    %1490 = vmatpush1.msra.mxu0 %v1270
    %1491 = vmatprep.subr.mxu0 %v1275
    %1492 = vmatpush1.msra.mxu0 %v1274
    %1493 = vmatprep.subr.mxu0 %v1279
    %1494 = vmatpush1.msra.mxu0 %v1278
    %1495 = vmatprep.subr.mxu0 %v1283
    %1496 = vmatpush1.msra.mxu0 %v1282
    %1497 = vmatprep.subr.mxu0 %v1287
    %1498 = vmatpush1.msra.mxu0 %v1286
    %1499 = vmatprep.subr.mxu0 %v1291
    %1500 = vmatpush1.msra.mxu0 %v1290
    %1501 = vmatprep.subr.mxu0 %v1295
    %1502 = vmatpush1.msra.mxu0 %v1294
    %1503 = vmatprep.subr.mxu0 %v1299
    %1504 = vmatpush1.msra.mxu0 %v1298
    %1505 = vmatprep.subr.mxu0 %v1303
    %1506 = vmatpush1.msra.mxu0 %v1302
    %1507 = vmatprep.subr.mxu0 0.0
    %1508 = vmatpush1.msra.mxu0 0.0
    %1509 = vmatprep.subr.mxu0 0.0
    %1510 = vmatpush1.msra.mxu0 0.0
    %1511 = vmatprep.subr.mxu0 0.0
    %1512 = vmatpush1.msra.mxu0 0.0
    %1513 = vmatprep.subr.mxu0 0.0
    %1514 = vmatpush1.msra.mxu0 0.0
    %1515 = vmatprep.subr.mxu0 0.0
    %1516 = vmatpush1.msra.mxu0 0.0
    %1517 = vmatprep.subr.mxu0 0.0
    %1518 = vmatpush1.msra.mxu0 0.0
    %1519 = vmatprep.subr.mxu0 0.0
    %1520 = vmatpush1.msra.mxu0 0.0
    %1521 = vmatprep.subr.mxu0 0.0
    %1522 = vmatpush1.msra.mxu0 0.0
    %1523 = vmatprep.subr.mxu0 0.0
    %1524 = vmatpush1.msra.mxu0 0.0
    %1525 = vmatprep.subr.mxu0 0.0
    %1526 = vmatpush1.msra.mxu0 0.0
    %1527 = vmatprep.subr.mxu0 0.0
    %1528 = vmatpush1.msra.mxu0 0.0
    %1529 = vmatprep.subr.mxu0 0.0
    %1530 = vmatpush1.msra.mxu0 0.0
    %1531 = vmatprep.subr.mxu0 0.0
    %1532 = vmatpush1.msra.mxu0 0.0
    %1533 = vmatprep.subr.mxu0 0.0
    %1534 = vmatpush1.msra.mxu0 0.0
    %1535 = vmatprep.subr.mxu0 0.0
    %1536 = vmatpush1.msra.mxu0 0.0
    %1537 = vmatprep.subr.mxu0 0.0
    %1538 = vmatpush1.msra.mxu0 0.0
    %1539 = vmatprep.mubr.f32.mxu0 0.0
    %1540 = vmatmul.mubr.f32.gmra.mrb[0].mxu0 %v1469
    %v1541 = vpop.f32.mrb[0].mxu0
    %v1542 = vadd.f32 0.0, %v1541
    %v1543 = vpop.f32.mrb[0].mxu0
    %v1544 = vadd.f32 0.0, %v1543
    %1545 = vdwg.mxu0
    %1546 = vmatprep.subr.mxu0 %v1245
    %1547 = vmatpush1.msra.mxu0 %v1244
    %1548 = vmatprep.subr.mxu0 %v1249
    %1549 = vmatpush1.msra.mxu0 %v1248
    %1550 = vmatprep.subr.mxu0 %v1253
    %1551 = vmatpush1.msra.mxu0 %v1252
    %1552 = vmatprep.subr.mxu0 %v1257
    %1553 = vmatpush1.msra.mxu0 %v1256
    %1554 = vmatprep.subr.mxu0 %v1261
    %1555 = vmatpush1.msra.mxu0 %v1260
    %1556 = vmatprep.subr.mxu0 %v1265
    %1557 = vmatpush1.msra.mxu0 %v1264
    %1558 = vmatprep.subr.mxu0 %v1269
    %1559 = vmatpush1.msra.mxu0 %v1268
    %1560 = vmatprep.subr.mxu0 %v1273
    %1561 = vmatpush1.msra.mxu0 %v1272
    %1562 = vmatprep.subr.mxu0 %v1277
    %1563 = vmatpush1.msra.mxu0 %v1276
    %1564 = vmatprep.subr.mxu0 %v1281
    %1565 = vmatpush1.msra.mxu0 %v1280
    %1566 = vmatprep.subr.mxu0 %v1285
    %1567 = vmatpush1.msra.mxu0 %v1284
    %1568 = vmatprep.subr.mxu0 %v1289
    %1569 = vmatpush1.msra.mxu0 %v1288
    %1570 = vmatprep.subr.mxu0 %v1293
    %1571 = vmatpush1.msra.mxu0 %v1292
    %1572 = vmatprep.subr.mxu0 %v1297
    %1573 = vmatpush1.msra.mxu0 %v1296
    %1574 = vmatprep.subr.mxu0 %v1301
    %1575 = vmatpush1.msra.mxu0 %v1300
    %1576 = vmatprep.subr.mxu0 %v1305
    %1577 = vmatpush1.msra.mxu0 %v1304
    %1578 = vmatprep.subr.mxu0 0.0
    %1579 = vmatpush1.msra.mxu0 0.0
    %1580 = vmatprep.subr.mxu0 0.0
    %1581 = vmatpush1.msra.mxu0 0.0
    %1582 = vmatprep.subr.mxu0 0.0
    %1583 = vmatpush1.msra.mxu0 0.0
    %1584 = vmatprep.subr.mxu0 0.0
    %1585 = vmatpush1.msra.mxu0 0.0
    %1586 = vmatprep.subr.mxu0 0.0
    %1587 = vmatpush1.msra.mxu0 0.0
    %1588 = vmatprep.subr.mxu0 0.0
    %1589 = vmatpush1.msra.mxu0 0.0
    %1590 = vmatprep.subr.mxu0 0.0
    %1591 = vmatpush1.msra.mxu0 0.0
    %1592 = vmatprep.subr.mxu0 0.0
    %1593 = vmatpush1.msra.mxu0 0.0
    %1594 = vmatprep.subr.mxu0 0.0
    %1595 = vmatpush1.msra.mxu0 0.0
    %1596 = vmatprep.subr.mxu0 0.0
    %1597 = vmatpush1.msra.mxu0 0.0
    %1598 = vmatprep.subr.mxu0 0.0
    %1599 = vmatpush1.msra.mxu0 0.0
    %1600 = vmatprep.subr.mxu0 0.0
    %1601 = vmatpush1.msra.mxu0 0.0
    %1602 = vmatprep.subr.mxu0 0.0
    %1603 = vmatpush1.msra.mxu0 0.0
    %1604 = vmatprep.subr.mxu0 0.0
    %1605 = vmatpush1.msra.mxu0 0.0
    %1606 = vmatprep.subr.mxu0 0.0
    %1607 = vmatpush1.msra.mxu0 0.0
    %1608 = vmatprep.subr.mxu0 0.0
    %1609 = vmatpush1.msra.mxu0 0.0
    %1610 = vmatprep.mubr.f32.mxu0 0.0
    %1611 = vmatmul.mubr.f32.gmra.mrb[0].mxu0 %v1469
    %v1612 = vpop.f32.mrb[0].mxu0
    %v1613 = vadd.f32 0.0, %v1612
    %v1614 = vpop.f32.mrb[0].mxu0
    %v1615 = vadd.f32 0.0, %v1614
    %1616 = vdwg.mxu0
    %v1617 = vadd.f32 %v1471, %v1542
    %v1618 = vadd.f32 %v1472, %v1544
    %v1619 = vadd.f32 %v1473, %v1613
    %v1620 = vadd.f32 %v1474, %v1615
    %v1621 = vmul.f32 %v1617, 0.5
    %v1622 = vmul.f32 %v1618, 0.5
    %v1623 = vmul.f32 %v1619, 0.5
    %v1624 = vtanh.pop %v1621
    %v1625 = vtanh.pop %v1622
    %v1626 = vtanh.pop %v1623
    %v1627 = vadd.f32 %v1624, 1.0
    %v1628 = vadd.f32 %v1625, 1.0
    %v1629 = vadd.f32 %v1626, 1.0
    %v1630 = vmul.f32 %v1627, 0.5
    %v1631 = vmul.f32 %v1628, 0.5
    %v1632 = vmul.f32 %v1629, 0.5
    %v1633 = vtanh.pop %v1620
    %v1634 = vmul.f32 %v1631, %v1467
    %v1635 = vmul.f32 %v1630, %v1633
    %v1636 = vadd.f32 %v1634, %v1635
    %v1637 = vtanh.pop %v1636
    %v1638 = vmul.f32 %v1632, %v1637
    %s1639 = scalar_lea.vmem [#allocation2], 64
    %v1640 = vld [vmem:[%s1639] sm:$0xff]
    %v1641 = vld [vmem:[%s1639 + $0x8] sm:$0xff]
    %v1642 = vld [vmem:[%s1639 + $0x10] sm:$0xff]
    %v1643 = vld [vmem:[%s1639 + $0x18] sm:$0xff]
    %1644 = vmatprep.subr.mxu0 %v1243
    %1645 = vmatpush1.msra.mxu0 %v1242
    %1646 = vmatprep.subr.mxu0 %v1247
    %1647 = vmatpush1.msra.mxu0 %v1246
    %1648 = vmatprep.subr.mxu0 %v1251
    %1649 = vmatpush1.msra.mxu0 %v1250
    %1650 = vmatprep.subr.mxu0 %v1255
    %1651 = vmatpush1.msra.mxu0 %v1254
    %1652 = vmatprep.subr.mxu0 %v1259
    %1653 = vmatpush1.msra.mxu0 %v1258
    %1654 = vmatprep.subr.mxu0 %v1263
    %1655 = vmatpush1.msra.mxu0 %v1262
    %1656 = vmatprep.subr.mxu0 %v1267
    %1657 = vmatpush1.msra.mxu0 %v1266
    %1658 = vmatprep.subr.mxu0 %v1271
    %1659 = vmatpush1.msra.mxu0 %v1270
    %1660 = vmatprep.subr.mxu0 %v1275
    %1661 = vmatpush1.msra.mxu0 %v1274
    %1662 = vmatprep.subr.mxu0 %v1279
    %1663 = vmatpush1.msra.mxu0 %v1278
    %1664 = vmatprep.subr.mxu0 %v1283
    %1665 = vmatpush1.msra.mxu0 %v1282
    %1666 = vmatprep.subr.mxu0 %v1287
    %1667 = vmatpush1.msra.mxu0 %v1286
    %1668 = vmatprep.subr.mxu0 %v1291
    %1669 = vmatpush1.msra.mxu0 %v1290
    %1670 = vmatprep.subr.mxu0 %v1295
    %1671 = vmatpush1.msra.mxu0 %v1294
    %1672 = vmatprep.subr.mxu0 %v1299
    %1673 = vmatpush1.msra.mxu0 %v1298
    %1674 = vmatprep.subr.mxu0 %v1303
    %1675 = vmatpush1.msra.mxu0 %v1302
    %1676 = vmatprep.subr.mxu0 0.0
    %1677 = vmatpush1.msra.mxu0 0.0
    %1678 = vmatprep.subr.mxu0 0.0
    %1679 = vmatpush1.msra.mxu0 0.0
    %1680 = vmatprep.subr.mxu0 0.0
    %1681 = vmatpush1.msra.mxu0 0.0
    %1682 = vmatprep.subr.mxu0 0.0
    %1683 = vmatpush1.msra.mxu0 0.0
    %1684 = vmatprep.subr.mxu0 0.0
    %1685 = vmatpush1.msra.mxu0 0.0
    %1686 = vmatprep.subr.mxu0 0.0
    %1687 = vmatpush1.msra.mxu0 0.0
    %1688 = vmatprep.subr.mxu0 0.0
    %1689 = vmatpush1.msra.mxu0 0.0
    %1690 = vmatprep.subr.mxu0 0.0
    %1691 = vmatpush1.msra.mxu0 0.0
    %1692 = vmatprep.subr.mxu0 0.0
    %1693 = vmatpush1.msra.mxu0 0.0
    %1694 = vmatprep.subr.mxu0 0.0
    %1695 = vmatpush1.msra.mxu0 0.0
    %1696 = vmatprep.subr.mxu0 0.0
    %1697 = vmatpush1.msra.mxu0 0.0
    %1698 = vmatprep.subr.mxu0 0.0
    %1699 = vmatpush1.msra.mxu0 0.0
    %1700 = vmatprep.subr.mxu0 0.0
    %1701 = vmatpush1.msra.mxu0 0.0
    %1702 = vmatprep.subr.mxu0 0.0
    %1703 = vmatpush1.msra.mxu0 0.0
    %1704 = vmatprep.subr.mxu0 0.0
    %1705 = vmatpush1.msra.mxu0 0.0
    %1706 = vmatprep.subr.mxu0 0.0
    %1707 = vmatpush1.msra.mxu0 0.0
    %1708 = vmatprep.mubr.f32.mxu0 0.0
    %1709 = vmatmul.mubr.f32.gmra.mrb[0].mxu0 %v1638
    %v1710 = vpop.f32.mrb[0].mxu0
    %v1711 = vadd.f32 0.0, %v1710
    %v1712 = vpop.f32.mrb[0].mxu0
    %v1713 = vadd.f32 0.0, %v1712
    %1714 = vdwg.mxu0
    %1715 = vmatprep.subr.mxu0 %v1245
    %1716 = vmatpush1.msra.mxu0 %v1244
    %1717 = vmatprep.subr.mxu0 %v1249
    %1718 = vmatpush1.msra.mxu0 %v1248
    %1719 = vmatprep.subr.mxu0 %v1253
    %1720 = vmatpush1.msra.mxu0 %v1252
    %1721 = vmatprep.subr.mxu0 %v1257
    %1722 = vmatpush1.msra.mxu0 %v1256
    %1723 = vmatprep.subr.mxu0 %v1261
    %1724 = vmatpush1.msra.mxu0 %v1260
    %1725 = vmatprep.subr.mxu0 %v1265
    %1726 = vmatpush1.msra.mxu0 %v1264
    %1727 = vmatprep.subr.mxu0 %v1269
    %1728 = vmatpush1.msra.mxu0 %v1268
    %1729 = vmatprep.subr.mxu0 %v1273
    %1730 = vmatpush1.msra.mxu0 %v1272
    %1731 = vmatprep.subr.mxu0 %v1277
    %1732 = vmatpush1.msra.mxu0 %v1276
    %1733 = vmatprep.subr.mxu0 %v1281
    %1734 = vmatpush1.msra.mxu0 %v1280
    %1735 = vmatprep.subr.mxu0 %v1285
    %1736 = vmatpush1.msra.mxu0 %v1284
    %1737 = vmatprep.subr.mxu0 %v1289
    %1738 = vmatpush1.msra.mxu0 %v1288
    %1739 = vmatprep.subr.mxu0 %v1293
    %1740 = vmatpush1.msra.mxu0 %v1292
    %1741 = vmatprep.subr.mxu0 %v1297
    %1742 = vmatpush1.msra.mxu0 %v1296
    %1743 = vmatprep.subr.mxu0 %v1301
    %1744 = vmatpush1.msra.mxu0 %v1300
    %1745 = vmatprep.subr.mxu0 %v1305
    %1746 = vmatpush1.msra.mxu0 %v1304
    %1747 = vmatprep.subr.mxu0 0.0
    %1748 = vmatpush1.msra.mxu0 0.0
    %1749 = vmatprep.subr.mxu0 0.0
    %1750 = vmatpush1.msra.mxu0 0.0
    %1751 = vmatprep.subr.mxu0 0.0
    %1752 = vmatpush1.msra.mxu0 0.0
    %1753 = vmatprep.subr.mxu0 0.0
    %1754 = vmatpush1.msra.mxu0 0.0
    %1755 = vmatprep.subr.mxu0 0.0
    %1756 = vmatpush1.msra.mxu0 0.0
    %1757 = vmatprep.subr.mxu0 0.0
    %1758 = vmatpush1.msra.mxu0 0.0
    %1759 = vmatprep.subr.mxu0 0.0
    %1760 = vmatpush1.msra.mxu0 0.0
    %1761 = vmatprep.subr.mxu0 0.0
    %1762 = vmatpush1.msra.mxu0 0.0
    %1763 = vmatprep.subr.mxu0 0.0
    %1764 = vmatpush1.msra.mxu0 0.0
    %1765 = vmatprep.subr.mxu0 0.0
    %1766 = vmatpush1.msra.mxu0 0.0
    %1767 = vmatprep.subr.mxu0 0.0
    %1768 = vmatpush1.msra.mxu0 0.0
    %1769 = vmatprep.subr.mxu0 0.0
    %1770 = vmatpush1.msra.mxu0 0.0
    %1771 = vmatprep.subr.mxu0 0.0
    %1772 = vmatpush1.msra.mxu0 0.0
    %1773 = vmatprep.subr.mxu0 0.0
    %1774 = vmatpush1.msra.mxu0 0.0
    %1775 = vmatprep.subr.mxu0 0.0
    %1776 = vmatpush1.msra.mxu0 0.0
    %1777 = vmatprep.subr.mxu0 0.0
    %1778 = vmatpush1.msra.mxu0 0.0
    %1779 = vmatprep.mubr.f32.mxu0 0.0
    %1780 = vmatmul.mubr.f32.gmra.mrb[0].mxu0 %v1638
    %v1781 = vpop.f32.mrb[0].mxu0
    %v1782 = vadd.f32 0.0, %v1781
    %v1783 = vpop.f32.mrb[0].mxu0
    %v1784 = vadd.f32 0.0, %v1783
    %1785 = vdwg.mxu0
    %v1786 = vadd.f32 %v1640, %v1711
    %v1787 = vadd.f32 %v1641, %v1713
    %v1788 = vadd.f32 %v1642, %v1782
    %v1789 = vadd.f32 %v1643, %v1784
    %v1790 = vmul.f32 %v1786, 0.5
    %v1791 = vmul.f32 %v1787, 0.5
    %v1792 = vmul.f32 %v1788, 0.5
    %v1793 = vtanh.pop %v1790
    %v1794 = vtanh.pop %v1791
    %v1795 = vtanh.pop %v1792
    %v1796 = vadd.f32 %v1793, 1.0
    %v1797 = vadd.f32 %v1794, 1.0
    %v1798 = vadd.f32 %v1795, 1.0
    %v1799 = vmul.f32 %v1796, 0.5
    %v1800 = vmul.f32 %v1797, 0.5
    %v1801 = vmul.f32 %v1798, 0.5
    %v1802 = vtanh.pop %v1789
    %v1803 = vmul.f32 %v1800, %v1636
    %v1804 = vmul.f32 %v1799, %v1802
    %v1805 = vadd.f32 %v1803, %v1804
    %v1806 = vtanh.pop %v1805
    %v1807 = vmul.f32 %v1801, %v1806
    %s1808 = scalar_lea.vmem [#allocation2], 96
    %v1809 = vld [vmem:[%s1808] sm:$0xff]
    %v1810 = vld [vmem:[%s1808 + $0x8] sm:$0xff]
    %v1811 = vld [vmem:[%s1808 + $0x10] sm:$0xff]
    %v1812 = vld [vmem:[%s1808 + $0x18] sm:$0xff]
    %1813 = vmatprep.subr.mxu0 %v1243
    %1814 = vmatpush1.msra.mxu0 %v1242
    %1815 = vmatprep.subr.mxu0 %v1247
    %1816 = vmatpush1.msra.mxu0 %v1246
    %1817 = vmatprep.subr.mxu0 %v1251
    %1818 = vmatpush1.msra.mxu0 %v1250
    %1819 = vmatprep.subr.mxu0 %v1255
    %1820 = vmatpush1.msra.mxu0 %v1254
    %1821 = vmatprep.subr.mxu0 %v1259
    %1822 = vmatpush1.msra.mxu0 %v1258
    %1823 = vmatprep.subr.mxu0 %v1263
    %1824 = vmatpush1.msra.mxu0 %v1262
    %1825 = vmatprep.subr.mxu0 %v1267
    %1826 = vmatpush1.msra.mxu0 %v1266
    %1827 = vmatprep.subr.mxu0 %v1271
    %1828 = vmatpush1.msra.mxu0 %v1270
    %1829 = vmatprep.subr.mxu0 %v1275
    %1830 = vmatpush1.msra.mxu0 %v1274
    %1831 = vmatprep.subr.mxu0 %v1279
    %1832 = vmatpush1.msra.mxu0 %v1278
    %1833 = vmatprep.subr.mxu0 %v1283
    %1834 = vmatpush1.msra.mxu0 %v1282
    %1835 = vmatprep.subr.mxu0 %v1287
    %1836 = vmatpush1.msra.mxu0 %v1286
    %1837 = vmatprep.subr.mxu0 %v1291
    %1838 = vmatpush1.msra.mxu0 %v1290
    %1839 = vmatprep.subr.mxu0 %v1295
    %1840 = vmatpush1.msra.mxu0 %v1294
    %1841 = vmatprep.subr.mxu0 %v1299
    %1842 = vmatpush1.msra.mxu0 %v1298
    %1843 = vmatprep.subr.mxu0 %v1303
    %1844 = vmatpush1.msra.mxu0 %v1302
    %1845 = vmatprep.subr.mxu0 0.0
    %1846 = vmatpush1.msra.mxu0 0.0
    %1847 = vmatprep.subr.mxu0 0.0
    %1848 = vmatpush1.msra.mxu0 0.0
    %1849 = vmatprep.subr.mxu0 0.0
    %1850 = vmatpush1.msra.mxu0 0.0
    %1851 = vmatprep.subr.mxu0 0.0
    %1852 = vmatpush1.msra.mxu0 0.0
    %1853 = vmatprep.subr.mxu0 0.0
    %1854 = vmatpush1.msra.mxu0 0.0
    %1855 = vmatprep.subr.mxu0 0.0
    %1856 = vmatpush1.msra.mxu0 0.0
    %1857 = vmatprep.subr.mxu0 0.0
    %1858 = vmatpush1.msra.mxu0 0.0
    %1859 = vmatprep.subr.mxu0 0.0
    %1860 = vmatpush1.msra.mxu0 0.0
    %1861 = vmatprep.subr.mxu0 0.0
    %1862 = vmatpush1.msra.mxu0 0.0
    %1863 = vmatprep.subr.mxu0 0.0
    %1864 = vmatpush1.msra.mxu0 0.0
    %1865 = vmatprep.subr.mxu0 0.0
    %1866 = vmatpush1.msra.mxu0 0.0
    %1867 = vmatprep.subr.mxu0 0.0
    %1868 = vmatpush1.msra.mxu0 0.0
    %1869 = vmatprep.subr.mxu0 0.0
    %1870 = vmatpush1.msra.mxu0 0.0
    %1871 = vmatprep.subr.mxu0 0.0
    %1872 = vmatpush1.msra.mxu0 0.0
    %1873 = vmatprep.subr.mxu0 0.0
    %1874 = vmatpush1.msra.mxu0 0.0
    %1875 = vmatprep.subr.mxu0 0.0
    %1876 = vmatpush1.msra.mxu0 0.0
    %1877 = vmatprep.mubr.f32.mxu0 0.0
    %1878 = vmatmul.mubr.f32.gmra.mrb[0].mxu0 %v1807
    %v1879 = vpop.f32.mrb[0].mxu0
    %v1880 = vadd.f32 0.0, %v1879
    %v1881 = vpop.f32.mrb[0].mxu0
    %v1882 = vadd.f32 0.0, %v1881
    %1883 = vdwg.mxu0
    %1884 = vmatprep.subr.mxu0 %v1245
    %1885 = vmatpush1.msra.mxu0 %v1244
    %1886 = vmatprep.subr.mxu0 %v1249
    %1887 = vmatpush1.msra.mxu0 %v1248
    %1888 = vmatprep.subr.mxu0 %v1253
    %1889 = vmatpush1.msra.mxu0 %v1252
    %1890 = vmatprep.subr.mxu0 %v1257
    %1891 = vmatpush1.msra.mxu0 %v1256
    %1892 = vmatprep.subr.mxu0 %v1261
    %1893 = vmatpush1.msra.mxu0 %v1260
    %1894 = vmatprep.subr.mxu0 %v1265
    %1895 = vmatpush1.msra.mxu0 %v1264
    %1896 = vmatprep.subr.mxu0 %v1269
    %1897 = vmatpush1.msra.mxu0 %v1268
    %1898 = vmatprep.subr.mxu0 %v1273
    %1899 = vmatpush1.msra.mxu0 %v1272
    %1900 = vmatprep.subr.mxu0 %v1277
    %1901 = vmatpush1.msra.mxu0 %v1276
    %1902 = vmatprep.subr.mxu0 %v1281
    %1903 = vmatpush1.msra.mxu0 %v1280
    %1904 = vmatprep.subr.mxu0 %v1285
    %1905 = vmatpush1.msra.mxu0 %v1284
    %1906 = vmatprep.subr.mxu0 %v1289
    %1907 = vmatpush1.msra.mxu0 %v1288
    %1908 = vmatprep.subr.mxu0 %v1293
    %1909 = vmatpush1.msra.mxu0 %v1292
    %1910 = vmatprep.subr.mxu0 %v1297
    %1911 = vmatpush1.msra.mxu0 %v1296
    %1912 = vmatprep.subr.mxu0 %v1301
    %1913 = vmatpush1.msra.mxu0 %v1300
    %1914 = vmatprep.subr.mxu0 %v1305
    %1915 = vmatpush1.msra.mxu0 %v1304
    %1916 = vmatprep.subr.mxu0 0.0
    %1917 = vmatpush1.msra.mxu0 0.0
    %1918 = vmatprep.subr.mxu0 0.0
    %1919 = vmatpush1.msra.mxu0 0.0
    %1920 = vmatprep.subr.mxu0 0.0
    %1921 = vmatpush1.msra.mxu0 0.0
    %1922 = vmatprep.subr.mxu0 0.0
    %1923 = vmatpush1.msra.mxu0 0.0
    %1924 = vmatprep.subr.mxu0 0.0
    %1925 = vmatpush1.msra.mxu0 0.0
    %1926 = vmatprep.subr.mxu0 0.0
    %1927 = vmatpush1.msra.mxu0 0.0
    %1928 = vmatprep.subr.mxu0 0.0
    %1929 = vmatpush1.msra.mxu0 0.0
    %1930 = vmatprep.subr.mxu0 0.0
    %1931 = vmatpush1.msra.mxu0 0.0
    %1932 = vmatprep.subr.mxu0 0.0
    %1933 = vmatpush1.msra.mxu0 0.0
    %1934 = vmatprep.subr.mxu0 0.0
    %1935 = vmatpush1.msra.mxu0 0.0
    %1936 = vmatprep.subr.mxu0 0.0
    %1937 = vmatpush1.msra.mxu0 0.0
    %1938 = vmatprep.subr.mxu0 0.0
    %1939 = vmatpush1.msra.mxu0 0.0
    %1940 = vmatprep.subr.mxu0 0.0
    %1941 = vmatpush1.msra.mxu0 0.0
    %1942 = vmatprep.subr.mxu0 0.0
    %1943 = vmatpush1.msra.mxu0 0.0
    %1944 = vmatprep.subr.mxu0 0.0
    %1945 = vmatpush1.msra.mxu0 0.0
    %1946 = vmatprep.subr.mxu0 0.0
    %1947 = vmatpush1.msra.mxu0 0.0
    %1948 = vmatprep.mubr.f32.mxu0 0.0
    %1949 = vmatmul.mubr.f32.gmra.mrb[0].mxu0 %v1807
    %v1950 = vpop.f32.mrb[0].mxu0
    %v1951 = vadd.f32 0.0, %v1950
    %v1952 = vpop.f32.mrb[0].mxu0
    %v1953 = vadd.f32 0.0, %v1952
    %1954 = vdwg.mxu0
    %v1955 = vadd.f32 %v1809, %v1880
    %v1956 = vadd.f32 %v1810, %v1882
    %v1957 = vadd.f32 %v1811, %v1951
    %v1958 = vadd.f32 %v1812, %v1953
    %v1959 = vmul.f32 %v1955, 0.5
    %v1960 = vmul.f32 %v1956, 0.5
    %v1961 = vmul.f32 %v1957, 0.5
    %v1962 = vtanh.pop %v1959
    %v1963 = vtanh.pop %v1960
    %v1964 = vtanh.pop %v1961
    %v1965 = vadd.f32 %v1962, 1.0
    %v1966 = vadd.f32 %v1963, 1.0
    %v1967 = vadd.f32 %v1964, 1.0
    %v1968 = vmul.f32 %v1965, 0.5
    %v1969 = vmul.f32 %v1966, 0.5
    %v1970 = vmul.f32 %v1967, 0.5
    %v1971 = vtanh.pop %v1958
    %v1972 = vmul.f32 %v1969, %v1805
    %v1973 = vmul.f32 %v1968, %v1971
    %v1974 = vadd.f32 %v1972, %v1973
    %v1975 = vtanh.pop %v1974
    %v1976 = vmul.f32 %v1970, %v1975
    %s1977 = scalar_lea.vmem [#allocation2], 128
    %v1978 = vld [vmem:[%s1977] sm:$0xff]
    %v1979 = vld [vmem:[%s1977 + $0x8] sm:$0xff]
    %v1980 = vld [vmem:[%s1977 + $0x10] sm:$0xff]
    %v1981 = vld [vmem:[%s1977 + $0x18] sm:$0xff]
    %1982 = vmatprep.subr.mxu0 %v1243
    %1983 = vmatpush1.msra.mxu0 %v1242
    %1984 = vmatprep.subr.mxu0 %v1247
    %1985 = vmatpush1.msra.mxu0 %v1246
    %1986 = vmatprep.subr.mxu0 %v1251
    %1987 = vmatpush1.msra.mxu0 %v1250
    %1988 = vmatprep.subr.mxu0 %v1255
    %1989 = vmatpush1.msra.mxu0 %v1254
    %1990 = vmatprep.subr.mxu0 %v1259
    %1991 = vmatpush1.msra.mxu0 %v1258
    %1992 = vmatprep.subr.mxu0 %v1263
    %1993 = vmatpush1.msra.mxu0 %v1262
    %1994 = vmatprep.subr.mxu0 %v1267
    %1995 = vmatpush1.msra.mxu0 %v1266
    %1996 = vmatprep.subr.mxu0 %v1271
    %1997 = vmatpush1.msra.mxu0 %v1270
    %1998 = vmatprep.subr.mxu0 %v1275
    %1999 = vmatpush1.msra.mxu0 %v1274
    %2000 = vmatprep.subr.mxu0 %v1279
    %2001 = vmatpush1.msra.mxu0 %v1278
    %2002 = vmatprep.subr.mxu0 %v1283
    %2003 = vmatpush1.msra.mxu0 %v1282
    %2004 = vmatprep.subr.mxu0 %v1287
    %2005 = vmatpush1.msra.mxu0 %v1286
    %2006 = vmatprep.subr.mxu0 %v1291
    %2007 = vmatpush1.msra.mxu0 %v1290
    %2008 = vmatprep.subr.mxu0 %v1295
    %2009 = vmatpush1.msra.mxu0 %v1294
    %2010 = vmatprep.subr.mxu0 %v1299
    %2011 = vmatpush1.msra.mxu0 %v1298
    %2012 = vmatprep.subr.mxu0 %v1303
    %2013 = vmatpush1.msra.mxu0 %v1302
    %2014 = vmatprep.subr.mxu0 0.0
    %2015 = vmatpush1.msra.mxu0 0.0
    %2016 = vmatprep.subr.mxu0 0.0
    %2017 = vmatpush1.msra.mxu0 0.0
    %2018 = vmatprep.subr.mxu0 0.0
    %2019 = vmatpush1.msra.mxu0 0.0
    %2020 = vmatprep.subr.mxu0 0.0
    %2021 = vmatpush1.msra.mxu0 0.0
    %2022 = vmatprep.subr.mxu0 0.0
    %2023 = vmatpush1.msra.mxu0 0.0
    %2024 = vmatprep.subr.mxu0 0.0
    %2025 = vmatpush1.msra.mxu0 0.0
    %2026 = vmatprep.subr.mxu0 0.0
    %2027 = vmatpush1.msra.mxu0 0.0
    %2028 = vmatprep.subr.mxu0 0.0
    %2029 = vmatpush1.msra.mxu0 0.0
    %2030 = vmatprep.subr.mxu0 0.0
    %2031 = vmatpush1.msra.mxu0 0.0
    %2032 = vmatprep.subr.mxu0 0.0
    %2033 = vmatpush1.msra.mxu0 0.0
    %2034 = vmatprep.subr.mxu0 0.0
    %2035 = vmatpush1.msra.mxu0 0.0
    %2036 = vmatprep.subr.mxu0 0.0
    %2037 = vmatpush1.msra.mxu0 0.0
    %2038 = vmatprep.subr.mxu0 0.0
    %2039 = vmatpush1.msra.mxu0 0.0
    %2040 = vmatprep.subr.mxu0 0.0
    %2041 = vmatpush1.msra.mxu0 0.0
    %2042 = vmatprep.subr.mxu0 0.0
    %2043 = vmatpush1.msra.mxu0 0.0
    %2044 = vmatprep.subr.mxu0 0.0
    %2045 = vmatpush1.msra.mxu0 0.0
    %2046 = vmatprep.mubr.f32.mxu0 0.0
    %2047 = vmatmul.mubr.f32.gmra.mrb[0].mxu0 %v1976
    %v2048 = vpop.f32.mrb[0].mxu0
    %v2049 = vadd.f32 0.0, %v2048
    %v2050 = vpop.f32.mrb[0].mxu0
    %v2051 = vadd.f32 0.0, %v2050
    %2052 = vdwg.mxu0
    %2053 = vmatprep.subr.mxu0 %v1245
    %2054 = vmatpush1.msra.mxu0 %v1244
    %2055 = vmatprep.subr.mxu0 %v1249
    %2056 = vmatpush1.msra.mxu0 %v1248
    %2057 = vmatprep.subr.mxu0 %v1253
    %2058 = vmatpush1.msra.mxu0 %v1252
    %2059 = vmatprep.subr.mxu0 %v1257
    %2060 = vmatpush1.msra.mxu0 %v1256
    %2061 = vmatprep.subr.mxu0 %v1261
    %2062 = vmatpush1.msra.mxu0 %v1260
    %2063 = vmatprep.subr.mxu0 %v1265
    %2064 = vmatpush1.msra.mxu0 %v1264
    %2065 = vmatprep.subr.mxu0 %v1269
    %2066 = vmatpush1.msra.mxu0 %v1268
    %2067 = vmatprep.subr.mxu0 %v1273
    %2068 = vmatpush1.msra.mxu0 %v1272
    %2069 = vmatprep.subr.mxu0 %v1277
    %2070 = vmatpush1.msra.mxu0 %v1276
    %2071 = vmatprep.subr.mxu0 %v1281
    %2072 = vmatpush1.msra.mxu0 %v1280
    %2073 = vmatprep.subr.mxu0 %v1285
    %2074 = vmatpush1.msra.mxu0 %v1284
    %2075 = vmatprep.subr.mxu0 %v1289
    %2076 = vmatpush1.msra.mxu0 %v1288
    %2077 = vmatprep.subr.mxu0 %v1293
    %2078 = vmatpush1.msra.mxu0 %v1292
    %2079 = vmatprep.subr.mxu0 %v1297
    %2080 = vmatpush1.msra.mxu0 %v1296
    %2081 = vmatprep.subr.mxu0 %v1301
    %2082 = vmatpush1.msra.mxu0 %v1300
    %2083 = vmatprep.subr.mxu0 %v1305
    %2084 = vmatpush1.msra.mxu0 %v1304
    %2085 = vmatprep.subr.mxu0 0.0
    %2086 = vmatpush1.msra.mxu0 0.0
    %2087 = vmatprep.subr.mxu0 0.0
    %2088 = vmatpush1.msra.mxu0 0.0
    %2089 = vmatprep.subr.mxu0 0.0
    %2090 = vmatpush1.msra.mxu0 0.0
    %2091 = vmatprep.subr.mxu0 0.0
    %2092 = vmatpush1.msra.mxu0 0.0
    %2093 = vmatprep.subr.mxu0 0.0
    %2094 = vmatpush1.msra.mxu0 0.0
    %2095 = vmatprep.subr.mxu0 0.0
    %2096 = vmatpush1.msra.mxu0 0.0
    %2097 = vmatprep.subr.mxu0 0.0
    %2098 = vmatpush1.msra.mxu0 0.0
    %2099 = vmatprep.subr.mxu0 0.0
    %2100 = vmatpush1.msra.mxu0 0.0
    %2101 = vmatprep.subr.mxu0 0.0
    %2102 = vmatpush1.msra.mxu0 0.0
    %2103 = vmatprep.subr.mxu0 0.0
    %2104 = vmatpush1.msra.mxu0 0.0
    %2105 = vmatprep.subr.mxu0 0.0
    %2106 = vmatpush1.msra.mxu0 0.0
    %2107 = vmatprep.subr.mxu0 0.0
    %2108 = vmatpush1.msra.mxu0 0.0
    %2109 = vmatprep.subr.mxu0 0.0
    %2110 = vmatpush1.msra.mxu0 0.0
    %2111 = vmatprep.subr.mxu0 0.0
    %2112 = vmatpush1.msra.mxu0 0.0
    %2113 = vmatprep.subr.mxu0 0.0
    %2114 = vmatpush1.msra.mxu0 0.0
    %2115 = vmatprep.subr.mxu0 0.0
    %2116 = vmatpush1.msra.mxu0 0.0
    %2117 = vmatprep.mubr.f32.mxu0 0.0
    %2118 = vmatmul.mubr.f32.gmra.mrb[0].mxu0 %v1976
    %v2119 = vpop.f32.mrb[0].mxu0
    %v2120 = vadd.f32 0.0, %v2119
    %v2121 = vpop.f32.mrb[0].mxu0
    %v2122 = vadd.f32 0.0, %v2121
    %2123 = vdwg.mxu0
    %v2124 = vadd.f32 %v1978, %v2049
    %v2125 = vadd.f32 %v1979, %v2051
    %v2126 = vadd.f32 %v1980, %v2120
    %v2127 = vadd.f32 %v1981, %v2122
    %v2128 = vmul.f32 %v2124, 0.5
    %v2129 = vmul.f32 %v2125, 0.5
    %v2130 = vmul.f32 %v2126, 0.5
    %v2131 = vtanh.pop %v2128
    %v2132 = vtanh.pop %v2129
    %v2133 = vtanh.pop %v2130
    %v2134 = vadd.f32 %v2131, 1.0
    %v2135 = vadd.f32 %v2132, 1.0
    %v2136 = vadd.f32 %v2133, 1.0
    %v2137 = vmul.f32 %v2134, 0.5
    %v2138 = vmul.f32 %v2135, 0.5
    %v2139 = vmul.f32 %v2136, 0.5
    %v2140 = vtanh.pop %v2127
    %v2141 = vmul.f32 %v2138, %v1974
    %v2142 = vmul.f32 %v2137, %v2140
    %v2143 = vadd.f32 %v2141, %v2142
    %v2144 = vtanh.pop %v2143
    %v2145 = vmul.f32 %v2139, %v2144
    %s2146 = scalar_lea.vmem [#allocation2], 160
    %v2147 = vld [vmem:[%s2146] sm:$0xff]
    %v2148 = vld [vmem:[%s2146 + $0x8] sm:$0xff]
    %v2149 = vld [vmem:[%s2146 + $0x10] sm:$0xff]
    %v2150 = vld [vmem:[%s2146 + $0x18] sm:$0xff]
    %2151 = vmatprep.subr.mxu0 %v1243
    %2152 = vmatpush1.msra.mxu0 %v1242
    %2153 = vmatprep.subr.mxu0 %v1247
    %2154 = vmatpush1.msra.mxu0 %v1246
    %2155 = vmatprep.subr.mxu0 %v1251
    %2156 = vmatpush1.msra.mxu0 %v1250
    %2157 = vmatprep.subr.mxu0 %v1255
    %2158 = vmatpush1.msra.mxu0 %v1254
    %2159 = vmatprep.subr.mxu0 %v1259
    %2160 = vmatpush1.msra.mxu0 %v1258
    %2161 = vmatprep.subr.mxu0 %v1263
    %2162 = vmatpush1.msra.mxu0 %v1262
    %2163 = vmatprep.subr.mxu0 %v1267
    %2164 = vmatpush1.msra.mxu0 %v1266
    %2165 = vmatprep.subr.mxu0 %v1271
    %2166 = vmatpush1.msra.mxu0 %v1270
    %2167 = vmatprep.subr.mxu0 %v1275
    %2168 = vmatpush1.msra.mxu0 %v1274
    %2169 = vmatprep.subr.mxu0 %v1279
    %2170 = vmatpush1.msra.mxu0 %v1278
    %2171 = vmatprep.subr.mxu0 %v1283
    %2172 = vmatpush1.msra.mxu0 %v1282
    %2173 = vmatprep.subr.mxu0 %v1287
    %2174 = vmatpush1.msra.mxu0 %v1286
    %2175 = vmatprep.subr.mxu0 %v1291
    %2176 = vmatpush1.msra.mxu0 %v1290
    %2177 = vmatprep.subr.mxu0 %v1295
    %2178 = vmatpush1.msra.mxu0 %v1294
    %2179 = vmatprep.subr.mxu0 %v1299
    %2180 = vmatpush1.msra.mxu0 %v1298
    %2181 = vmatprep.subr.mxu0 %v1303
    %2182 = vmatpush1.msra.mxu0 %v1302
    %2183 = vmatprep.subr.mxu0 0.0
    %2184 = vmatpush1.msra.mxu0 0.0
    %2185 = vmatprep.subr.mxu0 0.0
    %2186 = vmatpush1.msra.mxu0 0.0
    %2187 = vmatprep.subr.mxu0 0.0
    %2188 = vmatpush1.msra.mxu0 0.0
    %2189 = vmatprep.subr.mxu0 0.0
    %2190 = vmatpush1.msra.mxu0 0.0
    %2191 = vmatprep.subr.mxu0 0.0
    %2192 = vmatpush1.msra.mxu0 0.0
    %2193 = vmatprep.subr.mxu0 0.0
    %2194 = vmatpush1.msra.mxu0 0.0
    %2195 = vmatprep.subr.mxu0 0.0
    %2196 = vmatpush1.msra.mxu0 0.0
    %2197 = vmatprep.subr.mxu0 0.0
    %2198 = vmatpush1.msra.mxu0 0.0
    %2199 = vmatprep.subr.mxu0 0.0
    %2200 = vmatpush1.msra.mxu0 0.0
    %2201 = vmatprep.subr.mxu0 0.0
    %2202 = vmatpush1.msra.mxu0 0.0
    %2203 = vmatprep.subr.mxu0 0.0
    %2204 = vmatpush1.msra.mxu0 0.0
    %2205 = vmatprep.subr.mxu0 0.0
    %2206 = vmatpush1.msra.mxu0 0.0
    %2207 = vmatprep.subr.mxu0 0.0
    %2208 = vmatpush1.msra.mxu0 0.0
    %2209 = vmatprep.subr.mxu0 0.0
    %2210 = vmatpush1.msra.mxu0 0.0
    %2211 = vmatprep.subr.mxu0 0.0
    %2212 = vmatpush1.msra.mxu0 0.0
    %2213 = vmatprep.subr.mxu0 0.0
    %2214 = vmatpush1.msra.mxu0 0.0
    %2215 = vmatprep.mubr.f32.mxu0 0.0
    %2216 = vmatmul.mubr.f32.gmra.mrb[0].mxu0 %v2145
    %v2217 = vpop.f32.mrb[0].mxu0
    %v2218 = vadd.f32 0.0, %v2217
    %v2219 = vpop.f32.mrb[0].mxu0
    %v2220 = vadd.f32 0.0, %v2219
    %2221 = vdwg.mxu0
    %2222 = vmatprep.subr.mxu0 %v1245
    %2223 = vmatpush1.msra.mxu0 %v1244
    %2224 = vmatprep.subr.mxu0 %v1249
    %2225 = vmatpush1.msra.mxu0 %v1248
    %2226 = vmatprep.subr.mxu0 %v1253
    %2227 = vmatpush1.msra.mxu0 %v1252
    %2228 = vmatprep.subr.mxu0 %v1257
    %2229 = vmatpush1.msra.mxu0 %v1256
    %2230 = vmatprep.subr.mxu0 %v1261
    %2231 = vmatpush1.msra.mxu0 %v1260
    %2232 = vmatprep.subr.mxu0 %v1265
    %2233 = vmatpush1.msra.mxu0 %v1264
    %2234 = vmatprep.subr.mxu0 %v1269
    %2235 = vmatpush1.msra.mxu0 %v1268
    %2236 = vmatprep.subr.mxu0 %v1273
    %2237 = vmatpush1.msra.mxu0 %v1272
    %2238 = vmatprep.subr.mxu0 %v1277
    %2239 = vmatpush1.msra.mxu0 %v1276
    %2240 = vmatprep.subr.mxu0 %v1281
    %2241 = vmatpush1.msra.mxu0 %v1280
    %2242 = vmatprep.subr.mxu0 %v1285
    %2243 = vmatpush1.msra.mxu0 %v1284
    %2244 = vmatprep.subr.mxu0 %v1289
    %2245 = vmatpush1.msra.mxu0 %v1288
    %2246 = vmatprep.subr.mxu0 %v1293
    %2247 = vmatpush1.msra.mxu0 %v1292
    %2248 = vmatprep.subr.mxu0 %v1297
    %2249 = vmatpush1.msra.mxu0 %v1296
    %2250 = vmatprep.subr.mxu0 %v1301
    %2251 = vmatpush1.msra.mxu0 %v1300
    %2252 = vmatprep.subr.mxu0 %v1305
    %2253 = vmatpush1.msra.mxu0 %v1304
    %2254 = vmatprep.subr.mxu0 0.0
    %2255 = vmatpush1.msra.mxu0 0.0
    %2256 = vmatprep.subr.mxu0 0.0
    %2257 = vmatpush1.msra.mxu0 0.0
    %2258 = vmatprep.subr.mxu0 0.0
    %2259 = vmatpush1.msra.mxu0 0.0
    %2260 = vmatprep.subr.mxu0 0.0
    %2261 = vmatpush1.msra.mxu0 0.0
    %2262 = vmatprep.subr.mxu0 0.0
    %2263 = vmatpush1.msra.mxu0 0.0
    %2264 = vmatprep.subr.mxu0 0.0
    %2265 = vmatpush1.msra.mxu0 0.0
    %2266 = vmatprep.subr.mxu0 0.0
    %2267 = vmatpush1.msra.mxu0 0.0
    %2268 = vmatprep.subr.mxu0 0.0
    %2269 = vmatpush1.msra.mxu0 0.0
    %2270 = vmatprep.subr.mxu0 0.0
    %2271 = vmatpush1.msra.mxu0 0.0
    %2272 = vmatprep.subr.mxu0 0.0
    %2273 = vmatpush1.msra.mxu0 0.0
    %2274 = vmatprep.subr.mxu0 0.0
    %2275 = vmatpush1.msra.mxu0 0.0
    %2276 = vmatprep.subr.mxu0 0.0
    %2277 = vmatpush1.msra.mxu0 0.0
    %2278 = vmatprep.subr.mxu0 0.0
    %2279 = vmatpush1.msra.mxu0 0.0
    %2280 = vmatprep.subr.mxu0 0.0
    %2281 = vmatpush1.msra.mxu0 0.0
    %2282 = vmatprep.subr.mxu0 0.0
    %2283 = vmatpush1.msra.mxu0 0.0
    %2284 = vmatprep.subr.mxu0 0.0
    %2285 = vmatpush1.msra.mxu0 0.0
    %2286 = vmatprep.mubr.f32.mxu0 0.0
    %2287 = vmatmul.mubr.f32.gmra.mrb[0].mxu0 %v2145
    %v2288 = vpop.f32.mrb[0].mxu0
    %v2289 = vadd.f32 0.0, %v2288
    %v2290 = vpop.f32.mrb[0].mxu0
    %v2291 = vadd.f32 0.0, %v2290
    %2292 = vdwg.mxu0
    %v2293 = vadd.f32 %v2147, %v2218
    %v2294 = vadd.f32 %v2148, %v2220
    %v2295 = vadd.f32 %v2149, %v2289
    %v2296 = vadd.f32 %v2150, %v2291
    %v2297 = vmul.f32 %v2293, 0.5
    %v2298 = vmul.f32 %v2294, 0.5
    %v2299 = vmul.f32 %v2295, 0.5
    %v2300 = vtanh.pop %v2297
    %v2301 = vtanh.pop %v2298
    %v2302 = vtanh.pop %v2299
    %v2303 = vadd.f32 %v2300, 1.0
    %v2304 = vadd.f32 %v2301, 1.0
    %v2305 = vadd.f32 %v2302, 1.0
    %v2306 = vmul.f32 %v2303, 0.5
    %v2307 = vmul.f32 %v2304, 0.5
    %v2308 = vmul.f32 %v2305, 0.5
    %v2309 = vtanh.pop %v2296
    %v2310 = vmul.f32 %v2307, %v2143
    %v2311 = vmul.f32 %v2306, %v2309
    %v2312 = vadd.f32 %v2310, %v2311
    %v2313 = vtanh.pop %v2312
    %v2314 = vmul.f32 %v2308, %v2313
    %s2315 = scalar_lea.vmem [#allocation2], 192
    %v2316 = vld [vmem:[%s2315] sm:$0xff]
    %v2317 = vld [vmem:[%s2315 + $0x8] sm:$0xff]
    %v2318 = vld [vmem:[%s2315 + $0x10] sm:$0xff]
    %v2319 = vld [vmem:[%s2315 + $0x18] sm:$0xff]
    %2320 = vmatprep.subr.mxu0 %v1243
    %2321 = vmatpush1.msra.mxu0 %v1242
    %2322 = vmatprep.subr.mxu0 %v1247
    %2323 = vmatpush1.msra.mxu0 %v1246
    %2324 = vmatprep.subr.mxu0 %v1251
    %2325 = vmatpush1.msra.mxu0 %v1250
    %2326 = vmatprep.subr.mxu0 %v1255
    %2327 = vmatpush1.msra.mxu0 %v1254
    %2328 = vmatprep.subr.mxu0 %v1259
    %2329 = vmatpush1.msra.mxu0 %v1258
    %2330 = vmatprep.subr.mxu0 %v1263
    %2331 = vmatpush1.msra.mxu0 %v1262
    %2332 = vmatprep.subr.mxu0 %v1267
    %2333 = vmatpush1.msra.mxu0 %v1266
    %2334 = vmatprep.subr.mxu0 %v1271
    %2335 = vmatpush1.msra.mxu0 %v1270
    %2336 = vmatprep.subr.mxu0 %v1275
    %2337 = vmatpush1.msra.mxu0 %v1274
    %2338 = vmatprep.subr.mxu0 %v1279
    %2339 = vmatpush1.msra.mxu0 %v1278
    %2340 = vmatprep.subr.mxu0 %v1283
    %2341 = vmatpush1.msra.mxu0 %v1282
    %2342 = vmatprep.subr.mxu0 %v1287
    %2343 = vmatpush1.msra.mxu0 %v1286
    %2344 = vmatprep.subr.mxu0 %v1291
    %2345 = vmatpush1.msra.mxu0 %v1290
    %2346 = vmatprep.subr.mxu0 %v1295
    %2347 = vmatpush1.msra.mxu0 %v1294
    %2348 = vmatprep.subr.mxu0 %v1299
    %2349 = vmatpush1.msra.mxu0 %v1298
    %2350 = vmatprep.subr.mxu0 %v1303
    %2351 = vmatpush1.msra.mxu0 %v1302
    %2352 = vmatprep.subr.mxu0 0.0
    %2353 = vmatpush1.msra.mxu0 0.0
    %2354 = vmatprep.subr.mxu0 0.0
    %2355 = vmatpush1.msra.mxu0 0.0
    %2356 = vmatprep.subr.mxu0 0.0
    %2357 = vmatpush1.msra.mxu0 0.0
    %2358 = vmatprep.subr.mxu0 0.0
    %2359 = vmatpush1.msra.mxu0 0.0
    %2360 = vmatprep.subr.mxu0 0.0
    %2361 = vmatpush1.msra.mxu0 0.0
    %2362 = vmatprep.subr.mxu0 0.0
    %2363 = vmatpush1.msra.mxu0 0.0
    %2364 = vmatprep.subr.mxu0 0.0
    %2365 = vmatpush1.msra.mxu0 0.0
    %2366 = vmatprep.subr.mxu0 0.0
    %2367 = vmatpush1.msra.mxu0 0.0
    %2368 = vmatprep.subr.mxu0 0.0
    %2369 = vmatpush1.msra.mxu0 0.0
    %2370 = vmatprep.subr.mxu0 0.0
    %2371 = vmatpush1.msra.mxu0 0.0
    %2372 = vmatprep.subr.mxu0 0.0
    %2373 = vmatpush1.msra.mxu0 0.0
    %2374 = vmatprep.subr.mxu0 0.0
    %2375 = vmatpush1.msra.mxu0 0.0
    %2376 = vmatprep.subr.mxu0 0.0
    %2377 = vmatpush1.msra.mxu0 0.0
    %2378 = vmatprep.subr.mxu0 0.0
    %2379 = vmatpush1.msra.mxu0 0.0
    %2380 = vmatprep.subr.mxu0 0.0
    %2381 = vmatpush1.msra.mxu0 0.0
    %2382 = vmatprep.subr.mxu0 0.0
    %2383 = vmatpush1.msra.mxu0 0.0
    %2384 = vmatprep.mubr.f32.mxu0 0.0
    %2385 = vmatmul.mubr.f32.gmra.mrb[0].mxu0 %v2314
    %v2386 = vpop.f32.mrb[0].mxu0
    %v2387 = vadd.f32 0.0, %v2386
    %v2388 = vpop.f32.mrb[0].mxu0
    %v2389 = vadd.f32 0.0, %v2388
    %2390 = vdwg.mxu0
    %2391 = vmatprep.subr.mxu0 %v1245
    %2392 = vmatpush1.msra.mxu0 %v1244
    %2393 = vmatprep.subr.mxu0 %v1249
    %2394 = vmatpush1.msra.mxu0 %v1248
    %2395 = vmatprep.subr.mxu0 %v1253
    %2396 = vmatpush1.msra.mxu0 %v1252
    %2397 = vmatprep.subr.mxu0 %v1257
    %2398 = vmatpush1.msra.mxu0 %v1256
    %2399 = vmatprep.subr.mxu0 %v1261
    %2400 = vmatpush1.msra.mxu0 %v1260
    %2401 = vmatprep.subr.mxu0 %v1265
    %2402 = vmatpush1.msra.mxu0 %v1264
    %2403 = vmatprep.subr.mxu0 %v1269
    %2404 = vmatpush1.msra.mxu0 %v1268
    %2405 = vmatprep.subr.mxu0 %v1273
    %2406 = vmatpush1.msra.mxu0 %v1272
    %2407 = vmatprep.subr.mxu0 %v1277
    %2408 = vmatpush1.msra.mxu0 %v1276
    %2409 = vmatprep.subr.mxu0 %v1281
    %2410 = vmatpush1.msra.mxu0 %v1280
    %2411 = vmatprep.subr.mxu0 %v1285
    %2412 = vmatpush1.msra.mxu0 %v1284
    %2413 = vmatprep.subr.mxu0 %v1289
    %2414 = vmatpush1.msra.mxu0 %v1288
    %2415 = vmatprep.subr.mxu0 %v1293
    %2416 = vmatpush1.msra.mxu0 %v1292
    %2417 = vmatprep.subr.mxu0 %v1297
    %2418 = vmatpush1.msra.mxu0 %v1296
    %2419 = vmatprep.subr.mxu0 %v1301
    %2420 = vmatpush1.msra.mxu0 %v1300
    %2421 = vmatprep.subr.mxu0 %v1305
    %2422 = vmatpush1.msra.mxu0 %v1304
    %2423 = vmatprep.subr.mxu0 0.0
    %2424 = vmatpush1.msra.mxu0 0.0
    %2425 = vmatprep.subr.mxu0 0.0
    %2426 = vmatpush1.msra.mxu0 0.0
    %2427 = vmatprep.subr.mxu0 0.0
    %2428 = vmatpush1.msra.mxu0 0.0
    %2429 = vmatprep.subr.mxu0 0.0
    %2430 = vmatpush1.msra.mxu0 0.0
    %2431 = vmatprep.subr.mxu0 0.0
    %2432 = vmatpush1.msra.mxu0 0.0
    %2433 = vmatprep.subr.mxu0 0.0
    %2434 = vmatpush1.msra.mxu0 0.0
    %2435 = vmatprep.subr.mxu0 0.0
    %2436 = vmatpush1.msra.mxu0 0.0
    %2437 = vmatprep.subr.mxu0 0.0
    %2438 = vmatpush1.msra.mxu0 0.0
    %2439 = vmatprep.subr.mxu0 0.0
    %2440 = vmatpush1.msra.mxu0 0.0
    %2441 = vmatprep.subr.mxu0 0.0
    %2442 = vmatpush1.msra.mxu0 0.0
    %2443 = vmatprep.subr.mxu0 0.0
    %2444 = vmatpush1.msra.mxu0 0.0
    %2445 = vmatprep.subr.mxu0 0.0
    %2446 = vmatpush1.msra.mxu0 0.0
    %2447 = vmatprep.subr.mxu0 0.0
    %2448 = vmatpush1.msra.mxu0 0.0
    %2449 = vmatprep.subr.mxu0 0.0
    %2450 = vmatpush1.msra.mxu0 0.0
    %2451 = vmatprep.subr.mxu0 0.0
    %2452 = vmatpush1.msra.mxu0 0.0
    %2453 = vmatprep.subr.mxu0 0.0
    %2454 = vmatpush1.msra.mxu0 0.0
    %2455 = vmatprep.mubr.f32.mxu0 0.0
    %2456 = vmatmul.mubr.f32.gmra.mrb[0].mxu0 %v2314
    %v2457 = vpop.f32.mrb[0].mxu0
    %v2458 = vadd.f32 0.0, %v2457
    %v2459 = vpop.f32.mrb[0].mxu0
    %v2460 = vadd.f32 0.0, %v2459
    %2461 = vdwg.mxu0
    %v2462 = vadd.f32 %v2316, %v2387
    %v2463 = vadd.f32 %v2317, %v2389
    %v2464 = vadd.f32 %v2318, %v2458
    %v2465 = vadd.f32 %v2319, %v2460
    %v2466 = vmul.f32 %v2462, 0.5
    %v2467 = vmul.f32 %v2463, 0.5
    %v2468 = vmul.f32 %v2464, 0.5
    %v2469 = vtanh.pop %v2466
    %v2470 = vtanh.pop %v2467
    %v2471 = vtanh.pop %v2468
    %v2472 = vadd.f32 %v2469, 1.0
    %v2473 = vadd.f32 %v2470, 1.0
    %v2474 = vadd.f32 %v2471, 1.0
    %v2475 = vmul.f32 %v2472, 0.5
    %v2476 = vmul.f32 %v2473, 0.5
    %v2477 = vmul.f32 %v2474, 0.5
    %v2478 = vtanh.pop %v2465
    %v2479 = vmul.f32 %v2476, %v2312
    %v2480 = vmul.f32 %v2475, %v2478
    %v2481 = vadd.f32 %v2479, %v2480
    %v2482 = vtanh.pop %v2481
    %v2483 = vmul.f32 %v2477, %v2482
    %s2484 = scalar_lea.vmem [#allocation2], 224
    %v2485 = vld [vmem:[%s2484] sm:$0xff]
    %v2486 = vld [vmem:[%s2484 + $0x8] sm:$0xff]
    %v2487 = vld [vmem:[%s2484 + $0x10] sm:$0xff]
    %v2488 = vld [vmem:[%s2484 + $0x18] sm:$0xff]
    %2489 = vmatprep.subr.mxu0 %v1243
    %2490 = vmatpush1.msra.mxu0 %v1242
    %2491 = vmatprep.subr.mxu0 %v1247
    %2492 = vmatpush1.msra.mxu0 %v1246
    %2493 = vmatprep.subr.mxu0 %v1251
    %2494 = vmatpush1.msra.mxu0 %v1250
    %2495 = vmatprep.subr.mxu0 %v1255
    %2496 = vmatpush1.msra.mxu0 %v1254
    %2497 = vmatprep.subr.mxu0 %v1259
    %2498 = vmatpush1.msra.mxu0 %v1258
    %2499 = vmatprep.subr.mxu0 %v1263
    %2500 = vmatpush1.msra.mxu0 %v1262
    %2501 = vmatprep.subr.mxu0 %v1267
    %2502 = vmatpush1.msra.mxu0 %v1266
    %2503 = vmatprep.subr.mxu0 %v1271
    %2504 = vmatpush1.msra.mxu0 %v1270
    %2505 = vmatprep.subr.mxu0 %v1275
    %2506 = vmatpush1.msra.mxu0 %v1274
    %2507 = vmatprep.subr.mxu0 %v1279
    %2508 = vmatpush1.msra.mxu0 %v1278
    %2509 = vmatprep.subr.mxu0 %v1283
    %2510 = vmatpush1.msra.mxu0 %v1282
    %2511 = vmatprep.subr.mxu0 %v1287
    %2512 = vmatpush1.msra.mxu0 %v1286
    %2513 = vmatprep.subr.mxu0 %v1291
    %2514 = vmatpush1.msra.mxu0 %v1290
    %2515 = vmatprep.subr.mxu0 %v1295
    %2516 = vmatpush1.msra.mxu0 %v1294
    %2517 = vmatprep.subr.mxu0 %v1299
    %2518 = vmatpush1.msra.mxu0 %v1298
    %2519 = vmatprep.subr.mxu0 %v1303
    %2520 = vmatpush1.msra.mxu0 %v1302
    %2521 = vmatprep.subr.mxu0 0.0
    %2522 = vmatpush1.msra.mxu0 0.0
    %2523 = vmatprep.subr.mxu0 0.0
    %2524 = vmatpush1.msra.mxu0 0.0
    %2525 = vmatprep.subr.mxu0 0.0
    %2526 = vmatpush1.msra.mxu0 0.0
    %2527 = vmatprep.subr.mxu0 0.0
    %2528 = vmatpush1.msra.mxu0 0.0
    %2529 = vmatprep.subr.mxu0 0.0
    %2530 = vmatpush1.msra.mxu0 0.0
    %2531 = vmatprep.subr.mxu0 0.0
    %2532 = vmatpush1.msra.mxu0 0.0
    %2533 = vmatprep.subr.mxu0 0.0
    %2534 = vmatpush1.msra.mxu0 0.0
    %2535 = vmatprep.subr.mxu0 0.0
    %2536 = vmatpush1.msra.mxu0 0.0
    %2537 = vmatprep.subr.mxu0 0.0
    %2538 = vmatpush1.msra.mxu0 0.0
    %2539 = vmatprep.subr.mxu0 0.0
    %2540 = vmatpush1.msra.mxu0 0.0
    %2541 = vmatprep.subr.mxu0 0.0
    %2542 = vmatpush1.msra.mxu0 0.0
    %2543 = vmatprep.subr.mxu0 0.0
    %2544 = vmatpush1.msra.mxu0 0.0
    %2545 = vmatprep.subr.mxu0 0.0
    %2546 = vmatpush1.msra.mxu0 0.0
    %2547 = vmatprep.subr.mxu0 0.0
    %2548 = vmatpush1.msra.mxu0 0.0
    %2549 = vmatprep.subr.mxu0 0.0
    %2550 = vmatpush1.msra.mxu0 0.0
    %2551 = vmatprep.subr.mxu0 0.0
    %2552 = vmatpush1.msra.mxu0 0.0
    %2553 = vmatprep.mubr.f32.mxu0 0.0
    %2554 = vmatmul.mubr.f32.gmra.mrb[0].mxu0 %v2483
    %v2555 = vpop.f32.mrb[0].mxu0
    %v2556 = vadd.f32 0.0, %v2555
    %v2557 = vpop.f32.mrb[0].mxu0
    %v2558 = vadd.f32 0.0, %v2557
    %2559 = vdwg.mxu0
    %2560 = vmatprep.subr.mxu0 %v1245
    %2561 = vmatpush1.msra.mxu0 %v1244
    %2562 = vmatprep.subr.mxu0 %v1249
    %2563 = vmatpush1.msra.mxu0 %v1248
    %2564 = vmatprep.subr.mxu0 %v1253
    %2565 = vmatpush1.msra.mxu0 %v1252
    %2566 = vmatprep.subr.mxu0 %v1257
    %2567 = vmatpush1.msra.mxu0 %v1256
    %2568 = vmatprep.subr.mxu0 %v1261
    %2569 = vmatpush1.msra.mxu0 %v1260
    %2570 = vmatprep.subr.mxu0 %v1265
    %2571 = vmatpush1.msra.mxu0 %v1264
    %2572 = vmatprep.subr.mxu0 %v1269
    %2573 = vmatpush1.msra.mxu0 %v1268
    %2574 = vmatprep.subr.mxu0 %v1273
    %2575 = vmatpush1.msra.mxu0 %v1272
    %2576 = vmatprep.subr.mxu0 %v1277
    %2577 = vmatpush1.msra.mxu0 %v1276
    %2578 = vmatprep.subr.mxu0 %v1281
    %2579 = vmatpush1.msra.mxu0 %v1280
    %2580 = vmatprep.subr.mxu0 %v1285
    %2581 = vmatpush1.msra.mxu0 %v1284
    %2582 = vmatprep.subr.mxu0 %v1289
    %2583 = vmatpush1.msra.mxu0 %v1288
    %2584 = vmatprep.subr.mxu0 %v1293
    %2585 = vmatpush1.msra.mxu0 %v1292
    %2586 = vmatprep.subr.mxu0 %v1297
    %2587 = vmatpush1.msra.mxu0 %v1296
    %2588 = vmatprep.subr.mxu0 %v1301
    %2589 = vmatpush1.msra.mxu0 %v1300
    %2590 = vmatprep.subr.mxu0 %v1305
    %2591 = vmatpush1.msra.mxu0 %v1304
    %2592 = vmatprep.subr.mxu0 0.0
    %2593 = vmatpush1.msra.mxu0 0.0
    %2594 = vmatprep.subr.mxu0 0.0
    %2595 = vmatpush1.msra.mxu0 0.0
    %2596 = vmatprep.subr.mxu0 0.0
    %2597 = vmatpush1.msra.mxu0 0.0
    %2598 = vmatprep.subr.mxu0 0.0
    %2599 = vmatpush1.msra.mxu0 0.0
    %2600 = vmatprep.subr.mxu0 0.0
    %2601 = vmatpush1.msra.mxu0 0.0
    %2602 = vmatprep.subr.mxu0 0.0
    %2603 = vmatpush1.msra.mxu0 0.0
    %2604 = vmatprep.subr.mxu0 0.0
    %2605 = vmatpush1.msra.mxu0 0.0
    %2606 = vmatprep.subr.mxu0 0.0
    %2607 = vmatpush1.msra.mxu0 0.0
    %2608 = vmatprep.subr.mxu0 0.0
    %2609 = vmatpush1.msra.mxu0 0.0
    %2610 = vmatprep.subr.mxu0 0.0
    %2611 = vmatpush1.msra.mxu0 0.0
    %2612 = vmatprep.subr.mxu0 0.0
    %2613 = vmatpush1.msra.mxu0 0.0
    %2614 = vmatprep.subr.mxu0 0.0
    %2615 = vmatpush1.msra.mxu0 0.0
    %2616 = vmatprep.subr.mxu0 0.0
    %2617 = vmatpush1.msra.mxu0 0.0
    %2618 = vmatprep.subr.mxu0 0.0
    %2619 = vmatpush1.msra.mxu0 0.0
    %2620 = vmatprep.subr.mxu0 0.0
    %2621 = vmatpush1.msra.mxu0 0.0
    %2622 = vmatprep.subr.mxu0 0.0
    %2623 = vmatpush1.msra.mxu0 0.0
    %2624 = vmatprep.mubr.f32.mxu0 0.0
    %2625 = vmatmul.mubr.f32.gmra.mrb[0].mxu0 %v2483
    %v2626 = vpop.f32.mrb[0].mxu0
    %v2627 = vadd.f32 0.0, %v2626
    %v2628 = vpop.f32.mrb[0].mxu0
    %v2629 = vadd.f32 0.0, %v2628
    %2630 = vdwg.mxu0
    %v2631 = vadd.f32 %v2485, %v2556
    %v2632 = vadd.f32 %v2486, %v2558
    %v2633 = vadd.f32 %v2487, %v2627
    %v2634 = vadd.f32 %v2488, %v2629
    %v2635 = vmul.f32 %v2631, 0.5
    %v2636 = vmul.f32 %v2632, 0.5
    %v2637 = vmul.f32 %v2633, 0.5
    %v2638 = vtanh.pop %v2635
    %v2639 = vtanh.pop %v2636
    %v2640 = vtanh.pop %v2637
    %v2641 = vadd.f32 %v2638, 1.0
    %v2642 = vadd.f32 %v2639, 1.0
    %v2643 = vadd.f32 %v2640, 1.0
    %v2644 = vmul.f32 %v2641, 0.5
    %v2645 = vmul.f32 %v2642, 0.5
    %v2646 = vmul.f32 %v2643, 0.5
    %v2647 = vtanh.pop %v2634
    %v2648 = vmul.f32 %v2645, %v2481
    %v2649 = vmul.f32 %v2644, %v2647
    %v2650 = vadd.f32 %v2648, %v2649
    %v2651 = vtanh.pop %v2650
    %v2652 = vmul.f32 %v2646, %v2651
    %v2653 = vld [vmem:[%s4] sm:$0xff]
    %v2654 = vld [vmem:[%s4 + $0x8] sm:$0xff]
    %v2655 = vld [vmem:[%s4 + $0x10] sm:$0xff]
    %v2656 = vld [vmem:[%s4 + $0x18] sm:$0xff]
    %v2657 = vld [vmem:[%s4 + $0x20] sm:$0xff]
    %v2658 = vld [vmem:[%s4 + $0x28] sm:$0xff]
    %v2659 = vld [vmem:[%s4 + $0x30] sm:$0xff]
    %v2660 = vld [vmem:[%s4 + $0x38] sm:$0xff]
    %v2661 = vld [vmem:[%s4 + $0x40] sm:$0xff]
    %v2662 = vld [vmem:[%s4 + $0x48] sm:$0xff]
    %v2663 = vld [vmem:[%s4 + $0x50] sm:$0xff]
    %v2664 = vld [vmem:[%s4 + $0x58] sm:$0xff]
    %v2665 = vld [vmem:[%s4 + $0x60] sm:$0xff]
    %v2666 = vld [vmem:[%s4 + $0x68] sm:$0xff]
    %v2667 = vld [vmem:[%s4 + $0x70] sm:$0xff]
    %v2668 = vld [vmem:[%s4 + $0x78] sm:$0xff]
    %v2669 = vld [vmem:[#allocation8] sm:$0x1]
    %v2671 = vlaneseq
    %v2672 = vshrl.u32 %v2671, 7
    %v2673 = vsub.s32 0, %v2672
    %v2674 = vrot.slane %v2669, %v2673
    %2676 = vmatprep.subr.mxu0 0.0
    %2677 = vmatpush1.msra.mxu0 %v2653
    %2678 = vmatprep.subr.mxu0 0.0
    %2679 = vmatpush1.msra.mxu0 %v2654
    %2680 = vmatprep.subr.mxu0 0.0
    %2681 = vmatpush1.msra.mxu0 %v2655
    %2682 = vmatprep.subr.mxu0 0.0
    %2683 = vmatpush1.msra.mxu0 %v2656
    %2684 = vmatprep.subr.mxu0 0.0
    %2685 = vmatpush1.msra.mxu0 %v2657
    %2686 = vmatprep.subr.mxu0 0.0
    %2687 = vmatpush1.msra.mxu0 %v2658
    %2688 = vmatprep.subr.mxu0 0.0
    %2689 = vmatpush1.msra.mxu0 %v2659
    %2690 = vmatprep.subr.mxu0 0.0
    %2691 = vmatpush1.msra.mxu0 %v2660
    %2692 = vmatprep.subr.mxu0 0.0
    %2693 = vmatpush1.msra.mxu0 %v2661
    %2694 = vmatprep.subr.mxu0 0.0
    %2695 = vmatpush1.msra.mxu0 %v2662
    %2696 = vmatprep.subr.mxu0 0.0
    %2697 = vmatpush1.msra.mxu0 %v2663
    %2698 = vmatprep.subr.mxu0 0.0
    %2699 = vmatpush1.msra.mxu0 %v2664
    %2700 = vmatprep.subr.mxu0 0.0
    %2701 = vmatpush1.msra.mxu0 %v2665
    %2702 = vmatprep.subr.mxu0 0.0
    %2703 = vmatpush1.msra.mxu0 %v2666
    %2704 = vmatprep.subr.mxu0 0.0
    %2705 = vmatpush1.msra.mxu0 %v2667
    %2706 = vmatprep.subr.mxu0 0.0
    %2707 = vmatpush1.msra.mxu0 %v2668
    %2708 = vmatprep.subr.mxu0 0.0
    %2709 = vmatpush1.msra.mxu0 0.0
    %2710 = vmatprep.subr.mxu0 0.0
    %2711 = vmatpush1.msra.mxu0 0.0
    %2712 = vmatprep.subr.mxu0 0.0
    %2713 = vmatpush1.msra.mxu0 0.0
    %2714 = vmatprep.subr.mxu0 0.0
    %2715 = vmatpush1.msra.mxu0 0.0
    %2716 = vmatprep.subr.mxu0 0.0
    %2717 = vmatpush1.msra.mxu0 0.0
    %2718 = vmatprep.subr.mxu0 0.0
    %2719 = vmatpush1.msra.mxu0 0.0
    %2720 = vmatprep.subr.mxu0 0.0
    %2721 = vmatpush1.msra.mxu0 0.0
    %2722 = vmatprep.subr.mxu0 0.0
    %2723 = vmatpush1.msra.mxu0 0.0
    %2724 = vmatprep.subr.mxu0 0.0
    %2725 = vmatpush1.msra.mxu0 0.0
    %2726 = vmatprep.subr.mxu0 0.0
    %2727 = vmatpush1.msra.mxu0 0.0
    %2728 = vmatprep.subr.mxu0 0.0
    %2729 = vmatpush1.msra.mxu0 0.0
    %2730 = vmatprep.subr.mxu0 0.0
    %2731 = vmatpush1.msra.mxu0 0.0
    %2732 = vmatprep.subr.mxu0 0.0
    %2733 = vmatpush1.msra.mxu0 0.0
    %2734 = vmatprep.subr.mxu0 0.0
    %2735 = vmatpush1.msra.mxu0 0.0
    %2736 = vmatprep.subr.mxu0 0.0
    %2737 = vmatpush1.msra.mxu0 0.0
    %2738 = vmatprep.subr.mxu0 0.0
    %2739 = vmatpush1.msra.mxu0 0.0
    %2740 = vmatprep.mubr.f32.mxu0 0.0
    %2741 = vmatmul.mubr.f32.gmra.mrb[0].mxu0 %v2652
    %v2742 = vpop.f32.mrb[0].mxu0
    %v2743 = vadd.f32 %v2674, %v2742
    %v2744 = vpop.f32.mrb[0].mxu0
    %2745 = vdwg.mxu0
    %vm2746 = vcmask 15360
    %v2747 = vsel %vm2746, %v2743, -inf
    %2748 = vmax.xlane.f32.xlu0 %v2747
    %v2749 = vpop.xlane.xlu0 %2748
    %v2750 = vsub.f32 %v2743, %v2749
    %v2751 = vmul.f32 %v2750, 1.442695
    %v2752 = vpow.pop %v2751
    %v2753 = vsel %vm2746, %v2752, 0.0
    %2754 = vadd.xlane.f32.xlu0 %v2753
    %v2755 = vpop.xlane.xlu0 %2754
    %v2756 = vlog2.pop %v2755
    %v2757 = vmul.f32 %v2756, 0.6931472
    %v2758 = vsub.f32 %v2750, %v2757
    %2759 = vst.msk [vmem:[%s6] sm:$0xff] %vm2746, %v2758
    // Predicated region
    $region42: #{lstm_forward.1} parent=1 // pred_check
      _
    $region43: #{lstm_forward.1} parent=1 // pred_check_branch
      %2761 = sbr.rel (0) target = $region45
    $region44: #{lstm_forward.1} parent=1 // pred_region
      _
    $region45: #{lstm_forward.1} parent=1 // pred_fallthru
      _
    // Predicated region
    $region46: #{lstm_forward.1} parent=1 // pred_check
      _
    $region47: #{lstm_forward.1} parent=1 // pred_check_branch
      %2763 = sbr.rel (0) target = $region49
    $region48: #{lstm_forward.1} parent=1 // pred_region
      _
    $region49: #{lstm_forward.1} parent=1 // pred_fallthru
      _
    %2764 = vsyncpa [#allocation4], 1
    %2765 = vsyncpa [#allocation6], 1
    %2766 = vsyncpa [#allocation9], 1

</llo_original>
